<compile_context>
chip_gen: v7x
topology: tpu7x:2x2x1
jax: 0.10.0
libtpu: 0.0.40
codegen_flags: <defaults>
</compile_context>

<pallas_src>
import math
from functools import partial

import jax
import jax.numpy as jnp
from jax.experimental import pallas as pl
from jax.experimental.pallas import tpu as pltpu


# ----------------------------------------------------------------------------
# per-generation budgets
# ----------------------------------------------------------------------------
def _budgets():
    """(vmem_limit_bytes, token-tile target). v5e/v6e have 128 MiB physical VMEM
    (big tiles OK); v7x has 64 MiB per TensorCore so cap both."""
    phys = 64 * 1024 * 1024
    try:
        phys = pltpu.get_tpu_info().vmem_capacity_bytes
    except Exception:
        pass
    if phys >= 96 * 1024 * 1024:        # v5e / v6e
        return 64 * 1024 * 1024, 1024
    return 32 * 1024 * 1024, 512        # v7x (or unknown -> conservative)


_VMEM_LIMIT, _TM_TARGET = _budgets()


# ----------------------------------------------------------------------------
# small helpers
# ----------------------------------------------------------------------------
def _pick_tile(total, target, align):
    """Largest tile <= target that divides `total` and is a multiple of `align`.
    Falls back to the full extent (always legal: block == full dim).
    NOTE: for large, oddly-shaped totals this fallback produces one big block;
    acceptable for ViT token counts, which are modest."""
    if total <= target:
        return total
    t = (target // align) * align
    while t >= align:
        if total % t == 0:
            return t
        t -= align
    return total


def _gelu(x):
    # exact erf-based GELU, matching torch.nn.GELU() default
    return 0.5 * x * (1.0 + jax.lax.erf(x * 0.7071067811865476))


def _layernorm(x, g, b):
    # LayerNorm over last dim, eps=1e-6, biased variance (matches nn.LayerNorm)
    mean = jnp.mean(x, axis=-1, keepdims=True)
    xc = x - mean
    var = jnp.mean(xc * xc, axis=-1, keepdims=True)
    return xc * jax.lax.rsqrt(var + 1e-6) * g + b


# ----------------------------------------------------------------------------
# Pallas kernels
# ----------------------------------------------------------------------------
def _patch_embed_kernel(c_ref, w_ref, b_ref, pos_ref, o_ref):
    # im2col columns -> linear patch embedding, fused + pos_embed add
    cols = c_ref[0].astype(jnp.bfloat16)                       # (tp, patch_dim)
    y = jnp.dot(cols, w_ref[...], preferred_element_type=jnp.float32) + b_ref[...]
    o_ref[0] = y + pos_ref[0]


def _ln_qkv_kernel(x_ref, g_ref, b_ref, w_ref, bias_ref, q_out, k_out, v_out, *, dim):
    # LayerNorm (f32) fused with ONE (tm, C) x (C, 3C) bf16 MXU dot (f32 acc).
    # Attention scale pre-folded into the q columns of w/bias.
    xn = _layernorm(x_ref[...], g_ref[...], b_ref[...]).astype(jnp.bfloat16)
    y = jnp.dot(xn, w_ref[...], preferred_element_type=jnp.float32) + bias_ref[...]
    y = y.astype(jnp.bfloat16)                                  # bf16 intermediates
    q_out[...] = y[:, :dim]
    k_out[...] = y[:, dim:2 * dim]
    v_out[...] = y[:, 2 * dim:]


def _attn_proj_kernel(q_ref, k_ref, v_ref, pw_ref, pb_ref, r_ref, o_ref, acc_ref,
                      *, num_heads, head_dim):
    # One (batch, query-tile) per grid step. Per-head softmax-attention results
    # are written straight into a bf16 VMEM scratch (no concatenate, low vreg
    # pressure); the output projection + residual add are fused so the (tq, C)
    # head-concat never touches HBM. Scale already folded into q.
    for h in range(num_heads):
        lo, hi = h * head_dim, (h + 1) * head_dim
        qh = q_ref[0, :, lo:hi]                                 # (tq, d) bf16
        kh = k_ref[0, :, lo:hi]                                 # (N, d)  bf16
        vh = v_ref[0, :, lo:hi]                                 # (N, d)  bf16
        s = jax.lax.dot_general(qh, kh, (((1,), (1,)), ((), ())),
                                preferred_element_type=jnp.float32)   # (tq, N)
        m = jnp.max(s, axis=-1, keepdims=True)
        p = jnp.exp(s - m)
        inv = pl.reciprocal(jnp.sum(p, axis=-1, keepdims=True), approx=True)
        p = (p * inv).astype(jnp.bfloat16)
        acc_ref[:, lo:hi] = jnp.dot(
            p, vh, preferred_element_type=jnp.float32).astype(jnp.bfloat16)
    # fused output projection (proj_w VMEM-resident across the grid) + residual
    y = jnp.dot(acc_ref[...], pw_ref[...], preferred_element_type=jnp.float32) + pb_ref[...]
    o_ref[0] = r_ref[0] + y


def _ln_linear_gelu_kernel(x_ref, g_ref, b_ref, w_ref, bias_ref, o_ref):
    # out = GELU(LayerNorm(x) @ W + b), written bf16 (consumed by a bf16 matmul)
    xn = _layernorm(x_ref[...], g_ref[...], b_ref[...]).astype(jnp.bfloat16)
    y = jnp.dot(xn, w_ref[...], preferred_element_type=jnp.float32) + bias_ref[...]
    o_ref[...] = _gelu(y).astype(o_ref.dtype)


def _linear_residual_kernel(x_ref, w_ref, b_ref, r_ref, o_ref):
    # out = residual + x @ W + b   (bf16 MXU, f32 accumulate / residual stream)
    y = jnp.dot(x_ref[...].astype(jnp.bfloat16), w_ref[...],
                preferred_element_type=jnp.float32) + b_ref[...]
    o_ref[...] = r_ref[...] + y


def _ln_pool_head_kernel(x_ref, g_ref, b_ref, w_ref, hb_ref, o_ref):
    # final LayerNorm on all tokens, mean over tokens, classifier head
    xn = _layernorm(x_ref[0], g_ref[...], b_ref[...])           # (N, C)
    pooled = jnp.mean(xn, axis=0, keepdims=True).astype(jnp.bfloat16)   # (1, C)
    o_ref[0] = jnp.dot(pooled, w_ref[...],
                       preferred_element_type=jnp.float32) + hb_ref[...]


# ----------------------------------------------------------------------------
# Pallas wrappers
# ----------------------------------------------------------------------------
def pallas_patch_embed(x, w_bf16, b, pos, patch):
    # x: (B, C, H, W) NCHW. im2col is plain-JAX glue; matmul + pos add in Pallas.
    B, C, H, W = x.shape
    gh, gw = H // patch, W // patch
    numP = gh * gw
    patch_dim = C * patch * patch
    cols = (x.reshape(B, C, gh, patch, gw, patch)
             .transpose(0, 2, 4, 1, 3, 5)
             .reshape(B, numP, patch_dim))
    D = w_bf16.shape[1]
    tp = _pick_tile(numP, 512, 128)
    return pl.pallas_call(
        _patch_embed_kernel,
        out_shape=jax.ShapeDtypeStruct((B, numP, D), jnp.float32),
        grid=(B, numP // tp),
        in_specs=[
            pl.BlockSpec((1, tp, patch_dim), lambda b_, p_: (b_, p_, 0)),
            pl.BlockSpec((patch_dim, D), lambda b_, p_: (0, 0)),
            pl.BlockSpec((1, D), lambda b_, p_: (0, 0)),
            pl.BlockSpec((1, tp, D), lambda b_, p_: (0, p_, 0)),
        ],
        out_specs=pl.BlockSpec((1, tp, D), lambda b_, p_: (b_, p_, 0)),
        compiler_params=pltpu.CompilerParams(
            dimension_semantics=("parallel", "parallel"),
            vmem_limit_bytes=_VMEM_LIMIT),
    )(cols, w_bf16, b, pos)


def pallas_ln_qkv(x, prm):
    # x: (M, C) tokens. One fused LN + (C, 3C) projection; returns bf16 q, k, v.
    M, C = x.shape
    tm = _pick_tile(M, _TM_TARGET, 128)
    row = lambda i: (i, 0)
    full = lambda i: (0, 0)
    out_spec = pl.BlockSpec((tm, C), row)
    q, k, v = pl.pallas_call(
        partial(_ln_qkv_kernel, dim=C),
        out_shape=(jax.ShapeDtypeStruct((M, C), jnp.bfloat16),
                   jax.ShapeDtypeStruct((M, C), jnp.bfloat16),
                   jax.ShapeDtypeStruct((M, C), jnp.bfloat16)),
        grid=(M // tm,),
        in_specs=[
            pl.BlockSpec((tm, C), row),
            pl.BlockSpec((1, C), full), pl.BlockSpec((1, C), full),
            pl.BlockSpec((C, 3 * C), full),                     # fused qkv weight
            pl.BlockSpec((1, 3 * C), full),                     # fused qkv bias
        ],
        out_specs=(out_spec, out_spec, out_spec),
        compiler_params=pltpu.CompilerParams(
            dimension_semantics=("parallel",), vmem_limit_bytes=_VMEM_LIMIT),
    )(x, prm["ln1_g"], prm["ln1_b"], prm["qkv_w"], prm["qkv_b"])
    return q, k, v


def pallas_attention_proj(q, k, v, x_resid, prm, num_heads):
    # q, k, v: (B, N, C) bf16 with C = num_heads * head_dim; x_resid: (B, N, C) f32.
    # Output = x_resid + attn(q, k, v) @ proj_w + proj_b  (f32 residual stream).
    B, N, C = q.shape
    d = C // num_heads
    tq = _pick_tile(N, 512, 128)
    qspec = pl.BlockSpec((1, tq, C), lambda b, qi: (b, qi, 0))
    kvspec = pl.BlockSpec((1, N, C), lambda b, qi: (b, 0, 0))   # resident across qi
    return pl.pallas_call(
        partial(_attn_proj_kernel, num_heads=num_heads, head_dim=d),
        out_shape=jax.ShapeDtypeStruct((B, N, C), jnp.float32),
        grid=(B, N // tq),
        in_specs=[
            qspec, kvspec, kvspec,
            pl.BlockSpec((C, C), lambda b, qi: (0, 0)),          # proj_w
            pl.BlockSpec((1, C), lambda b, qi: (0, 0)),          # proj_b
            qspec,                                               # residual tile
        ],
        out_specs=qspec,
        scratch_shapes=[pltpu.VMEM((tq, C), jnp.bfloat16)],
        compiler_params=pltpu.CompilerParams(
            dimension_semantics=("parallel", "parallel"),
            vmem_limit_bytes=_VMEM_LIMIT),
    )(q, k, v, prm["proj_w"], prm["proj_b"], x_resid)


def pallas_ln_linear_gelu(x, g, b, w_bf16, bias):
    # out = GELU(LN(x) @ W + b), tiled over tokens only: the full (C, hidden)
    # bf16 weight stays VMEM-resident (no per-tile re-streaming). Output bf16.
    M, C = x.shape
    N = w_bf16.shape[1]
    tm = _pick_tile(M, _TM_TARGET, 128)
    row = lambda i: (i, 0)
    full = lambda i: (0, 0)
    return pl.pallas_call(
        _ln_linear_gelu_kernel,
        out_shape=jax.ShapeDtypeStruct((M, N), jnp.bfloat16),
        grid=(M // tm,),
        in_specs=[
            pl.BlockSpec((tm, C), row),
            pl.BlockSpec((1, C), full), pl.BlockSpec((1, C), full),
            pl.BlockSpec((C, N), full),
            pl.BlockSpec((1, N), full),
        ],
        out_specs=pl.BlockSpec((tm, N), row),
        compiler_params=pltpu.CompilerParams(
            dimension_semantics=("parallel",), vmem_limit_bytes=_VMEM_LIMIT),
    )(x, g, b, w_bf16, bias)


def pallas_linear_residual(x, w_bf16, b, resid):
    # out = resid + x @ W + b, tiled over tokens (x may be bf16, resid f32).
    M, K = x.shape
    N = w_bf16.shape[1]
    tm = _pick_tile(M, _TM_TARGET, 128)
    row = lambda i: (i, 0)
    full = lambda i: (0, 0)
    return pl.pallas_call(
        _linear_residual_kernel,
        out_shape=jax.ShapeDtypeStruct((M, N), jnp.float32),
        grid=(M // tm,),
        in_specs=[
            pl.BlockSpec((tm, K), row),
            pl.BlockSpec((K, N), full),
            pl.BlockSpec((1, N), full),
            pl.BlockSpec((tm, N), row),
        ],
        out_specs=pl.BlockSpec((tm, N), row),
        compiler_params=pltpu.CompilerParams(
            dimension_semantics=("parallel",), vmem_limit_bytes=_VMEM_LIMIT),
    )(x, w_bf16, b, resid)


def pallas_ln_pool_head(x, g, b, w_bf16, hb):
    # final LN + mean-pool over tokens + classifier head (class dim padded to 128)
    B, N, C = x.shape
    Kp = w_bf16.shape[1]
    return pl.pallas_call(
        _ln_pool_head_kernel,
        out_shape=jax.ShapeDtypeStruct((B, 1, Kp), jnp.float32),
        grid=(B,),
        in_specs=[
            pl.BlockSpec((1, N, C), lambda i: (i, 0, 0)),
            pl.BlockSpec((1, C), lambda i: (0, 0)),
            pl.BlockSpec((1, C), lambda i: (0, 0)),
            pl.BlockSpec((C, Kp), lambda i: (0, 0)),
            pl.BlockSpec((1, Kp), lambda i: (0, 0)),
        ],
        out_specs=pl.BlockSpec((1, 1, Kp), lambda i: (i, 0, 0)),
        compiler_params=pltpu.CompilerParams(
            dimension_semantics=("parallel",), vmem_limit_bytes=_VMEM_LIMIT),
    )(x, g, b, w_bf16, hb)


# ----------------------------------------------------------------------------
# Model forward (glue in plain JAX, compute in Pallas)
# ----------------------------------------------------------------------------
def block_forward(x, prm, num_heads):
    B, N, C = x.shape
    xf = x.reshape(B * N, C)

    # DGE compress == identity (full-grain), q_lengths uniform -> residual = x.
    # norm1 fused into the single q/k/v projection (one LN, one (C,3C) dot).
    q, k, v = pallas_ln_qkv(xf, prm)                           # bf16 (B*N, C) x3

    # attention + output projection + residual add, fused per (batch, q-tile)
    tok = pallas_attention_proj(q.reshape(B, N, C), k.reshape(B, N, C),
                                v.reshape(B, N, C), x, prm, num_heads)  # f32
    tokf = tok.reshape(B * N, C)

    # MLP: norm2 + fc1 + GELU fused (bf16 out), then fc2 + residual-add fused
    h = pallas_ln_linear_gelu(tokf, prm["ln2_g"], prm["ln2_b"],
                              prm["fc1_w"], prm["fc1_b"])
    tokf = pallas_linear_residual(h, prm["fc2_w"], prm["fc2_b"], tokf)

    # DGE decompress == identity
    return tokf.reshape(B, N, C)


def vit_forward(x, params, *, patch, num_heads, num_classes):
    tokens = pallas_patch_embed(x, params["patch_w"], params["patch_b"],
                                params["pos_embed"], patch)   # + pos_embed fused
    for blk in params["blocks"]:
        tokens = block_forward(tokens, blk, num_heads)
    # no cls token -> head(norm(x).mean(dim=1)); class dim padded to 128 lanes
    logits_pad = pallas_ln_pool_head(tokens, params["norm_g"], params["norm_b"],
                                     params["head_w"], params["head_b"])
    return logits_pad[:, 0, :num_classes]


# ----------------------------------------------------------------------------
# Parameter initialization (synthetic, trunc-normal-like std=0.02, f32 "torch"
# layout) and parameter prep (bf16 weights, scale folding, qkv concat, head pad).
# ----------------------------------------------------------------------------
def init_params(key, *, in_chans, patch, embed_dim, depth, num_heads, mlp_ratio,
                num_patches, num_classes):
    keys = iter(jax.random.split(key, 8 + 8 * depth))

    def w(shape, std=0.02):
        return jax.random.normal(next(keys), shape, jnp.float32) * std

    hidden = int(embed_dim * mlp_ratio)
    patch_dim = in_chans * patch * patch
    params = {
        "patch_w": w((patch_dim, embed_dim)),
        "patch_b": jnp.zeros((embed_dim,), jnp.float32),
        "pos_embed": w((1, num_patches, embed_dim)),
        "norm_g": jnp.ones((embed_dim,), jnp.float32),
        "norm_b": jnp.zeros((embed_dim,), jnp.float32),
        "head_w": w((embed_dim, num_classes)),
        "head_b": jnp.zeros((num_classes,), jnp.float32),
        "blocks": [],
    }
    for _ in range(depth):
        params["blocks"].append({
            "ln1_g": jnp.ones((embed_dim,), jnp.float32),
            "ln1_b": jnp.zeros((embed_dim,), jnp.float32),
            "q_w": w((embed_dim, embed_dim)),
            "q_b": jnp.zeros((embed_dim,), jnp.float32),
            "kv_w": w((embed_dim, 2 * embed_dim)),
            "kv_b": jnp.zeros((2 * embed_dim,), jnp.float32),
            "proj_w": w((embed_dim, embed_dim)),
            "proj_b": jnp.zeros((embed_dim,), jnp.float32),
            "ln2_g": jnp.ones((embed_dim,), jnp.float32),
            "ln2_b": jnp.zeros((embed_dim,), jnp.float32),
            "fc1_w": w((embed_dim, hidden)),
            "fc1_b": jnp.zeros((hidden,), jnp.float32),
            "fc2_w": w((hidden, embed_dim)),
            "fc2_b": jnp.zeros((embed_dim,), jnp.float32),
        })
    return params


def prepare_params(params, num_heads):
    """Kernel-friendly param layout: bf16 matmul weights, attention scale folded
    into the q columns of a concatenated (C, 3C) qkv weight, biases as (1, N)
    rows, classifier head padded to 128 lanes."""
    C = params["patch_w"].shape[1]
    d = C // num_heads
    scale = d ** (-0.5)
    num_classes = params["head_w"].shape[1]
    kpad = ((num_classes + 127) // 128) * 128

    head_w = jnp.zeros((C, kpad), jnp.float32).at[:, :num_classes].set(params["head_w"])
    head_b = jnp.zeros((1, kpad), jnp.float32).at[:, :num_classes].set(
        params["head_b"].reshape(1, -1))

    out = {
        "patch_w": params["patch_w"].astype(jnp.bfloat16),
        "patch_b": params["patch_b"].reshape(1, -1),
        "pos_embed": params["pos_embed"],
        "norm_g": params["norm_g"].reshape(1, -1),
        "norm_b": params["norm_b"].reshape(1, -1),
        "head_w": head_w.astype(jnp.bfloat16),
        "head_b": head_b,
        "blocks": [],
    }
    for blk in params["blocks"]:
        kv_w, kv_b = blk["kv_w"], blk["kv_b"]
        qkv_w = jnp.concatenate([blk["q_w"] * scale, kv_w[:, :C], kv_w[:, C:]], axis=1)
        qkv_b = jnp.concatenate([blk["q_b"] * scale, kv_b[:C], kv_b[C:]], axis=0)
        out["blocks"].append({
            "ln1_g": blk["ln1_g"].reshape(1, -1),
            "ln1_b": blk["ln1_b"].reshape(1, -1),
            "qkv_w": qkv_w.astype(jnp.bfloat16),            # scale folded into q cols
            "qkv_b": qkv_b.reshape(1, -1),
            "proj_w": blk["proj_w"].astype(jnp.bfloat16),
            "proj_b": blk["proj_b"].reshape(1, -1),
            "ln2_g": blk["ln2_g"].reshape(1, -1),
            "ln2_b": blk["ln2_b"].reshape(1, -1),
            "fc1_w": blk["fc1_w"].astype(jnp.bfloat16),
            "fc1_b": blk["fc1_b"].reshape(1, -1),
            "fc2_w": blk["fc2_w"].astype(jnp.bfloat16),
            "fc2_b": blk["fc2_b"].reshape(1, -1),
        })
    return out


# ----------------------------------------------------------------------------
if __name__ == "__main__":
    # Small config consistent with the module: img 16, patch 4 -> 16 tokens
    B, C_IN, IMG, PATCH = 2, 3, 16, 4
    EMBED, DEPTH, HEADS, MLP_RATIO = 32, 2, 4, 4.0
    NUM_CLASSES = 10
    NUM_PATCHES = (IMG // PATCH) ** 2
    assert int(math.sqrt(NUM_PATCHES)) ** 2 == NUM_PATCHES

    key = jax.random.PRNGKey(0)
    k_inp, k_par = jax.random.split(key)

    x = jax.random.normal(k_inp, (B, C_IN, IMG, IMG), dtype=jnp.float32)
    raw_params = init_params(
        k_par,
        in_chans=C_IN,
        patch=PATCH,
        embed_dim=EMBED,
        depth=DEPTH,
        num_heads=HEADS,
        mlp_ratio=MLP_RATIO,
        num_patches=NUM_PATCHES,
        num_classes=NUM_CLASSES,
    )
    params = prepare_params(raw_params, HEADS)

    fwd = jax.jit(partial(vit_forward, patch=PATCH, num_heads=HEADS,
                          num_classes=NUM_CLASSES))
    logits = fwd(x, params)
    jax.block_until_ready(logits)

    assert logits.shape == (B, NUM_CLASSES)
    assert bool(jnp.all(jnp.isfinite(logits)))
    print("KERNEL_OK")
</pallas_src>

<mosaic_0001>
module attributes {stable_mosaic.version = 11 : i64} {
  func.func @_ln_qkv_kernel(%arg0: i32, %arg1: memref<32x32xf32, #tpu.memory_space<vmem>>, %arg2: memref<1x32xf32, #tpu.memory_space<vmem>>, %arg3: memref<1x32xf32, #tpu.memory_space<vmem>>, %arg4: memref<32x96xbf16, #tpu.memory_space<vmem>>, %arg5: memref<1x96xf32, #tpu.memory_space<vmem>>, %arg6: memref<32x32xbf16, #tpu.memory_space<vmem>>, %arg7: memref<32x32xbf16, #tpu.memory_space<vmem>>, %arg8: memref<32x32xbf16, #tpu.memory_space<vmem>>) attributes {dimension_semantics = [#tpu.dimension_semantics<parallel>], iteration_bounds = array<i64: 1>, scalar_prefetch = 0 : i64, scratch_operands = 0 : i64, tpu.core_type = #tpu.core_type<tc>, window_params = [{transform_indices = @transform_0, window_bounds = array<i64: 32, 32>}, {pipeline_mode = #tpu.pipeline_mode<synchronous>, transform_indices = @transform_1, window_bounds = array<i64: 1, 32>}, {pipeline_mode = #tpu.pipeline_mode<synchronous>, transform_indices = @transform_2, window_bounds = array<i64: 1, 32>}, {pipeline_mode = #tpu.pipeline_mode<synchronous>, transform_indices = @transform_3, window_bounds = array<i64: 32, 96>}, {pipeline_mode = #tpu.pipeline_mode<synchronous>, transform_indices = @transform_4, window_bounds = array<i64: 1, 96>}, {transform_indices = @transform_5, window_bounds = array<i64: 32, 32>}, {transform_indices = @transform_6, window_bounds = array<i64: 32, 32>}, {transform_indices = @transform_7, window_bounds = array<i64: 32, 32>}]} {
    %c0 = arith.constant 0 : index
    %c0_0 = arith.constant 0 : index
    %0 = vector.load %arg1[%c0, %c0_0] : memref<32x32xf32, #tpu.memory_space<vmem>>, vector<32x32xf32>
    %c0_1 = arith.constant 0 : index
    %c0_2 = arith.constant 0 : index
    %1 = vector.load %arg2[%c0_1, %c0_2] : memref<1x32xf32, #tpu.memory_space<vmem>>, vector<1x32xf32>
    %c0_3 = arith.constant 0 : index
    %c0_4 = arith.constant 0 : index
    %2 = vector.load %arg3[%c0_3, %c0_4] : memref<1x32xf32, #tpu.memory_space<vmem>>, vector<1x32xf32>
    %cst = arith.constant dense<0.000000e+00> : vector<32xf32>
    %3 = vector.multi_reduction <add>, %0, %cst [1] : vector<32x32xf32> to vector<32xf32>
    %4 = vector.shape_cast %3 : vector<32xf32> to vector<32x1xf32>
    %cst_5 = arith.constant 3.200000e+01 : f32
    %5 = vector.broadcast %cst_5 : f32 to vector<32x1xf32>
    %6 = arith.divf %4, %5 : vector<32x1xf32>
    %7 = vector.broadcast %6 : vector<32x1xf32> to vector<32x32xf32>
    %8 = arith.subf %0, %7 : vector<32x32xf32>
    %9 = arith.mulf %8, %8 : vector<32x32xf32>
    %cst_6 = arith.constant dense<0.000000e+00> : vector<32xf32>
    %10 = vector.multi_reduction <add>, %9, %cst_6 [1] : vector<32x32xf32> to vector<32xf32>
    %11 = vector.shape_cast %10 : vector<32xf32> to vector<32x1xf32>
    %cst_7 = arith.constant 3.200000e+01 : f32
    %12 = vector.broadcast %cst_7 : f32 to vector<32x1xf32>
    %13 = arith.divf %11, %12 : vector<32x1xf32>
    %cst_8 = arith.constant 9.99999997E-7 : f32
    %14 = vector.broadcast %cst_8 : f32 to vector<32x1xf32>
    %15 = arith.addf %13, %14 : vector<32x1xf32>
    %16 = math.rsqrt %15 : vector<32x1xf32>
    %17 = vector.broadcast %16 : vector<32x1xf32> to vector<32x32xf32>
    %18 = arith.mulf %8, %17 : vector<32x32xf32>
    %19 = vector.broadcast %1 : vector<1x32xf32> to vector<32x32xf32>
    %20 = arith.mulf %18, %19 : vector<32x32xf32>
    %21 = vector.broadcast %2 : vector<1x32xf32> to vector<32x32xf32>
    %22 = arith.addf %20, %21 : vector<32x32xf32>
    %23 = arith.truncf %22 : vector<32x32xf32> to vector<32x32xbf16>
    %c0_9 = arith.constant 0 : index
    %c0_10 = arith.constant 0 : index
    %24 = vector.load %arg4[%c0_9, %c0_10] : memref<32x96xbf16, #tpu.memory_space<vmem>>, vector<32x96xbf16>
    %cst_11 = arith.constant dense<0.000000e+00> : vector<32x96xf32>
    %25 = tpu.matmul %23, %24, %cst_11 {dimension_numbers = #tpu.dot_dimension_numbers<[1], [0], [0], [1], [0, 0, 1, 1], [], []>} : vector<32x32xbf16>, vector<32x96xbf16>, vector<32x96xf32> -> vector<32x96xf32>
    %c0_12 = arith.constant 0 : index
    %c0_13 = arith.constant 0 : index
    %26 = vector.load %arg5[%c0_12, %c0_13] : memref<1x96xf32, #tpu.memory_space<vmem>>, vector<1x96xf32>
    %27 = vector.broadcast %26 : vector<1x96xf32> to vector<32x96xf32>
    %28 = arith.addf %25, %27 : vector<32x96xf32>
    %29 = arith.truncf %28 : vector<32x96xf32> to vector<32x96xbf16>
    %30 = vector.extract_strided_slice %29 {offsets = [0, 0], sizes = [32, 32], strides = [1, 1]} : vector<32x96xbf16> to vector<32x32xbf16>
    %c0_14 = arith.constant 0 : index
    %c0_15 = arith.constant 0 : index
    %31 = vector.load %arg6[%c0_14, %c0_15] : memref<32x32xbf16, #tpu.memory_space<vmem>>, vector<32x32xbf16>
    tpu.vector_store %arg6[%c0_14, %c0_15], %30 {strides = array<i32>} : memref<32x32xbf16, #tpu.memory_space<vmem>>, vector<32x32xbf16>,
    %32 = vector.extract_strided_slice %29 {offsets = [0, 32], sizes = [32, 32], strides = [1, 1]} : vector<32x96xbf16> to vector<32x32xbf16>
    %c0_16 = arith.constant 0 : index
    %c0_17 = arith.constant 0 : index
    %33 = vector.load %arg7[%c0_16, %c0_17] : memref<32x32xbf16, #tpu.memory_space<vmem>>, vector<32x32xbf16>
    tpu.vector_store %arg7[%c0_16, %c0_17], %32 {strides = array<i32>} : memref<32x32xbf16, #tpu.memory_space<vmem>>, vector<32x32xbf16>,
    %34 = vector.extract_strided_slice %29 {offsets = [0, 64], sizes = [32, 32], strides = [1, 1]} : vector<32x96xbf16> to vector<32x32xbf16>
    %c0_18 = arith.constant 0 : index
    %c0_19 = arith.constant 0 : index
    %35 = vector.load %arg8[%c0_18, %c0_19] : memref<32x32xbf16, #tpu.memory_space<vmem>>, vector<32x32xbf16>
    tpu.vector_store %arg8[%c0_18, %c0_19], %34 {strides = array<i32>} : memref<32x32xbf16, #tpu.memory_space<vmem>>, vector<32x32xbf16>,
    return
  }
  func.func @transform_0(%arg0: i32) -> (i32, i32) {
    %c0_i32 = arith.constant 0 : i32
    %c0_i32_0 = arith.constant 0 : i32
    return %arg0, %c0_i32 : i32, i32
  }
  func.func @transform_1(%arg0: i32) -> (i32, i32) {
    %c0_i32 = arith.constant 0 : i32
    %c0_i32_0 = arith.constant 0 : i32
    %c0_i32_1 = arith.constant 0 : i32
    return %c0_i32, %c0_i32_0 : i32, i32
  }
  func.func @transform_2(%arg0: i32) -> (i32, i32) {
    %c0_i32 = arith.constant 0 : i32
    %c0_i32_0 = arith.constant 0 : i32
    %c0_i32_1 = arith.constant 0 : i32
    return %c0_i32, %c0_i32_0 : i32, i32
  }
  func.func @transform_3(%arg0: i32) -> (i32, i32) {
    %c0_i32 = arith.constant 0 : i32
    %c0_i32_0 = arith.constant 0 : i32
    %c0_i32_1 = arith.constant 0 : i32
    return %c0_i32, %c0_i32_0 : i32, i32
  }
  func.func @transform_4(%arg0: i32) -> (i32, i32) {
    %c0_i32 = arith.constant 0 : i32
    %c0_i32_0 = arith.constant 0 : i32
    %c0_i32_1 = arith.constant 0 : i32
    return %c0_i32, %c0_i32_0 : i32, i32
  }
  func.func @transform_5(%arg0: i32) -> (i32, i32) {
    %c0_i32 = arith.constant 0 : i32
    %c0_i32_0 = arith.constant 0 : i32
    return %arg0, %c0_i32 : i32, i32
  }
  func.func @transform_6(%arg0: i32) -> (i32, i32) {
    %c0_i32 = arith.constant 0 : i32
    %c0_i32_0 = arith.constant 0 : i32
    return %arg0, %c0_i32 : i32, i32
  }
  func.func @transform_7(%arg0: i32) -> (i32, i32) {
    %c0_i32 = arith.constant 0 : i32
    %c0_i32_0 = arith.constant 0 : i32
    return %arg0, %c0_i32 : i32, i32
  }
}

module attributes {stable_mosaic.version = 11 : i64} {
  func.func @_patch_embed_kernel(%arg0: i32, %arg1: i32, %arg2: memref<1x16x48xf32, #tpu.memory_space<vmem>>, %arg3: memref<48x32xbf16, #tpu.memory_space<vmem>>, %arg4: memref<1x32xf32, #tpu.memory_space<vmem>>, %arg5: memref<1x16x32xf32, #tpu.memory_space<vmem>>, %arg6: memref<1x16x32xf32, #tpu.memory_space<vmem>>) attributes {dimension_semantics = [#tpu.dimension_semantics<parallel>, #tpu.dimension_semantics<parallel>], iteration_bounds = array<i64: 2, 1>, scalar_prefetch = 0 : i64, scratch_operands = 0 : i64, tpu.core_type = #tpu.core_type<tc>, window_params = [{transform_indices = @transform_0, window_bounds = array<i64: 1, 16, 48>}, {pipeline_mode = #tpu.pipeline_mode<synchronous>, transform_indices = @transform_1, window_bounds = array<i64: 48, 32>}, {pipeline_mode = #tpu.pipeline_mode<synchronous>, transform_indices = @transform_2, window_bounds = array<i64: 1, 32>}, {transform_indices = @transform_3, window_bounds = array<i64: 1, 16, 32>}, {transform_indices = @transform_4, window_bounds = array<i64: 1, 16, 32>}]} {
    %c0 = arith.constant 0 : index
    %c0_0 = arith.constant 0 : index
    %c0_1 = arith.constant 0 : index
    %0 = vector.load %arg2[%c0, %c0_0, %c0_1] : memref<1x16x48xf32, #tpu.memory_space<vmem>>, vector<1x16x48xf32>
    %1 = vector.shape_cast %0 : vector<1x16x48xf32> to vector<16x48xf32>
    %2 = arith.truncf %1 : vector<16x48xf32> to vector<16x48xbf16>
    %c0_2 = arith.constant 0 : index
    %c0_3 = arith.constant 0 : index
    %3 = vector.load %arg3[%c0_2, %c0_3] : memref<48x32xbf16, #tpu.memory_space<vmem>>, vector<48x32xbf16>
    %cst = arith.constant dense<0.000000e+00> : vector<16x32xf32>
    %4 = tpu.matmul %2, %3, %cst {dimension_numbers = #tpu.dot_dimension_numbers<[1], [0], [0], [1], [0, 0, 1, 1], [], []>} : vector<16x48xbf16>, vector<48x32xbf16>, vector<16x32xf32> -> vector<16x32xf32>
    %c0_4 = arith.constant 0 : index
    %c0_5 = arith.constant 0 : index
    %5 = vector.load %arg4[%c0_4, %c0_5] : memref<1x32xf32, #tpu.memory_space<vmem>>, vector<1x32xf32>
    %6 = vector.broadcast %5 : vector<1x32xf32> to vector<16x32xf32>
    %7 = arith.addf %4, %6 : vector<16x32xf32>
    %c0_6 = arith.constant 0 : index
    %c0_7 = arith.constant 0 : index
    %c0_8 = arith.constant 0 : index
    %8 = vector.load %arg5[%c0_6, %c0_7, %c0_8] : memref<1x16x32xf32, #tpu.memory_space<vmem>>, vector<1x16x32xf32>
    %9 = vector.shape_cast %8 : vector<1x16x32xf32> to vector<16x32xf32>
    %10 = arith.addf %7, %9 : vector<16x32xf32>
    %c0_9 = arith.constant 0 : index
    %c0_10 = arith.constant 0 : index
    %c0_11 = arith.constant 0 : index
    %11 = vector.load %arg6[%c0_9, %c0_10, %c0_11] : memref<1x16x32xf32, #tpu.memory_space<vmem>>, vector<1x16x32xf32>
    %12 = vector.shape_cast %11 : vector<1x16x32xf32> to vector<16x32xf32>
    %13 = vector.shape_cast %10 : vector<16x32xf32> to vector<1x16x32xf32>
    tpu.vector_store %arg6[%c0_9, %c0_10, %c0_11], %13 {strides = array<i32>} : memref<1x16x32xf32, #tpu.memory_space<vmem>>, vector<1x16x32xf32>,
    return
  }
  func.func @transform_0(%arg0: i32, %arg1: i32) -> (i32, i32, i32) {
    %c0_i32 = arith.constant 0 : i32
    %c0_i32_0 = arith.constant 0 : i32
    return %arg0, %arg1, %c0_i32 : i32, i32, i32
  }
  func.func @transform_1(%arg0: i32, %arg1: i32) -> (i32, i32) {
    %c0_i32 = arith.constant 0 : i32
    %c0_i32_0 = arith.constant 0 : i32
    %c0_i32_1 = arith.constant 0 : i32
    return %c0_i32, %c0_i32_0 : i32, i32
  }
  func.func @transform_2(%arg0: i32, %arg1: i32) -> (i32, i32) {
    %c0_i32 = arith.constant 0 : i32
    %c0_i32_0 = arith.constant 0 : i32
    %c0_i32_1 = arith.constant 0 : i32
    return %c0_i32, %c0_i32_0 : i32, i32
  }
  func.func @transform_3(%arg0: i32, %arg1: i32) -> (i32, i32, i32) {
    %c0_i32 = arith.constant 0 : i32
    %c0_i32_0 = arith.constant 0 : i32
    %c0_i32_1 = arith.constant 0 : i32
    return %c0_i32, %arg1, %c0_i32_0 : i32, i32, i32
  }
  func.func @transform_4(%arg0: i32, %arg1: i32) -> (i32, i32, i32) {
    %c0_i32 = arith.constant 0 : i32
    %c0_i32_0 = arith.constant 0 : i32
    return %arg0, %arg1, %c0_i32 : i32, i32, i32
  }
}

module attributes {stable_mosaic.version = 11 : i64} {
  func.func @_ln_linear_gelu_kernel(%arg0: i32, %arg1: memref<32x32xf32, #tpu.memory_space<vmem>>, %arg2: memref<1x32xf32, #tpu.memory_space<vmem>>, %arg3: memref<1x32xf32, #tpu.memory_space<vmem>>, %arg4: memref<32x128xbf16, #tpu.memory_space<vmem>>, %arg5: memref<1x128xf32, #tpu.memory_space<vmem>>, %arg6: memref<32x128xbf16, #tpu.memory_space<vmem>>) attributes {dimension_semantics = [#tpu.dimension_semantics<parallel>], iteration_bounds = array<i64: 1>, scalar_prefetch = 0 : i64, scratch_operands = 0 : i64, tpu.core_type = #tpu.core_type<tc>, window_params = [{transform_indices = @transform_0, window_bounds = array<i64: 32, 32>}, {pipeline_mode = #tpu.pipeline_mode<synchronous>, transform_indices = @transform_1, window_bounds = array<i64: 1, 32>}, {pipeline_mode = #tpu.pipeline_mode<synchronous>, transform_indices = @transform_2, window_bounds = array<i64: 1, 32>}, {pipeline_mode = #tpu.pipeline_mode<synchronous>, transform_indices = @transform_3, window_bounds = array<i64: 32, 128>}, {pipeline_mode = #tpu.pipeline_mode<synchronous>, transform_indices = @transform_4, window_bounds = array<i64: 1, 128>}, {transform_indices = @transform_5, window_bounds = array<i64: 32, 128>}]} {
    %c0 = arith.constant 0 : index
    %c0_0 = arith.constant 0 : index
    %0 = vector.load %arg1[%c0, %c0_0] : memref<32x32xf32, #tpu.memory_space<vmem>>, vector<32x32xf32>
    %c0_1 = arith.constant 0 : index
    %c0_2 = arith.constant 0 : index
    %1 = vector.load %arg2[%c0_1, %c0_2] : memref<1x32xf32, #tpu.memory_space<vmem>>, vector<1x32xf32>
    %c0_3 = arith.constant 0 : index
    %c0_4 = arith.constant 0 : index
    %2 = vector.load %arg3[%c0_3, %c0_4] : memref<1x32xf32, #tpu.memory_space<vmem>>, vector<1x32xf32>
    %cst = arith.constant dense<0.000000e+00> : vector<32xf32>
    %3 = vector.multi_reduction <add>, %0, %cst [1] : vector<32x32xf32> to vector<32xf32>
    %4 = vector.shape_cast %3 : vector<32xf32> to vector<32x1xf32>
    %cst_5 = arith.constant 3.200000e+01 : f32
    %5 = vector.broadcast %cst_5 : f32 to vector<32x1xf32>
    %6 = arith.divf %4, %5 : vector<32x1xf32>
    %7 = vector.broadcast %6 : vector<32x1xf32> to vector<32x32xf32>
    %8 = arith.subf %0, %7 : vector<32x32xf32>
    %9 = arith.mulf %8, %8 : vector<32x32xf32>
    %cst_6 = arith.constant dense<0.000000e+00> : vector<32xf32>
    %10 = vector.multi_reduction <add>, %9, %cst_6 [1] : vector<32x32xf32> to vector<32xf32>
    %11 = vector.shape_cast %10 : vector<32xf32> to vector<32x1xf32>
    %cst_7 = arith.constant 3.200000e+01 : f32
    %12 = vector.broadcast %cst_7 : f32 to vector<32x1xf32>
    %13 = arith.divf %11, %12 : vector<32x1xf32>
    %cst_8 = arith.constant 9.99999997E-7 : f32
    %14 = vector.broadcast %cst_8 : f32 to vector<32x1xf32>
    %15 = arith.addf %13, %14 : vector<32x1xf32>
    %16 = math.rsqrt %15 : vector<32x1xf32>
    %17 = vector.broadcast %16 : vector<32x1xf32> to vector<32x32xf32>
    %18 = arith.mulf %8, %17 : vector<32x32xf32>
    %19 = vector.broadcast %1 : vector<1x32xf32> to vector<32x32xf32>
    %20 = arith.mulf %18, %19 : vector<32x32xf32>
    %21 = vector.broadcast %2 : vector<1x32xf32> to vector<32x32xf32>
    %22 = arith.addf %20, %21 : vector<32x32xf32>
    %23 = arith.truncf %22 : vector<32x32xf32> to vector<32x32xbf16>
    %c0_9 = arith.constant 0 : index
    %c0_10 = arith.constant 0 : index
    %24 = vector.load %arg4[%c0_9, %c0_10] : memref<32x128xbf16, #tpu.memory_space<vmem>>, vector<32x128xbf16>
    %cst_11 = arith.constant dense<0.000000e+00> : vector<32x128xf32>
    %25 = tpu.matmul %23, %24, %cst_11 {dimension_numbers = #tpu.dot_dimension_numbers<[1], [0], [0], [1], [0, 0, 1, 1], [], []>} : vector<32x32xbf16>, vector<32x128xbf16>, vector<32x128xf32> -> vector<32x128xf32>
    %c0_12 = arith.constant 0 : index
    %c0_13 = arith.constant 0 : index
    %26 = vector.load %arg5[%c0_12, %c0_13] : memref<1x128xf32, #tpu.memory_space<vmem>>, vector<1x128xf32>
    %27 = vector.broadcast %26 : vector<1x128xf32> to vector<32x128xf32>
    %28 = arith.addf %25, %27 : vector<32x128xf32>
    %cst_14 = arith.constant 5.000000e-01 : f32
    %29 = vector.broadcast %cst_14 : f32 to vector<32x128xf32>
    %30 = arith.mulf %29, %28 : vector<32x128xf32>
    %cst_15 = arith.constant 0.707106769 : f32
    %31 = vector.broadcast %cst_15 : f32 to vector<32x128xf32>
    %32 = arith.mulf %28, %31 : vector<32x128xf32>
    %33 = math.erf %32 : vector<32x128xf32>
    %cst_16 = arith.constant 1.000000e+00 : f32
    %34 = vector.broadcast %cst_16 : f32 to vector<32x128xf32>
    %35 = arith.addf %34, %33 : vector<32x128xf32>
    %36 = arith.mulf %30, %35 : vector<32x128xf32>
    %37 = arith.truncf %36 : vector<32x128xf32> to vector<32x128xbf16>
    %c0_17 = arith.constant 0 : index
    %c0_18 = arith.constant 0 : index
    %38 = vector.load %arg6[%c0_17, %c0_18] : memref<32x128xbf16, #tpu.memory_space<vmem>>, vector<32x128xbf16>
    tpu.vector_store %arg6[%c0_17, %c0_18], %37 {strides = array<i32>} : memref<32x128xbf16, #tpu.memory_space<vmem>>, vector<32x128xbf16>,
    return
  }
  func.func @transform_0(%arg0: i32) -> (i32, i32) {
    %c0_i32 = arith.constant 0 : i32
    %c0_i32_0 = arith.constant 0 : i32
    return %arg0, %c0_i32 : i32, i32
  }
  func.func @transform_1(%arg0: i32) -> (i32, i32) {
    %c0_i32 = arith.constant 0 : i32
    %c0_i32_0 = arith.constant 0 : i32
    %c0_i32_1 = arith.constant 0 : i32
    return %c0_i32, %c0_i32_0 : i32, i32
  }
  func.func @transform_2(%arg0: i32) -> (i32, i32) {
    %c0_i32 = arith.constant 0 : i32
    %c0_i32_0 = arith.constant 0 : i32
    %c0_i32_1 = arith.constant 0 : i32
    return %c0_i32, %c0_i32_0 : i32, i32
  }
  func.func @transform_3(%arg0: i32) -> (i32, i32) {
    %c0_i32 = arith.constant 0 : i32
    %c0_i32_0 = arith.constant 0 : i32
    %c0_i32_1 = arith.constant 0 : i32
    return %c0_i32, %c0_i32_0 : i32, i32
  }
  func.func @transform_4(%arg0: i32) -> (i32, i32) {
    %c0_i32 = arith.constant 0 : i32
    %c0_i32_0 = arith.constant 0 : i32
    %c0_i32_1 = arith.constant 0 : i32
    return %c0_i32, %c0_i32_0 : i32, i32
  }
  func.func @transform_5(%arg0: i32) -> (i32, i32) {
    %c0_i32 = arith.constant 0 : i32
    %c0_i32_0 = arith.constant 0 : i32
    return %arg0, %c0_i32 : i32, i32
  }
}

module attributes {stable_mosaic.version = 11 : i64} {
  func.func @_attn_proj_kernel(%arg0: i32, %arg1: i32, %arg2: memref<1x16x32xbf16, #tpu.memory_space<vmem>>, %arg3: memref<1x16x32xbf16, #tpu.memory_space<vmem>>, %arg4: memref<1x16x32xbf16, #tpu.memory_space<vmem>>, %arg5: memref<32x32xbf16, #tpu.memory_space<vmem>>, %arg6: memref<1x32xf32, #tpu.memory_space<vmem>>, %arg7: memref<1x16x32xf32, #tpu.memory_space<vmem>>, %arg8: memref<1x16x32xf32, #tpu.memory_space<vmem>>, %arg9: memref<16x32xbf16, #tpu.memory_space<vmem>>) attributes {dimension_semantics = [#tpu.dimension_semantics<parallel>, #tpu.dimension_semantics<parallel>], iteration_bounds = array<i64: 2, 1>, scalar_prefetch = 0 : i64, scratch_operands = 1 : i64, tpu.core_type = #tpu.core_type<tc>, window_params = [{transform_indices = @transform_0, window_bounds = array<i64: 1, 16, 32>}, {transform_indices = @transform_1, window_bounds = array<i64: 1, 16, 32>}, {transform_indices = @transform_2, window_bounds = array<i64: 1, 16, 32>}, {pipeline_mode = #tpu.pipeline_mode<synchronous>, transform_indices = @transform_3, window_bounds = array<i64: 32, 32>}, {pipeline_mode = #tpu.pipeline_mode<synchronous>, transform_indices = @transform_4, window_bounds = array<i64: 1, 32>}, {transform_indices = @transform_5, window_bounds = array<i64: 1, 16, 32>}, {transform_indices = @transform_6, window_bounds = array<i64: 1, 16, 32>}]} {
    %c0 = arith.constant 0 : index
    %c0_0 = arith.constant 0 : index
    %c0_1 = arith.constant 0 : index
    %0 = vector.load %arg2[%c0, %c0_0, %c0_1] : memref<1x16x32xbf16, #tpu.memory_space<vmem>>, vector<1x16x8xbf16>
    %1 = vector.shape_cast %0 : vector<1x16x8xbf16> to vector<16x8xbf16>
    %c0_2 = arith.constant 0 : index
    %c0_3 = arith.constant 0 : index
    %c0_4 = arith.constant 0 : index
    %2 = vector.load %arg3[%c0_2, %c0_3, %c0_4] : memref<1x16x32xbf16, #tpu.memory_space<vmem>>, vector<1x16x8xbf16>
    %3 = vector.shape_cast %2 : vector<1x16x8xbf16> to vector<16x8xbf16>
    %c0_5 = arith.constant 0 : index
    %c0_6 = arith.constant 0 : index
    %c0_7 = arith.constant 0 : index
    %4 = vector.load %arg4[%c0_5, %c0_6, %c0_7] : memref<1x16x32xbf16, #tpu.memory_space<vmem>>, vector<1x16x8xbf16>
    %5 = vector.shape_cast %4 : vector<1x16x8xbf16> to vector<16x8xbf16>
    %cst = arith.constant dense<0.000000e+00> : vector<16x16xf32>
    %6 = tpu.matmul %1, %3, %cst {dimension_numbers = #tpu.dot_dimension_numbers<[1], [1], [0], [0], [0, 0, 1, 0], [], []>} : vector<16x8xbf16>, vector<16x8xbf16>, vector<16x16xf32> -> vector<16x16xf32>
    %cst_8 = arith.constant dense<0xFF800000> : vector<16xf32>
    %7 = vector.multi_reduction <maximumf>, %6, %cst_8 [1] : vector<16x16xf32> to vector<16xf32>
    %8 = vector.shape_cast %7 : vector<16xf32> to vector<16x1xf32>
    %9 = vector.broadcast %8 : vector<16x1xf32> to vector<16x16xf32>
    %10 = arith.subf %6, %9 : vector<16x16xf32>
    %11 = math.exp %10 : vector<16x16xf32>
    %cst_9 = arith.constant dense<0.000000e+00> : vector<16xf32>
    %12 = vector.multi_reduction <add>, %11, %cst_9 [1] : vector<16x16xf32> to vector<16xf32>
    %13 = vector.shape_cast %12 : vector<16xf32> to vector<16x1xf32>
    %14 = tpu.reciprocal %13 {approx = true} : vector<16x1xf32> -> vector<16x1xf32>
    %15 = vector.broadcast %14 : vector<16x1xf32> to vector<16x16xf32>
    %16 = arith.mulf %11, %15 : vector<16x16xf32>
    %17 = arith.truncf %16 : vector<16x16xf32> to vector<16x16xbf16>
    %cst_10 = arith.constant dense<0.000000e+00> : vector<16x8xf32>
    %18 = tpu.matmul %17, %5, %cst_10 {dimension_numbers = #tpu.dot_dimension_numbers<[1], [0], [0], [1], [0, 0, 1, 1], [], []>} : vector<16x16xbf16>, vector<16x8xbf16>, vector<16x8xf32> -> vector<16x8xf32>
    %19 = arith.truncf %18 : vector<16x8xf32> to vector<16x8xbf16>
    %c0_11 = arith.constant 0 : index
    %c0_12 = arith.constant 0 : index
    %20 = vector.load %arg9[%c0_11, %c0_12] : memref<16x32xbf16, #tpu.memory_space<vmem>>, vector<16x8xbf16>
    tpu.vector_store %arg9[%c0_11, %c0_12], %19 {strides = array<i32>} : memref<16x32xbf16, #tpu.memory_space<vmem>>, vector<16x8xbf16>,
    %c0_13 = arith.constant 0 : index
    %c0_14 = arith.constant 0 : index
    %c8 = arith.constant 8 : index
    %21 = vector.load %arg2[%c0_13, %c0_14, %c8] : memref<1x16x32xbf16, #tpu.memory_space<vmem>>, vector<1x16x8xbf16>
    %22 = vector.shape_cast %21 : vector<1x16x8xbf16> to vector<16x8xbf16>
    %c0_15 = arith.constant 0 : index
    %c0_16 = arith.constant 0 : index
    %c8_17 = arith.constant 8 : index
    %23 = vector.load %arg3[%c0_15, %c0_16, %c8_17] : memref<1x16x32xbf16, #tpu.memory_space<vmem>>, vector<1x16x8xbf16>
    %24 = vector.shape_cast %23 : vector<1x16x8xbf16> to vector<16x8xbf16>
    %c0_18 = arith.constant 0 : index
    %c0_19 = arith.constant 0 : index
    %c8_20 = arith.constant 8 : index
    %25 = vector.load %arg4[%c0_18, %c0_19, %c8_20] : memref<1x16x32xbf16, #tpu.memory_space<vmem>>, vector<1x16x8xbf16>
    %26 = vector.shape_cast %25 : vector<1x16x8xbf16> to vector<16x8xbf16>
    %cst_21 = arith.constant dense<0.000000e+00> : vector<16x16xf32>
    %27 = tpu.matmul %22, %24, %cst_21 {dimension_numbers = #tpu.dot_dimension_numbers<[1], [1], [0], [0], [0, 0, 1, 0], [], []>} : vector<16x8xbf16>, vector<16x8xbf16>, vector<16x16xf32> -> vector<16x16xf32>
    %cst_22 = arith.constant dense<0xFF800000> : vector<16xf32>
    %28 = vector.multi_reduction <maximumf>, %27, %cst_22 [1] : vector<16x16xf32> to vector<16xf32>
    %29 = vector.shape_cast %28 : vector<16xf32> to vector<16x1xf32>
    %30 = vector.broadcast %29 : vector<16x1xf32> to vector<16x16xf32>
    %31 = arith.subf %27, %30 : vector<16x16xf32>
    %32 = math.exp %31 : vector<16x16xf32>
    %cst_23 = arith.constant dense<0.000000e+00> : vector<16xf32>
    %33 = vector.multi_reduction <add>, %32, %cst_23 [1] : vector<16x16xf32> to vector<16xf32>
    %34 = vector.shape_cast %33 : vector<16xf32> to vector<16x1xf32>
    %35 = tpu.reciprocal %34 {approx = true} : vector<16x1xf32> -> vector<16x1xf32>
    %36 = vector.broadcast %35 : vector<16x1xf32> to vector<16x16xf32>
    %37 = arith.mulf %32, %36 : vector<16x16xf32>
    %38 = arith.truncf %37 : vector<16x16xf32> to vector<16x16xbf16>
    %cst_24 = arith.constant dense<0.000000e+00> : vector<16x8xf32>
    %39 = tpu.matmul %38, %26, %cst_24 {dimension_numbers = #tpu.dot_dimension_numbers<[1], [0], [0], [1], [0, 0, 1, 1], [], []>} : vector<16x16xbf16>, vector<16x8xbf16>, vector<16x8xf32> -> vector<16x8xf32>
    %40 = arith.truncf %39 : vector<16x8xf32> to vector<16x8xbf16>
    %c0_25 = arith.constant 0 : index
    %c8_26 = arith.constant 8 : index
    %41 = vector.load %arg9[%c0_25, %c8_26] : memref<16x32xbf16, #tpu.memory_space<vmem>>, vector<16x8xbf16>
    tpu.vector_store %arg9[%c0_25, %c8_26], %40 {strides = array<i32>} : memref<16x32xbf16, #tpu.memory_space<vmem>>, vector<16x8xbf16>,
    %c0_27 = arith.constant 0 : index
    %c0_28 = arith.constant 0 : index
    %c16 = arith.constant 16 : index
    %42 = vector.load %arg2[%c0_27, %c0_28, %c16] : memref<1x16x32xbf16, #tpu.memory_space<vmem>>, vector<1x16x8xbf16>
    %43 = vector.shape_cast %42 : vector<1x16x8xbf16> to vector<16x8xbf16>
    %c0_29 = arith.constant 0 : index
    %c0_30 = arith.constant 0 : index
    %c16_31 = arith.constant 16 : index
    %44 = vector.load %arg3[%c0_29, %c0_30, %c16_31] : memref<1x16x32xbf16, #tpu.memory_space<vmem>>, vector<1x16x8xbf16>
    %45 = vector.shape_cast %44 : vector<1x16x8xbf16> to vector<16x8xbf16>
    %c0_32 = arith.constant 0 : index
    %c0_33 = arith.constant 0 : index
    %c16_34 = arith.constant 16 : index
    %46 = vector.load %arg4[%c0_32, %c0_33, %c16_34] : memref<1x16x32xbf16, #tpu.memory_space<vmem>>, vector<1x16x8xbf16>
    %47 = vector.shape_cast %46 : vector<1x16x8xbf16> to vector<16x8xbf16>
    %cst_35 = arith.constant dense<0.000000e+00> : vector<16x16xf32>
    %48 = tpu.matmul %43, %45, %cst_35 {dimension_numbers = #tpu.dot_dimension_numbers<[1], [1], [0], [0], [0, 0, 1, 0], [], []>} : vector<16x8xbf16>, vector<16x8xbf16>, vector<16x16xf32> -> vector<16x16xf32>
    %cst_36 = arith.constant dense<0xFF800000> : vector<16xf32>
    %49 = vector.multi_reduction <maximumf>, %48, %cst_36 [1] : vector<16x16xf32> to vector<16xf32>
    %50 = vector.shape_cast %49 : vector<16xf32> to vector<16x1xf32>
    %51 = vector.broadcast %50 : vector<16x1xf32> to vector<16x16xf32>
    %52 = arith.subf %48, %51 : vector<16x16xf32>
    %53 = math.exp %52 : vector<16x16xf32>
    %cst_37 = arith.constant dense<0.000000e+00> : vector<16xf32>
    %54 = vector.multi_reduction <add>, %53, %cst_37 [1] : vector<16x16xf32> to vector<16xf32>
    %55 = vector.shape_cast %54 : vector<16xf32> to vector<16x1xf32>
    %56 = tpu.reciprocal %55 {approx = true} : vector<16x1xf32> -> vector<16x1xf32>
    %57 = vector.broadcast %56 : vector<16x1xf32> to vector<16x16xf32>
    %58 = arith.mulf %53, %57 : vector<16x16xf32>
    %59 = arith.truncf %58 : vector<16x16xf32> to vector<16x16xbf16>
    %cst_38 = arith.constant dense<0.000000e+00> : vector<16x8xf32>
    %60 = tpu.matmul %59, %47, %cst_38 {dimension_numbers = #tpu.dot_dimension_numbers<[1], [0], [0], [1], [0, 0, 1, 1], [], []>} : vector<16x16xbf16>, vector<16x8xbf16>, vector<16x8xf32> -> vector<16x8xf32>
    %61 = arith.truncf %60 : vector<16x8xf32> to vector<16x8xbf16>
    %c0_39 = arith.constant 0 : index
    %c16_40 = arith.constant 16 : index
    %62 = vector.load %arg9[%c0_39, %c16_40] : memref<16x32xbf16, #tpu.memory_space<vmem>>, vector<16x8xbf16>
    tpu.vector_store %arg9[%c0_39, %c16_40], %61 {strides = array<i32>} : memref<16x32xbf16, #tpu.memory_space<vmem>>, vector<16x8xbf16>,
    %c0_41 = arith.constant 0 : index
    %c0_42 = arith.constant 0 : index
    %c24 = arith.constant 24 : index
    %63 = vector.load %arg2[%c0_41, %c0_42, %c24] : memref<1x16x32xbf16, #tpu.memory_space<vmem>>, vector<1x16x8xbf16>
    %64 = vector.shape_cast %63 : vector<1x16x8xbf16> to vector<16x8xbf16>
    %c0_43 = arith.constant 0 : index
    %c0_44 = arith.constant 0 : index
    %c24_45 = arith.constant 24 : index
    %65 = vector.load %arg3[%c0_43, %c0_44, %c24_45] : memref<1x16x32xbf16, #tpu.memory_space<vmem>>, vector<1x16x8xbf16>
    %66 = vector.shape_cast %65 : vector<1x16x8xbf16> to vector<16x8xbf16>
    %c0_46 = arith.constant 0 : index
    %c0_47 = arith.constant 0 : index
    %c24_48 = arith.constant 24 : index
    %67 = vector.load %arg4[%c0_46, %c0_47, %c24_48] : memref<1x16x32xbf16, #tpu.memory_space<vmem>>, vector<1x16x8xbf16>
    %68 = vector.shape_cast %67 : vector<1x16x8xbf16> to vector<16x8xbf16>
    %cst_49 = arith.constant dense<0.000000e+00> : vector<16x16xf32>
    %69 = tpu.matmul %64, %66, %cst_49 {dimension_numbers = #tpu.dot_dimension_numbers<[1], [1], [0], [0], [0, 0, 1, 0], [], []>} : vector<16x8xbf16>, vector<16x8xbf16>, vector<16x16xf32> -> vector<16x16xf32>
    %cst_50 = arith.constant dense<0xFF800000> : vector<16xf32>
    %70 = vector.multi_reduction <maximumf>, %69, %cst_50 [1] : vector<16x16xf32> to vector<16xf32>
    %71 = vector.shape_cast %70 : vector<16xf32> to vector<16x1xf32>
    %72 = vector.broadcast %71 : vector<16x1xf32> to vector<16x16xf32>
    %73 = arith.subf %69, %72 : vector<16x16xf32>
    %74 = math.exp %73 : vector<16x16xf32>
    %cst_51 = arith.constant dense<0.000000e+00> : vector<16xf32>
    %75 = vector.multi_reduction <add>, %74, %cst_51 [1] : vector<16x16xf32> to vector<16xf32>
    %76 = vector.shape_cast %75 : vector<16xf32> to vector<16x1xf32>
    %77 = tpu.reciprocal %76 {approx = true} : vector<16x1xf32> -> vector<16x1xf32>
    %78 = vector.broadcast %77 : vector<16x1xf32> to vector<16x16xf32>
    %79 = arith.mulf %74, %78 : vector<16x16xf32>
    %80 = arith.truncf %79 : vector<16x16xf32> to vector<16x16xbf16>
    %cst_52 = arith.constant dense<0.000000e+00> : vector<16x8xf32>
    %81 = tpu.matmul %80, %68, %cst_52 {dimension_numbers = #tpu.dot_dimension_numbers<[1], [0], [0], [1], [0, 0, 1, 1], [], []>} : vector<16x16xbf16>, vector<16x8xbf16>, vector<16x8xf32> -> vector<16x8xf32>
    %82 = arith.truncf %81 : vector<16x8xf32> to vector<16x8xbf16>
    %c0_53 = arith.constant 0 : index
    %c24_54 = arith.constant 24 : index
    %83 = vector.load %arg9[%c0_53, %c24_54] : memref<16x32xbf16, #tpu.memory_space<vmem>>, vector<16x8xbf16>
    tpu.vector_store %arg9[%c0_53, %c24_54], %82 {strides = array<i32>} : memref<16x32xbf16, #tpu.memory_space<vmem>>, vector<16x8xbf16>,
    %c0_55 = arith.constant 0 : index
    %c0_56 = arith.constant 0 : index
    %84 = vector.load %arg9[%c0_55, %c0_56] : memref<16x32xbf16, #tpu.memory_space<vmem>>, vector<16x32xbf16>
    %c0_57 = arith.constant 0 : index
    %c0_58 = arith.constant 0 : index
    %85 = vector.load %arg5[%c0_57, %c0_58] : memref<32x32xbf16, #tpu.memory_space<vmem>>, vector<32x32xbf16>
    %cst_59 = arith.constant dense<0.000000e+00> : vector<16x32xf32>
    %86 = tpu.matmul %84, %85, %cst_59 {dimension_numbers = #tpu.dot_dimension_numbers<[1], [0], [0], [1], [0, 0, 1, 1], [], []>} : vector<16x32xbf16>, vector<32x32xbf16>, vector<16x32xf32> -> vector<16x32xf32>
    %c0_60 = arith.constant 0 : index
    %c0_61 = arith.constant 0 : index
    %87 = vector.load %arg6[%c0_60, %c0_61] : memref<1x32xf32, #tpu.memory_space<vmem>>, vector<1x32xf32>
    %88 = vector.broadcast %87 : vector<1x32xf32> to vector<16x32xf32>
    %89 = arith.addf %86, %88 : vector<16x32xf32>
    %c0_62 = arith.constant 0 : index
    %c0_63 = arith.constant 0 : index
    %c0_64 = arith.constant 0 : index
    %90 = vector.load %arg7[%c0_62, %c0_63, %c0_64] : memref<1x16x32xf32, #tpu.memory_space<vmem>>, vector<1x16x32xf32>
    %91 = vector.shape_cast %90 : vector<1x16x32xf32> to vector<16x32xf32>
    %92 = arith.addf %91, %89 : vector<16x32xf32>
    %c0_65 = arith.constant 0 : index
    %c0_66 = arith.constant 0 : index
    %c0_67 = arith.constant 0 : index
    %93 = vector.load %arg8[%c0_65, %c0_66, %c0_67] : memref<1x16x32xf32, #tpu.memory_space<vmem>>, vector<1x16x32xf32>
    %94 = vector.shape_cast %93 : vector<1x16x32xf32> to vector<16x32xf32>
    %95 = vector.shape_cast %92 : vector<16x32xf32> to vector<1x16x32xf32>
    tpu.vector_store %arg8[%c0_65, %c0_66, %c0_67], %95 {strides = array<i32>} : memref<1x16x32xf32, #tpu.memory_space<vmem>>, vector<1x16x32xf32>,
    return
  }
  func.func @transform_0(%arg0: i32, %arg1: i32) -> (i32, i32, i32) {
    %c0_i32 = arith.constant 0 : i32
    %c0_i32_0 = arith.constant 0 : i32
    return %arg0, %arg1, %c0_i32 : i32, i32, i32
  }
  func.func @transform_1(%arg0: i32, %arg1: i32) -> (i32, i32, i32) {
    %c0_i32 = arith.constant 0 : i32
    %c0_i32_0 = arith.constant 0 : i32
    %c0_i32_1 = arith.constant 0 : i32
    return %arg0, %c0_i32, %c0_i32_0 : i32, i32, i32
  }
  func.func @transform_2(%arg0: i32, %arg1: i32) -> (i32, i32, i32) {
    %c0_i32 = arith.constant 0 : i32
    %c0_i32_0 = arith.constant 0 : i32
    %c0_i32_1 = arith.constant 0 : i32
    return %arg0, %c0_i32, %c0_i32_0 : i32, i32, i32
  }
  func.func @transform_3(%arg0: i32, %arg1: i32) -> (i32, i32) {
    %c0_i32 = arith.constant 0 : i32
    %c0_i32_0 = arith.constant 0 : i32
    %c0_i32_1 = arith.constant 0 : i32
    return %c0_i32, %c0_i32_0 : i32, i32
  }
  func.func @transform_4(%arg0: i32, %arg1: i32) -> (i32, i32) {
    %c0_i32 = arith.constant 0 : i32
    %c0_i32_0 = arith.constant 0 : i32
    %c0_i32_1 = arith.constant 0 : i32
    return %c0_i32, %c0_i32_0 : i32, i32
  }
  func.func @transform_5(%arg0: i32, %arg1: i32) -> (i32, i32, i32) {
    %c0_i32 = arith.constant 0 : i32
    %c0_i32_0 = arith.constant 0 : i32
    return %arg0, %arg1, %c0_i32 : i32, i32, i32
  }
  func.func @transform_6(%arg0: i32, %arg1: i32) -> (i32, i32, i32) {
    %c0_i32 = arith.constant 0 : i32
    %c0_i32_0 = arith.constant 0 : i32
    return %arg0, %arg1, %c0_i32 : i32, i32, i32
  }
}

module attributes {stable_mosaic.version = 11 : i64} {
  func.func @_linear_residual_kernel(%arg0: i32, %arg1: memref<32x128xbf16, #tpu.memory_space<vmem>>, %arg2: memref<128x32xbf16, #tpu.memory_space<vmem>>, %arg3: memref<1x32xf32, #tpu.memory_space<vmem>>, %arg4: memref<32x32xf32, #tpu.memory_space<vmem>>, %arg5: memref<32x32xf32, #tpu.memory_space<vmem>>) attributes {dimension_semantics = [#tpu.dimension_semantics<parallel>], iteration_bounds = array<i64: 1>, scalar_prefetch = 0 : i64, scratch_operands = 0 : i64, tpu.core_type = #tpu.core_type<tc>, window_params = [{transform_indices = @transform_0, window_bounds = array<i64: 32, 128>}, {pipeline_mode = #tpu.pipeline_mode<synchronous>, transform_indices = @transform_1, window_bounds = array<i64: 128, 32>}, {pipeline_mode = #tpu.pipeline_mode<synchronous>, transform_indices = @transform_2, window_bounds = array<i64: 1, 32>}, {transform_indices = @transform_3, window_bounds = array<i64: 32, 32>}, {transform_indices = @transform_4, window_bounds = array<i64: 32, 32>}]} {
    %c0 = arith.constant 0 : index
    %c0_0 = arith.constant 0 : index
    %0 = vector.load %arg1[%c0, %c0_0] : memref<32x128xbf16, #tpu.memory_space<vmem>>, vector<32x128xbf16>
    %c0_1 = arith.constant 0 : index
    %c0_2 = arith.constant 0 : index
    %1 = vector.load %arg2[%c0_1, %c0_2] : memref<128x32xbf16, #tpu.memory_space<vmem>>, vector<128x32xbf16>
    %cst = arith.constant dense<0.000000e+00> : vector<32x32xf32>
    %2 = tpu.matmul %0, %1, %cst {dimension_numbers = #tpu.dot_dimension_numbers<[1], [0], [0], [1], [0, 0, 1, 1], [], []>} : vector<32x128xbf16>, vector<128x32xbf16>, vector<32x32xf32> -> vector<32x32xf32>
    %c0_3 = arith.constant 0 : index
    %c0_4 = arith.constant 0 : index
    %3 = vector.load %arg3[%c0_3, %c0_4] : memref<1x32xf32, #tpu.memory_space<vmem>>, vector<1x32xf32>
    %4 = vector.broadcast %3 : vector<1x32xf32> to vector<32x32xf32>
    %5 = arith.addf %2, %4 : vector<32x32xf32>
    %c0_5 = arith.constant 0 : index
    %c0_6 = arith.constant 0 : index
    %6 = vector.load %arg4[%c0_5, %c0_6] : memref<32x32xf32, #tpu.memory_space<vmem>>, vector<32x32xf32>
    %7 = arith.addf %6, %5 : vector<32x32xf32>
    %c0_7 = arith.constant 0 : index
    %c0_8 = arith.constant 0 : index
    %8 = vector.load %arg5[%c0_7, %c0_8] : memref<32x32xf32, #tpu.memory_space<vmem>>, vector<32x32xf32>
    tpu.vector_store %arg5[%c0_7, %c0_8], %7 {strides = array<i32>} : memref<32x32xf32, #tpu.memory_space<vmem>>, vector<32x32xf32>,
    return
  }
  func.func @transform_0(%arg0: i32) -> (i32, i32) {
    %c0_i32 = arith.constant 0 : i32
    %c0_i32_0 = arith.constant 0 : i32
    return %arg0, %c0_i32 : i32, i32
  }
  func.func @transform_1(%arg0: i32) -> (i32, i32) {
    %c0_i32 = arith.constant 0 : i32
    %c0_i32_0 = arith.constant 0 : i32
    %c0_i32_1 = arith.constant 0 : i32
    return %c0_i32, %c0_i32_0 : i32, i32
  }
  func.func @transform_2(%arg0: i32) -> (i32, i32) {
    %c0_i32 = arith.constant 0 : i32
    %c0_i32_0 = arith.constant 0 : i32
    %c0_i32_1 = arith.constant 0 : i32
    return %c0_i32, %c0_i32_0 : i32, i32
  }
  func.func @transform_3(%arg0: i32) -> (i32, i32) {
    %c0_i32 = arith.constant 0 : i32
    %c0_i32_0 = arith.constant 0 : i32
    return %arg0, %c0_i32 : i32, i32
  }
  func.func @transform_4(%arg0: i32) -> (i32, i32) {
    %c0_i32 = arith.constant 0 : i32
    %c0_i32_0 = arith.constant 0 : i32
    return %arg0, %c0_i32 : i32, i32
  }
}

module attributes {stable_mosaic.version = 11 : i64} {
  func.func @_ln_pool_head_kernel(%arg0: i32, %arg1: memref<1x16x32xf32, #tpu.memory_space<vmem>>, %arg2: memref<1x32xf32, #tpu.memory_space<vmem>>, %arg3: memref<1x32xf32, #tpu.memory_space<vmem>>, %arg4: memref<32x128xbf16, #tpu.memory_space<vmem>>, %arg5: memref<1x128xf32, #tpu.memory_space<vmem>>, %arg6: memref<1x1x128xf32, #tpu.memory_space<vmem>>) attributes {dimension_semantics = [#tpu.dimension_semantics<parallel>], iteration_bounds = array<i64: 2>, scalar_prefetch = 0 : i64, scratch_operands = 0 : i64, tpu.core_type = #tpu.core_type<tc>, window_params = [{transform_indices = @transform_0, window_bounds = array<i64: 1, 16, 32>}, {pipeline_mode = #tpu.pipeline_mode<synchronous>, transform_indices = @transform_1, window_bounds = array<i64: 1, 32>}, {pipeline_mode = #tpu.pipeline_mode<synchronous>, transform_indices = @transform_2, window_bounds = array<i64: 1, 32>}, {pipeline_mode = #tpu.pipeline_mode<synchronous>, transform_indices = @transform_3, window_bounds = array<i64: 32, 128>}, {pipeline_mode = #tpu.pipeline_mode<synchronous>, transform_indices = @transform_4, window_bounds = array<i64: 1, 128>}, {transform_indices = @transform_5, window_bounds = array<i64: 1, 1, 128>}]} {
    %c0 = arith.constant 0 : index
    %c0_0 = arith.constant 0 : index
    %c0_1 = arith.constant 0 : index
    %0 = vector.load %arg1[%c0, %c0_0, %c0_1] : memref<1x16x32xf32, #tpu.memory_space<vmem>>, vector<1x16x32xf32>
    %1 = vector.shape_cast %0 : vector<1x16x32xf32> to vector<16x32xf32>
    %c0_2 = arith.constant 0 : index
    %c0_3 = arith.constant 0 : index
    %2 = vector.load %arg2[%c0_2, %c0_3] : memref<1x32xf32, #tpu.memory_space<vmem>>, vector<1x32xf32>
    %c0_4 = arith.constant 0 : index
    %c0_5 = arith.constant 0 : index
    %3 = vector.load %arg3[%c0_4, %c0_5] : memref<1x32xf32, #tpu.memory_space<vmem>>, vector<1x32xf32>
    %cst = arith.constant dense<0.000000e+00> : vector<16xf32>
    %4 = vector.multi_reduction <add>, %1, %cst [1] : vector<16x32xf32> to vector<16xf32>
    %5 = vector.shape_cast %4 : vector<16xf32> to vector<16x1xf32>
    %cst_6 = arith.constant 3.200000e+01 : f32
    %6 = vector.broadcast %cst_6 : f32 to vector<16x1xf32>
    %7 = arith.divf %5, %6 : vector<16x1xf32>
    %8 = vector.broadcast %7 : vector<16x1xf32> to vector<16x32xf32>
    %9 = arith.subf %1, %8 : vector<16x32xf32>
    %10 = arith.mulf %9, %9 : vector<16x32xf32>
    %cst_7 = arith.constant dense<0.000000e+00> : vector<16xf32>
    %11 = vector.multi_reduction <add>, %10, %cst_7 [1] : vector<16x32xf32> to vector<16xf32>
    %12 = vector.shape_cast %11 : vector<16xf32> to vector<16x1xf32>
    %cst_8 = arith.constant 3.200000e+01 : f32
    %13 = vector.broadcast %cst_8 : f32 to vector<16x1xf32>
    %14 = arith.divf %12, %13 : vector<16x1xf32>
    %cst_9 = arith.constant 9.99999997E-7 : f32
    %15 = vector.broadcast %cst_9 : f32 to vector<16x1xf32>
    %16 = arith.addf %14, %15 : vector<16x1xf32>
    %17 = math.rsqrt %16 : vector<16x1xf32>
    %18 = vector.broadcast %17 : vector<16x1xf32> to vector<16x32xf32>
    %19 = arith.mulf %9, %18 : vector<16x32xf32>
    %20 = vector.broadcast %2 : vector<1x32xf32> to vector<16x32xf32>
    %21 = arith.mulf %19, %20 : vector<16x32xf32>
    %22 = vector.broadcast %3 : vector<1x32xf32> to vector<16x32xf32>
    %23 = arith.addf %21, %22 : vector<16x32xf32>
    %cst_10 = arith.constant dense<0.000000e+00> : vector<32xf32>
    %24 = vector.multi_reduction <add>, %23, %cst_10 [0] : vector<16x32xf32> to vector<32xf32>
    %25 = vector.shape_cast %24 : vector<32xf32> to vector<1x32xf32>
    %cst_11 = arith.constant 1.600000e+01 : f32
    %26 = vector.broadcast %cst_11 : f32 to vector<1x32xf32>
    %27 = arith.divf %25, %26 : vector<1x32xf32>
    %28 = arith.truncf %27 : vector<1x32xf32> to vector<1x32xbf16>
    %c0_12 = arith.constant 0 : index
    %c0_13 = arith.constant 0 : index
    %29 = vector.load %arg4[%c0_12, %c0_13] : memref<32x128xbf16, #tpu.memory_space<vmem>>, vector<32x128xbf16>
    %cst_14 = arith.constant dense<0.000000e+00> : vector<1x128xf32>
    %30 = tpu.matmul %28, %29, %cst_14 {dimension_numbers = #tpu.dot_dimension_numbers<[1], [0], [0], [1], [0, 0, 1, 1], [], []>} : vector<1x32xbf16>, vector<32x128xbf16>, vector<1x128xf32> -> vector<1x128xf32>
    %c0_15 = arith.constant 0 : index
    %c0_16 = arith.constant 0 : index
    %31 = vector.load %arg5[%c0_15, %c0_16] : memref<1x128xf32, #tpu.memory_space<vmem>>, vector<1x128xf32>
    %32 = arith.addf %30, %31 : vector<1x128xf32>
    %c0_17 = arith.constant 0 : index
    %c0_18 = arith.constant 0 : index
    %c0_19 = arith.constant 0 : index
    %33 = vector.load %arg6[%c0_17, %c0_18, %c0_19] : memref<1x1x128xf32, #tpu.memory_space<vmem>>, vector<1x1x128xf32>
    %34 = vector.shape_cast %33 : vector<1x1x128xf32> to vector<1x128xf32>
    %35 = vector.shape_cast %32 : vector<1x128xf32> to vector<1x1x128xf32>
    tpu.vector_store %arg6[%c0_17, %c0_18, %c0_19], %35 {strides = array<i32>} : memref<1x1x128xf32, #tpu.memory_space<vmem>>, vector<1x1x128xf32>,
    return
  }
  func.func @transform_0(%arg0: i32) -> (i32, i32, i32) {
    %c0_i32 = arith.constant 0 : i32
    %c0_i32_0 = arith.constant 0 : i32
    %c0_i32_1 = arith.constant 0 : i32
    return %arg0, %c0_i32, %c0_i32_0 : i32, i32, i32
  }
  func.func @transform_1(%arg0: i32) -> (i32, i32) {
    %c0_i32 = arith.constant 0 : i32
    %c0_i32_0 = arith.constant 0 : i32
    %c0_i32_1 = arith.constant 0 : i32
    return %c0_i32, %c0_i32_0 : i32, i32
  }
  func.func @transform_2(%arg0: i32) -> (i32, i32) {
    %c0_i32 = arith.constant 0 : i32
    %c0_i32_0 = arith.constant 0 : i32
    %c0_i32_1 = arith.constant 0 : i32
    return %c0_i32, %c0_i32_0 : i32, i32
  }
  func.func @transform_3(%arg0: i32) -> (i32, i32) {
    %c0_i32 = arith.constant 0 : i32
    %c0_i32_0 = arith.constant 0 : i32
    %c0_i32_1 = arith.constant 0 : i32
    return %c0_i32, %c0_i32_0 : i32, i32
  }
  func.func @transform_4(%arg0: i32) -> (i32, i32) {
    %c0_i32 = arith.constant 0 : i32
    %c0_i32_0 = arith.constant 0 : i32
    %c0_i32_1 = arith.constant 0 : i32
    return %c0_i32, %c0_i32_0 : i32, i32
  }
  func.func @transform_5(%arg0: i32) -> (i32, i32, i32) {
    %c0_i32 = arith.constant 0 : i32
    %c0_i32_0 = arith.constant 0 : i32
    %c0_i32_1 = arith.constant 0 : i32
    return %arg0, %c0_i32, %c0_i32_0 : i32, i32, i32
  }
}

</mosaic_0001>

<llo_original>
// kernel: vit_forward.11
$region0: #{vit_forward.11}
  #allocation0 [shape = 'u32[]', space=smem, size = 0x4, offset = 0x4, fixed_abs, tag = 'smem constant byte address 0x4 - core index']
  #allocation1 [shape = 'u32[144,128]{1,0:T(1,128)}', space=vmem, size = 0x12000, scoped, tag = 'internal scratch']
  %s0 = inlined_call_operand.vmem [shape: f32[32,32], index: 0, kind: input, shape index: {}]
  %s1 = inlined_call_operand.vmem [shape: f32[1,32], index: 1, kind: input, shape index: {}]
  %s2 = inlined_call_operand.vmem [shape: f32[1,32], index: 2, kind: input, shape index: {}]
  %s3 = inlined_call_operand.vmem [shape: bf16[32,96], index: 3, kind: input, shape index: {}]
  %s4 = inlined_call_operand.vmem [shape: f32[1,96], index: 4, kind: input, shape index: {}]
  %s5 = inlined_call_operand.vmem [shape: bf16[32,32], index: 5, kind: output, shape index: {0}]
  %s6 = inlined_call_operand.vmem [shape: bf16[32,32], index: 6, kind: output, shape index: {1}]
  %s7 = inlined_call_operand.vmem [shape: bf16[32,32], index: 7, kind: output, shape index: {2}]
  %8 = xla_tuple %s5, %s6, %s7
  %s9 = sld [smem:[#allocation0]]
  $region46: #{vit_forward.11} parent=0
    _
  %s11 = ssub.s32 1, %s9
  %s12 = scalar_select 0, %s11, %s9
  // Predicated region
  $region2: #{vit_forward.11} parent=0 // pred_check
    _
  $region3: #{vit_forward.11} parent=0 // pred_check_branch
    %14 = sbr.rel (0) target = $region5
  $region4: #{vit_forward.11} parent=0 // pred_region
    _
  $region5: #{vit_forward.11} parent=0 // pred_fallthru
    _
  // Predicated region
  $region6: #{vit_forward.11} parent=0 // pred_check
    _
  $region7: #{vit_forward.11} parent=0 // pred_check_branch
    %16 = sbr.rel (0) target = $region9
  $region8: #{vit_forward.11} parent=0 // pred_region
    _
  $region9: #{vit_forward.11} parent=0 // pred_fallthru
    _
  // Predicated region
  $region10: #{vit_forward.11} parent=0 // pred_check
    _
  $region11: #{vit_forward.11} parent=0 // pred_check_branch
    %18 = sbr.rel (0) target = $region13
  $region12: #{vit_forward.11} parent=0 // pred_region
    _
  $region13: #{vit_forward.11} parent=0 // pred_fallthru
    _
  // Predicated region
  $region14: #{vit_forward.11} parent=0 // pred_check
    _
  $region15: #{vit_forward.11} parent=0 // pred_check_branch
    %20 = sbr.rel (0) target = $region17
  $region16: #{vit_forward.11} parent=0 // pred_region
    _
  $region17: #{vit_forward.11} parent=0 // pred_fallthru
    _
  // Predicated region
  $region18: #{vit_forward.11} parent=0 // pred_check
    _
  $region19: #{vit_forward.11} parent=0 // pred_check_branch
    %22 = sbr.rel (0) target = $region21
  $region20: #{vit_forward.11} parent=0 // pred_region
    _
  $region21: #{vit_forward.11} parent=0 // pred_fallthru
    _
  %v24 = vld [vmem:[%s0] sm:$0xff]
  %v25 = vld [vmem:[%s0 + $0x8] sm:$0xff]
  %v26 = vld [vmem:[%s0 + $0x10] sm:$0xff]
  %v27 = vld [vmem:[%s0 + $0x18] sm:$0xff]
  %v28 = vld [vmem:[%s1] sm:$0x1]
  %v29 = vld [vmem:[%s2] sm:$0x1]
  %vm30 = vcmask 261120
  %v31 = vsel %vm30, %v24, 0.0
  %32 = vadd.xlane.f32.xlu0 %v31
  %v33 = vpop.xlane.xlu0 %32
  %v34 = vsel %vm30, %v25, 0.0
  %35 = vadd.xlane.f32.xlu0 %v34
  %v36 = vpop.xlane.xlu0 %35
  %v37 = vsel %vm30, %v26, 0.0
  %38 = vadd.xlane.f32.xlu0 %v37
  %v39 = vpop.xlane.xlu0 %38
  %v40 = vsel %vm30, %v27, 0.0
  %41 = vadd.xlane.f32.xlu0 %v40
  %v42 = vpop.xlane.xlu0 %41
  %v43 = vrcp.pop 32.0
  %v44 = vmul.f32 %v33, %v43
  %v45 = vmul.f32 %v36, %v43
  %v46 = vmul.f32 %v39, %v43
  %v47 = vmul.f32 %v42, %v43
  %v48 = vsub.f32 %v24, %v44
  %v49 = vsub.f32 %v25, %v45
  %v50 = vsub.f32 %v26, %v46
  %v51 = vsub.f32 %v27, %v47
  %v52 = vmul.f32 %v48, %v48
  %v53 = vmul.f32 %v49, %v49
  %v54 = vmul.f32 %v50, %v50
  %v55 = vmul.f32 %v51, %v51
  %v56 = vsel %vm30, %v52, 0.0
  %57 = vadd.xlane.f32.xlu0 %v56
  %v58 = vpop.xlane.xlu0 %57
  %v59 = vsel %vm30, %v53, 0.0
  %60 = vadd.xlane.f32.xlu0 %v59
  %v61 = vpop.xlane.xlu0 %60
  %v62 = vsel %vm30, %v54, 0.0
  %63 = vadd.xlane.f32.xlu0 %v62
  %v64 = vpop.xlane.xlu0 %63
  %v65 = vsel %vm30, %v55, 0.0
  %66 = vadd.xlane.f32.xlu0 %v65
  %v67 = vpop.xlane.xlu0 %66
  %v68 = vmul.f32 %v58, %v43
  %v69 = vmul.f32 %v61, %v43
  %v70 = vmul.f32 %v64, %v43
  %v71 = vmul.f32 %v67, %v43
  %v72 = vadd.f32 %v68, 1e-06
  %v73 = vadd.f32 %v69, 1e-06
  %v74 = vadd.f32 %v70, 1e-06
  %v75 = vadd.f32 %v71, 1e-06
  %v76 = vrsqrt.pop %v72
  %v77 = vrsqrt.pop %v73
  %v78 = vrsqrt.pop %v74
  %v79 = vrsqrt.pop %v75
  %v80 = vmul.f32 %v48, %v76
  %v81 = vmul.f32 %v49, %v77
  %v82 = vmul.f32 %v50, %v78
  %v83 = vmul.f32 %v51, %v79
  %v85 = vlaneseq
  %v86 = vshrl.u32 %v85, 7
  %v87 = vsub.s32 0, %v86
  %v88 = vrot.slane %v28, %v87
  %v90 = vmul.f32 %v80, %v88
  %v91 = vmul.f32 %v81, %v88
  %v92 = vmul.f32 %v82, %v88
  %v93 = vmul.f32 %v83, %v88
  %v95 = vlaneseq
  %v96 = vshrl.u32 %v95, 7
  %v97 = vsub.s32 0, %v96
  %v98 = vrot.slane %v29, %v97
  %v100 = vadd.f32 %v90, %v98
  %v101 = vadd.f32 %v91, %v98
  %v102 = vadd.f32 %v92, %v98
  %v103 = vadd.f32 %v93, %v98
  %v104 = vpack.c.bf16 %v101, %v100
  %v105 = vpack.c.bf16 %v103, %v102
  %v106 = vld [vmem:[%s3] sm:$0xf]
  %v107 = vld [vmem:[%s3 + $0x4] sm:$0xf]
  %v108 = vld [vmem:[%s3 + $0x8] sm:$0xf]
  %v109 = vld [vmem:[%s3 + $0xc] sm:$0xf]
  %v110 = vld [vmem:[%s4] sm:$0x1]
  %v112 = vlaneseq
  %v113 = vshrl.u32 %v112, 7
  %v114 = vsub.s32 0, %v113
  %v115 = vrot.slane %v110, %v114
  %v121 = vunpack.c.l.b16 %v106
  %v122 = vunpack.c.l.b16 %v107
  %v123 = vunpack.c.l.b16 %v108
  %v124 = vunpack.c.l.b16 %v109
  %v125 = vpack.c.b16 %v122, %v121
  %v126 = vpack.c.b16 %v124, %v123
  %v130 = vsel %vm30, %v104, 0
  %v133 = vsel %vm30, %v105, 0
  %135 = vmatprep.subr.bf16.mxu0 0
  %136 = vmatpush1.bf16.msra.mxu0 %v125
  %137 = vmatprep.subr.bf16.mxu0 0
  %138 = vmatpush1.bf16.msra.mxu0 %v126
  %139 = vmatprep.subr.bf16.mxu0 0
  %140 = vmatpush1.bf16.msra.mxu0 0
  %141 = vmatprep.subr.bf16.mxu0 0
  %142 = vmatpush1.bf16.msra.mxu0 0
  %143 = vmatprep.subr.bf16.mxu0 0
  %144 = vmatpush1.bf16.msra.mxu0 0
  %145 = vmatprep.subr.bf16.mxu0 0
  %146 = vmatpush1.bf16.msra.mxu0 0
  %147 = vmatprep.subr.bf16.mxu0 0
  %148 = vmatpush1.bf16.msra.mxu0 0
  %149 = vmatprep.subr.bf16.mxu0 0
  %150 = vmatpush1.bf16.msra.mxu0 0
  %151 = vmatprep.subr.bf16.mxu0 0
  %152 = vmatpush1.bf16.msra.mxu0 0
  %153 = vmatprep.subr.bf16.mxu0 0
  %154 = vmatpush1.bf16.msra.mxu0 0
  %155 = vmatprep.subr.bf16.mxu0 0
  %156 = vmatpush1.bf16.msra.mxu0 0
  %157 = vmatprep.subr.bf16.mxu0 0
  %158 = vmatpush1.bf16.msra.mxu0 0
  %159 = vmatprep.subr.bf16.mxu0 0
  %160 = vmatpush1.bf16.msra.mxu0 0
  %161 = vmatprep.subr.bf16.mxu0 0
  %162 = vmatpush1.bf16.msra.mxu0 0
  %163 = vmatprep.subr.bf16.mxu0 0
  %164 = vmatpush1.bf16.msra.mxu0 0
  %165 = vmatprep.subr.bf16.mxu0 0
  %166 = vmatpush1.bf16.msra.mxu0 0
  %167 = vmatprep.mubr.bf16.mxu0 0
  %168 = vmatmul.mubr.bf16.gmra.mrb[0].mxu0 %v130
  %v169 = vpop.f32.mrb[0].mxu0
  %v170 = vadd.f32 %v115, %v169
  %v171 = vpop.f32.mrb[0].mxu0
  %v172 = vpop.f32.mrb[0].mxu0
  %v173 = vadd.f32 %v115, %v172
  %v174 = vpop.f32.mrb[0].mxu0
  %175 = vmatprep.mubr.bf16.mxu0 0
  %176 = vmatmul.mubr.bf16.gmra.mrb[0].mxu0 %v133
  %v177 = vpop.f32.mrb[0].mxu0
  %v178 = vadd.f32 %v115, %v177
  %v179 = vpop.f32.mrb[0].mxu0
  %v180 = vpop.f32.mrb[0].mxu0
  %v181 = vadd.f32 %v115, %v180
  %v182 = vpop.f32.mrb[0].mxu0
  %183 = vdwg.mxu0
  %v184 = vpack.c.bf16 %v173, %v170
  %v185 = vpack.c.bf16 %v181, %v178
  %v188 = vunpack.c.l.b16 %v184
  %v189 = vunpack.c.h.b16 %v184
  %v190 = vunpack.c.l.b16 %v185
  %v191 = vunpack.c.h.b16 %v185
  %v192 = vpack.c.b16 %v188, %v188
  %v193 = vpack.c.b16 %v189, %v189
  %v194 = vpack.c.b16 %v190, %v190
  %v195 = vpack.c.b16 %v191, %v191
  %vm200 = vcmask 257024
  %201 = vst.msk [vmem:[%s5] sm:$0xf] %vm200, %v192
  %202 = vst.msk [vmem:[%s5 + $0x4] sm:$0xf] %vm200, %v193
  %203 = vst.msk [vmem:[%s5 + $0x8] sm:$0xf] %vm200, %v194
  %204 = vst.msk [vmem:[%s5 + $0xc] sm:$0xf] %vm200, %v195
  %205 = vrot.lane.b32.xlu0 %v192, 96
  %v206 = vpop.permute.xlu0 %205
  %207 = vrot.lane.b32.xlu0 %v193, 96
  %v208 = vpop.permute.xlu0 %207
  %209 = vrot.lane.b32.xlu0 %v194, 96
  %v210 = vpop.permute.xlu0 %209
  %211 = vrot.lane.b32.xlu0 %v195, 96
  %v212 = vpop.permute.xlu0 %211
  %217 = vst.msk [vmem:[%s6] sm:$0xf] %vm200, %v206
  %218 = vst.msk [vmem:[%s6 + $0x4] sm:$0xf] %vm200, %v208
  %219 = vst.msk [vmem:[%s6 + $0x8] sm:$0xf] %vm200, %v210
  %220 = vst.msk [vmem:[%s6 + $0xc] sm:$0xf] %vm200, %v212
  %221 = vrot.lane.b32.xlu0 %v192, 64
  %v222 = vpop.permute.xlu0 %221
  %223 = vrot.lane.b32.xlu0 %v193, 64
  %v224 = vpop.permute.xlu0 %223
  %225 = vrot.lane.b32.xlu0 %v194, 64
  %v226 = vpop.permute.xlu0 %225
  %227 = vrot.lane.b32.xlu0 %v195, 64
  %v228 = vpop.permute.xlu0 %227
  %233 = vst.msk [vmem:[%s7] sm:$0xf] %vm200, %v222
  %234 = vst.msk [vmem:[%s7 + $0x4] sm:$0xf] %vm200, %v224
  %235 = vst.msk [vmem:[%s7 + $0x8] sm:$0xf] %vm200, %v226
  %236 = vst.msk [vmem:[%s7 + $0xc] sm:$0xf] %vm200, %v228
  // Predicated region
  $region22: #{vit_forward.11} parent=0 // pred_check
    _
  $region23: #{vit_forward.11} parent=0 // pred_check_branch
    %238 = sbr.rel (0) target = $region25
  $region24: #{vit_forward.11} parent=0 // pred_region
    _
  $region25: #{vit_forward.11} parent=0 // pred_fallthru
    _
  // Predicated region
  $region26: #{vit_forward.11} parent=0 // pred_check
    _
  $region27: #{vit_forward.11} parent=0 // pred_check_branch
    %240 = sbr.rel (0) target = $region29
  $region28: #{vit_forward.11} parent=0 // pred_region
    _
  $region29: #{vit_forward.11} parent=0 // pred_fallthru
    _
  // Predicated region
  $region30: #{vit_forward.11} parent=0 // pred_check
    _
  $region31: #{vit_forward.11} parent=0 // pred_check_branch
    %242 = sbr.rel (0) target = $region33
  $region32: #{vit_forward.11} parent=0 // pred_region
    _
  $region33: #{vit_forward.11} parent=0 // pred_fallthru
    _
  // Predicated region
  $region34: #{vit_forward.11} parent=0 // pred_check
    _
  $region35: #{vit_forward.11} parent=0 // pred_check_branch
    %244 = sbr.rel (0) target = $region37
  $region36: #{vit_forward.11} parent=0 // pred_region
    _
  $region37: #{vit_forward.11} parent=0 // pred_fallthru
    _
  // Predicated region
  $region38: #{vit_forward.11} parent=0 // pred_check
    _
  $region39: #{vit_forward.11} parent=0 // pred_check_branch
    %246 = sbr.rel (0) target = $region41
  $region40: #{vit_forward.11} parent=0 // pred_region
    _
  $region41: #{vit_forward.11} parent=0 // pred_fallthru
    _
  // Predicated region
  $region42: #{vit_forward.11} parent=0 // pred_check
    _
  $region43: #{vit_forward.11} parent=0 // pred_check_branch
    %248 = sbr.rel (0) target = $region45
  $region44: #{vit_forward.11} parent=0 // pred_region
    _
  $region45: #{vit_forward.11} parent=0 // pred_fallthru
    _

// kernel: vit_forward.13
$region0: #{vit_forward.13}
  #allocation0 [shape = 'u32[]', space=smem, size = 0x4, offset = 0x4, fixed_abs, tag = 'smem constant byte address 0x4 - core index']
  #allocation1 [shape = 'u32[144,128]{1,0:T(1,128)}', space=vmem, size = 0x12000, scoped, tag = 'internal scratch']
  %s0 = inlined_call_operand.vmem [shape: f32[32,32], index: 0, kind: input, shape index: {}]
  %s1 = inlined_call_operand.vmem [shape: f32[1,32], index: 1, kind: input, shape index: {}]
  %s2 = inlined_call_operand.vmem [shape: f32[1,32], index: 2, kind: input, shape index: {}]
  %s3 = inlined_call_operand.vmem [shape: bf16[32,128], index: 3, kind: input, shape index: {}]
  %s4 = inlined_call_operand.vmem [shape: f32[1,128], index: 4, kind: input, shape index: {}]
  %s5 = inlined_call_operand.vmem [shape: bf16[32,128], index: 5, kind: output, shape index: {}]
  %s6 = sld [smem:[#allocation0]]
  $region30: #{vit_forward.13} parent=0
    _
  %s8 = ssub.s32 1, %s6
  %s9 = scalar_select 0, %s8, %s6
  // Predicated region
  $region2: #{vit_forward.13} parent=0 // pred_check
    _
  $region3: #{vit_forward.13} parent=0 // pred_check_branch
    %11 = sbr.rel (0) target = $region5
  $region4: #{vit_forward.13} parent=0 // pred_region
    _
  $region5: #{vit_forward.13} parent=0 // pred_fallthru
    _
  // Predicated region
  $region6: #{vit_forward.13} parent=0 // pred_check
    _
  $region7: #{vit_forward.13} parent=0 // pred_check_branch
    %13 = sbr.rel (0) target = $region9
  $region8: #{vit_forward.13} parent=0 // pred_region
    _
  $region9: #{vit_forward.13} parent=0 // pred_fallthru
    _
  // Predicated region
  $region10: #{vit_forward.13} parent=0 // pred_check
    _
  $region11: #{vit_forward.13} parent=0 // pred_check_branch
    %15 = sbr.rel (0) target = $region13
  $region12: #{vit_forward.13} parent=0 // pred_region
    _
  $region13: #{vit_forward.13} parent=0 // pred_fallthru
    _
  // Predicated region
  $region14: #{vit_forward.13} parent=0 // pred_check
    _
  $region15: #{vit_forward.13} parent=0 // pred_check_branch
    %17 = sbr.rel (0) target = $region17
  $region16: #{vit_forward.13} parent=0 // pred_region
    _
  $region17: #{vit_forward.13} parent=0 // pred_fallthru
    _
  // Predicated region
  $region18: #{vit_forward.13} parent=0 // pred_check
    _
  $region19: #{vit_forward.13} parent=0 // pred_check_branch
    %19 = sbr.rel (0) target = $region21
  $region20: #{vit_forward.13} parent=0 // pred_region
    _
  $region21: #{vit_forward.13} parent=0 // pred_fallthru
    _
  %v21 = vld [vmem:[%s0] sm:$0xff]
  %v22 = vld [vmem:[%s0 + $0x8] sm:$0xff]
  %v23 = vld [vmem:[%s0 + $0x10] sm:$0xff]
  %v24 = vld [vmem:[%s0 + $0x18] sm:$0xff]
  %v25 = vld [vmem:[%s1] sm:$0x1]
  %v26 = vld [vmem:[%s2] sm:$0x1]
  %vm27 = vcmask 261120
  %v28 = vsel %vm27, %v21, 0.0
  %29 = vadd.xlane.f32.xlu0 %v28
  %v30 = vpop.xlane.xlu0 %29
  %v31 = vsel %vm27, %v22, 0.0
  %32 = vadd.xlane.f32.xlu0 %v31
  %v33 = vpop.xlane.xlu0 %32
  %v34 = vsel %vm27, %v23, 0.0
  %35 = vadd.xlane.f32.xlu0 %v34
  %v36 = vpop.xlane.xlu0 %35
  %v37 = vsel %vm27, %v24, 0.0
  %38 = vadd.xlane.f32.xlu0 %v37
  %v39 = vpop.xlane.xlu0 %38
  %v40 = vrcp.pop 32.0
  %v41 = vmul.f32 %v30, %v40
  %v42 = vmul.f32 %v33, %v40
  %v43 = vmul.f32 %v36, %v40
  %v44 = vmul.f32 %v39, %v40
  %v45 = vsub.f32 %v21, %v41
  %v46 = vsub.f32 %v22, %v42
  %v47 = vsub.f32 %v23, %v43
  %v48 = vsub.f32 %v24, %v44
  %v49 = vmul.f32 %v45, %v45
  %v50 = vmul.f32 %v46, %v46
  %v51 = vmul.f32 %v47, %v47
  %v52 = vmul.f32 %v48, %v48
  %v53 = vsel %vm27, %v49, 0.0
  %54 = vadd.xlane.f32.xlu0 %v53
  %v55 = vpop.xlane.xlu0 %54
  %v56 = vsel %vm27, %v50, 0.0
  %57 = vadd.xlane.f32.xlu0 %v56
  %v58 = vpop.xlane.xlu0 %57
  %v59 = vsel %vm27, %v51, 0.0
  %60 = vadd.xlane.f32.xlu0 %v59
  %v61 = vpop.xlane.xlu0 %60
  %v62 = vsel %vm27, %v52, 0.0
  %63 = vadd.xlane.f32.xlu0 %v62
  %v64 = vpop.xlane.xlu0 %63
  %v65 = vmul.f32 %v55, %v40
  %v66 = vmul.f32 %v58, %v40
  %v67 = vmul.f32 %v61, %v40
  %v68 = vmul.f32 %v64, %v40
  %v69 = vadd.f32 %v65, 1e-06
  %v70 = vadd.f32 %v66, 1e-06
  %v71 = vadd.f32 %v67, 1e-06
  %v72 = vadd.f32 %v68, 1e-06
  %v73 = vrsqrt.pop %v69
  %v74 = vrsqrt.pop %v70
  %v75 = vrsqrt.pop %v71
  %v76 = vrsqrt.pop %v72
  %v77 = vmul.f32 %v45, %v73
  %v78 = vmul.f32 %v46, %v74
  %v79 = vmul.f32 %v47, %v75
  %v80 = vmul.f32 %v48, %v76
  %v82 = vlaneseq
  %v83 = vshrl.u32 %v82, 7
  %v84 = vsub.s32 0, %v83
  %v85 = vrot.slane %v25, %v84
  %v87 = vmul.f32 %v77, %v85
  %v88 = vmul.f32 %v78, %v85
  %v89 = vmul.f32 %v79, %v85
  %v90 = vmul.f32 %v80, %v85
  %v92 = vlaneseq
  %v93 = vshrl.u32 %v92, 7
  %v94 = vsub.s32 0, %v93
  %v95 = vrot.slane %v26, %v94
  %v97 = vadd.f32 %v87, %v95
  %v98 = vadd.f32 %v88, %v95
  %v99 = vadd.f32 %v89, %v95
  %v100 = vadd.f32 %v90, %v95
  %v101 = vpack.c.bf16 %v98, %v97
  %v102 = vpack.c.bf16 %v100, %v99
  %v103 = vld [vmem:[%s3] sm:$0xf]
  %v104 = vld [vmem:[%s3 + $0x4] sm:$0xf]
  %v105 = vld [vmem:[%s3 + $0x8] sm:$0xf]
  %v106 = vld [vmem:[%s3 + $0xc] sm:$0xf]
  %v107 = vld [vmem:[%s4] sm:$0x1]
  %v109 = vlaneseq
  %v110 = vshrl.u32 %v109, 7
  %v111 = vsub.s32 0, %v110
  %v112 = vrot.slane %v107, %v111
  %v118 = vunpack.c.l.b16 %v103
  %v119 = vunpack.c.l.b16 %v104
  %v120 = vunpack.c.l.b16 %v105
  %v121 = vunpack.c.l.b16 %v106
  %v122 = vpack.c.b16 %v119, %v118
  %v123 = vpack.c.b16 %v121, %v120
  %v127 = vsel %vm27, %v101, 0
  %v130 = vsel %vm27, %v102, 0
  %132 = vmatprep.subr.bf16.mxu0 0
  %133 = vmatpush1.bf16.msra.mxu0 %v122
  %134 = vmatprep.subr.bf16.mxu0 0
  %135 = vmatpush1.bf16.msra.mxu0 %v123
  %136 = vmatprep.subr.bf16.mxu0 0
  %137 = vmatpush1.bf16.msra.mxu0 0
  %138 = vmatprep.subr.bf16.mxu0 0
  %139 = vmatpush1.bf16.msra.mxu0 0
  %140 = vmatprep.subr.bf16.mxu0 0
  %141 = vmatpush1.bf16.msra.mxu0 0
  %142 = vmatprep.subr.bf16.mxu0 0
  %143 = vmatpush1.bf16.msra.mxu0 0
  %144 = vmatprep.subr.bf16.mxu0 0
  %145 = vmatpush1.bf16.msra.mxu0 0
  %146 = vmatprep.subr.bf16.mxu0 0
  %147 = vmatpush1.bf16.msra.mxu0 0
  %148 = vmatprep.subr.bf16.mxu0 0
  %149 = vmatpush1.bf16.msra.mxu0 0
  %150 = vmatprep.subr.bf16.mxu0 0
  %151 = vmatpush1.bf16.msra.mxu0 0
  %152 = vmatprep.subr.bf16.mxu0 0
  %153 = vmatpush1.bf16.msra.mxu0 0
  %154 = vmatprep.subr.bf16.mxu0 0
  %155 = vmatpush1.bf16.msra.mxu0 0
  %156 = vmatprep.subr.bf16.mxu0 0
  %157 = vmatpush1.bf16.msra.mxu0 0
  %158 = vmatprep.subr.bf16.mxu0 0
  %159 = vmatpush1.bf16.msra.mxu0 0
  %160 = vmatprep.subr.bf16.mxu0 0
  %161 = vmatpush1.bf16.msra.mxu0 0
  %162 = vmatprep.subr.bf16.mxu0 0
  %163 = vmatpush1.bf16.msra.mxu0 0
  %164 = vmatprep.mubr.bf16.mxu0 0
  %165 = vmatmul.mubr.bf16.gmra.mrb[0].mxu0 %v127
  %v166 = vpop.f32.mrb[0].mxu0
  %v167 = vadd.f32 %v112, %v166
  %v168 = vpop.f32.mrb[0].mxu0
  %v169 = vpop.f32.mrb[0].mxu0
  %v170 = vadd.f32 %v112, %v169
  %v171 = vpop.f32.mrb[0].mxu0
  %172 = vmatprep.mubr.bf16.mxu0 0
  %173 = vmatmul.mubr.bf16.gmra.mrb[0].mxu0 %v130
  %v174 = vpop.f32.mrb[0].mxu0
  %v175 = vadd.f32 %v112, %v174
  %v176 = vpop.f32.mrb[0].mxu0
  %v177 = vpop.f32.mrb[0].mxu0
  %v178 = vadd.f32 %v112, %v177
  %v179 = vpop.f32.mrb[0].mxu0
  %180 = vdwg.mxu0
  %v181 = vmul.f32 %v167, 0.5
  %v182 = vmul.f32 %v170, 0.5
  %v183 = vmul.f32 %v175, 0.5
  %v184 = vmul.f32 %v178, 0.5
  %v185 = vmul.f32 %v167, 0.70710677
  %v186 = vmul.f32 %v170, 0.70710677
  %v187 = vmul.f32 %v175, 0.70710677
  %v188 = vmul.f32 %v178, 0.70710677
  %v189 = verf.f32.pop %v185
  %v190 = verf.f32.pop %v186
  %v191 = verf.f32.pop %v187
  %v192 = verf.f32.pop %v188
  %v193 = vadd.f32 %v189, 1.0
  %v194 = vadd.f32 %v190, 1.0
  %v195 = vadd.f32 %v191, 1.0
  %v196 = vadd.f32 %v192, 1.0
  %v197 = vmul.f32 %v181, %v193
  %v198 = vmul.f32 %v182, %v194
  %v199 = vmul.f32 %v183, %v195
  %v200 = vmul.f32 %v184, %v196
  %v201 = vpack.c.bf16 %v198, %v197
  %v202 = vpack.c.bf16 %v200, %v199
  %v205 = vunpack.c.l.b16 %v201
  %v206 = vunpack.c.h.b16 %v201
  %v207 = vunpack.c.l.b16 %v202
  %v208 = vunpack.c.h.b16 %v202
  %v209 = vpack.c.b16 %v205, %v205
  %v210 = vpack.c.b16 %v206, %v206
  %v211 = vpack.c.b16 %v207, %v207
  %v212 = vpack.c.b16 %v208, %v208
  %217 = vst [vmem:[%s5] sm:$0xf] %v209
  %218 = vst [vmem:[%s5 + $0x4] sm:$0xf] %v210
  %219 = vst [vmem:[%s5 + $0x8] sm:$0xf] %v211
  %220 = vst [vmem:[%s5 + $0xc] sm:$0xf] %v212
  // Predicated region
  $region22: #{vit_forward.13} parent=0 // pred_check
    _
  $region23: #{vit_forward.13} parent=0 // pred_check_branch
    %222 = sbr.rel (0) target = $region25
  $region24: #{vit_forward.13} parent=0 // pred_region
    _
  $region25: #{vit_forward.13} parent=0 // pred_fallthru
    _
  // Predicated region
  $region26: #{vit_forward.13} parent=0 // pred_check
    _
  $region27: #{vit_forward.13} parent=0 // pred_check_branch
    %224 = sbr.rel (0) target = $region29
  $region28: #{vit_forward.13} parent=0 // pred_region
    _
  $region29: #{vit_forward.13} parent=0 // pred_fallthru
    _

// kernel: vit_forward.10
$region0: #{vit_forward.10}
  #allocation0 [shape = 'u32[]', space=smem, size = 0x4, offset = 0x4, fixed_abs, tag = 'smem constant byte address 0x4 - core index']
  #allocation1 [shape = 'u32[144,128]{1,0:T(1,128)}', space=vmem, size = 0x12000, scoped, tag = 'internal scratch']
  %s0 = inlined_call_operand.vmem [shape: f32[2,16,48], index: 0, kind: input, shape index: {}]
  %s1 = inlined_call_operand.vmem [shape: bf16[48,32], index: 1, kind: input, shape index: {}]
  %s2 = inlined_call_operand.vmem [shape: f32[1,32], index: 2, kind: input, shape index: {}]
  %s3 = inlined_call_operand.vmem [shape: f32[1,16,32], index: 3, kind: input, shape index: {}]
  %s4 = inlined_call_operand.vmem [shape: f32[2,16,32], index: 4, kind: output, shape index: {}]
  %s5 = sld [smem:[#allocation0]]
  $region49: #{vit_forward.10} parent=0
    _
  %s7 = ssub.s32 1, %s5
  %s8 = scalar_select 0, %s7, %s5
  loop: start=0, step=1, limit=4
  $region2: #{vit_forward.10} parent=0 // loop_pre_header
    _
  $region3: #{vit_forward.10} parent=0 // loop_header
    %s10 = sphi 0, %s14
    %p11 = scmp.ge.s32.totalorder %s10, 4
    %s17 = sphi 0, %s29
    %s18 = sphi 0, %s25
    %s19 = sphi 0, %s17
    %s20 = sphi 0, %s18
    %s21 = sphi 0, %s19
    %s22 = sphi 0, %s20
    %s34 = sphi 0, %s36
    %s37 = sphi 0, %s34
    %s38 = sphi 0, %s37
    %s54 = sphi 0, %s38
    %s58 = sphi 0, %s58
    %s60 = sphi 0, %s58
    %s61 = sphi 0, %s60
    %s75 = sphi 0, %s61
    %s79 = sphi 0, %s79
    %s81 = sphi 0, %s79
    %s82 = sphi 0, %s81
    %s96 = sphi 0, %s82
    %s102 = sphi 0, %s104
    %s105 = sphi 0, %s102
    %s106 = sphi 0, %s105
    %s122 = sphi 0, %s106
    %s130 = sphi 0, %s132
    %s133 = sphi 0, %s130
    %s134 = sphi 0, %s133
    %s150 = sphi 0, %s134
  $region4: #{vit_forward.10} parent=0 // loop_header_branch
    %13 = sbr.rel (%p11) target = $region8
  $region5: #{vit_forward.10} parent=0 // loop_body
    %s15 = ssub.s32 %s10, 1
    %s16 = ssub.s32 %s10, 2
    %s23 = sadd.s32 1, %s18
    %p24 = scmp.ge.s32.totalorder %s23, 1
    %s25 = scalar_select %p24, 0, %s23
    %s26 = sadd.s32 1, %s17
    %s27 = scalar_select %p24, %s26, %s17
    %p28 = scmp.ge.s32.totalorder %s27, 2
    %s29 = scalar_select %p28, 0, %s27
    %s30 = ssub.s32 %s17, %s29
    %s31 = ssub.s32 %s18, %s25
    %s32 = sor.u32 %s30, %s31
    %p33 = scmp.eq.s32.totalorder %s32, 0
    %s35 = sadd.s32 %s34, 1
    %s36 = scalar_select %p33, %s34, %s35
    %p39 = pneg %p33
    %p40 = scmp.eq.s32.totalorder %s10, 1
    %p41 = por %p39, %p40
    %p42 = scmp.ne.s32.totalorder %s34, %s37
    %p43 = scmp.eq.s32.totalorder %s10, 0
    %p44 = por %p42, %p43
    %p45 = scmp.ne.s32.totalorder %s34, %s37
    %p46 = scmp.eq.s32.totalorder %s15, 1
    %p47 = por %p45, %p46
    %p48 = scmp.ne.s32.totalorder %s37, %s38
    %p49 = scmp.eq.s32.totalorder %s15, 0
    %p50 = por %p48, %p49
    %p51 = scmp.ne.s32.totalorder %s37, %s38
    %p52 = scmp.eq.s32.totalorder %s16, 1
    %p53 = por %p51, %p52
    %p55 = scmp.ne.s32.totalorder %s38, %s54
    %p56 = scmp.eq.s32.totalorder %s16, 0
    %p57 = por %p55, %p56
    %s59 = sadd.s32 %s58, 1
    %p62 = scmp.eq.s32.totalorder %s10, 1
    %p63 = scmp.ne.s32.totalorder %s58, %s60
    %p64 = scmp.eq.s32.totalorder %s10, 0
    %p65 = por %p63, %p64
    %p66 = scmp.ne.s32.totalorder %s58, %s60
    %p67 = scmp.eq.s32.totalorder %s15, 1
    %p68 = por %p66, %p67
    %p69 = scmp.ne.s32.totalorder %s60, %s61
    %p70 = scmp.eq.s32.totalorder %s15, 0
    %p71 = por %p69, %p70
    %p72 = scmp.ne.s32.totalorder %s60, %s61
    %p73 = scmp.eq.s32.totalorder %s16, 1
    %p74 = por %p72, %p73
    %p76 = scmp.ne.s32.totalorder %s61, %s75
    %p77 = scmp.eq.s32.totalorder %s16, 0
    %p78 = por %p76, %p77
    %s80 = sadd.s32 %s79, 1
    %p83 = scmp.eq.s32.totalorder %s10, 1
    %p84 = scmp.ne.s32.totalorder %s79, %s81
    %p85 = scmp.eq.s32.totalorder %s10, 0
    %p86 = por %p84, %p85
    %p87 = scmp.ne.s32.totalorder %s79, %s81
    %p88 = scmp.eq.s32.totalorder %s15, 1
    %p89 = por %p87, %p88
    %p90 = scmp.ne.s32.totalorder %s81, %s82
    %p91 = scmp.eq.s32.totalorder %s15, 0
    %p92 = por %p90, %p91
    %p93 = scmp.ne.s32.totalorder %s81, %s82
    %p94 = scmp.eq.s32.totalorder %s16, 1
    %p95 = por %p93, %p94
    %p97 = scmp.ne.s32.totalorder %s82, %s96
    %p98 = scmp.eq.s32.totalorder %s16, 0
    %p99 = por %p97, %p98
    %s100 = ssub.s32 %s18, %s25
    %p101 = scmp.eq.s32.totalorder %s100, 0
    %s103 = sadd.s32 %s102, 1
    %s104 = scalar_select %p101, %s102, %s103
    %p107 = pneg %p101
    %p108 = scmp.eq.s32.totalorder %s10, 1
    %p109 = por %p107, %p108
    %p110 = scmp.ne.s32.totalorder %s102, %s105
    %p111 = scmp.eq.s32.totalorder %s10, 0
    %p112 = por %p110, %p111
    %p113 = scmp.ne.s32.totalorder %s102, %s105
    %p114 = scmp.eq.s32.totalorder %s15, 1
    %p115 = por %p113, %p114
    %p116 = scmp.ne.s32.totalorder %s105, %s106
    %p117 = scmp.eq.s32.totalorder %s15, 0
    %p118 = por %p116, %p117
    %p119 = scmp.ne.s32.totalorder %s105, %s106
    %p120 = scmp.eq.s32.totalorder %s16, 1
    %p121 = por %p119, %p120
    %p123 = scmp.ne.s32.totalorder %s106, %s122
    %p124 = scmp.eq.s32.totalorder %s16, 0
    %p125 = por %p123, %p124
    %s126 = ssub.s32 %s17, %s29
    %s127 = ssub.s32 %s18, %s25
    %s128 = sor.u32 %s126, %s127
    %p129 = scmp.eq.s32.totalorder %s128, 0
    %s131 = sadd.s32 %s130, 1
    %s132 = scalar_select %p129, %s130, %s131
    %p135 = pneg %p129
    %p136 = scmp.eq.s32.totalorder %s10, 1
    %p137 = por %p135, %p136
    %p138 = scmp.ne.s32.totalorder %s130, %s133
    %p139 = scmp.eq.s32.totalorder %s10, 0
    %p140 = por %p138, %p139
    %p141 = scmp.ne.s32.totalorder %s130, %s133
    %p142 = scmp.eq.s32.totalorder %s15, 1
    %p143 = por %p141, %p142
    %p144 = scmp.ne.s32.totalorder %s133, %s134
    %p145 = scmp.eq.s32.totalorder %s15, 0
    %p146 = por %p144, %p145
    %p147 = scmp.ne.s32.totalorder %s133, %s134
    %p148 = scmp.eq.s32.totalorder %s16, 1
    %p149 = por %p147, %p148
    %p151 = scmp.ne.s32.totalorder %s134, %s150
    %p152 = scmp.eq.s32.totalorder %s16, 0
    %p153 = por %p151, %p152
    %p154 = scmp.le.s32.totalorder 1, %s10
    %p155 = scmp.lt.s32.totalorder %s10, 3
    %p156 = pnand %p154, %p155
    %p157 = pneg %p156
    // Predicated region
    $region9: #{vit_forward.10} parent=5 // pred_check
      _
    $region10: #{vit_forward.10} parent=5 // pred_check_branch
      %159 = sbr.rel (%p156) target = $region12
    $region11: #{vit_forward.10} parent=5 // pred_region
      %s160 = ssub.s32 %s10, 1
      // Predicated region
      $region13: #{vit_forward.10} parent=11 // pred_check
        %p161 = pneg %p71
      $region14: #{vit_forward.10} parent=11 // pred_check_branch
        %163 = sbr.rel (%p161) target = $region16
      $region15: #{vit_forward.10} parent=11 // pred_region
        _
      $region16: #{vit_forward.10} parent=11 // pred_fallthru
        _
      // Predicated region
      $region17: #{vit_forward.10} parent=11 // pred_check
        %p164 = pneg %p92
      $region18: #{vit_forward.10} parent=11 // pred_check_branch
        %166 = sbr.rel (%p164) target = $region20
      $region19: #{vit_forward.10} parent=11 // pred_region
        _
      $region20: #{vit_forward.10} parent=11 // pred_fallthru
        _
      // Predicated region
      $region21: #{vit_forward.10} parent=11 // pred_check
        %p167 = pneg %p118
      $region22: #{vit_forward.10} parent=11 // pred_check_branch
        %169 = sbr.rel (%p167) target = $region24
      $region23: #{vit_forward.10} parent=11 // pred_region
        %s170 = smul.u32 2, %s20
        %p171 = scmp.lt.s32.totalorder %s170, 1
        %s172 = scalar_select %p171, %s170, 1
        %s173 = smul.addr %s172, 8
        %s174 = scalar_lea.vmem %s3, %s173
        %s175 = smul.u32 2, %s20
      $region24: #{vit_forward.10} parent=11 // pred_fallthru
        _
    $region12: #{vit_forward.10} parent=5 // pred_fallthru
      _
    %p176 = scmp.lt.s32.totalorder %s10, 2
    // Predicated region
    $region25: #{vit_forward.10} parent=5 // pred_check
      %p177 = pneg %p176
    $region26: #{vit_forward.10} parent=5 // pred_check_branch
      %179 = sbr.rel (%p177) target = $region28
    $region27: #{vit_forward.10} parent=5 // pred_region
      // Predicated region
      $region29: #{vit_forward.10} parent=27 // pred_check
        %p180 = pneg %p44
      $region30: #{vit_forward.10} parent=27 // pred_check_branch
        %182 = sbr.rel (%p180) target = $region32
      $region31: #{vit_forward.10} parent=27 // pred_region
        %s183 = smul.u32 2, %s18
        %p184 = scmp.lt.s32.totalorder %s17, 1
        %s185 = scalar_select %p184, %s17, 1
        %p186 = scmp.lt.s32.totalorder %s183, 1
        %s187 = scalar_select %p186, %s183, 1
        %s188 = smul.addr %s185, 2
        %s189 = sadd.s32 %s187, %s188
        %s190 = smul.addr %s189, 8
        %s191 = scalar_lea.vmem %s0, %s190
        %s192 = smul.u32 2, %s18
      $region32: #{vit_forward.10} parent=27 // pred_fallthru
        _
    $region28: #{vit_forward.10} parent=5 // pred_fallthru
      _
    %p193 = scmp.le.s32.totalorder 1, %s10
    %p194 = scmp.lt.s32.totalorder %s10, 3
    %p195 = pnand %p193, %p194
    %p196 = pneg %p195
    // Predicated region
    $region33: #{vit_forward.10} parent=5 // pred_check
      _
    $region34: #{vit_forward.10} parent=5 // pred_check_branch
      %198 = sbr.rel (%p195) target = $region36
    $region35: #{vit_forward.10} parent=5 // pred_region
      %s199 = ssub.s32 %s10, 1
      %s200 = smul.u32 2, %s20
      %p201 = scmp.lt.s32.totalorder %s19, 1
      %s202 = scalar_select %p201, %s19, 1
      %p203 = scmp.lt.s32.totalorder %s200, 1
      %s204 = scalar_select %p203, %s200, 1
      %s205 = smul.addr %s202, 2
      %s206 = sadd.s32 %s204, %s205
      %s207 = smul.addr %s206, 8
      %s208 = scalar_lea.vmem %s0, %s207
      %p209 = pneg %p50
      %p210 = pneg %p47
      %p211 = pneg %p71
      %p212 = pneg %p68
      %p213 = pneg %p92
      %p214 = pneg %p89
      %s215 = smul.u32 2, %s20
      %p216 = scmp.lt.s32.totalorder %s215, 1
      %s217 = scalar_select %p216, %s215, 1
      %s218 = smul.addr %s217, 8
      %s219 = scalar_lea.vmem %s3, %s218
      %p220 = pneg %p118
      %p221 = pneg %p115
      %p222 = pneg %p146
      %p223 = pneg %p143
      %s224 = smul.u32 2, %s20
      %p225 = scmp.lt.s32.totalorder %s19, 1
      %s226 = scalar_select %p225, %s19, 1
      %p227 = scmp.lt.s32.totalorder %s224, 1
      %s228 = scalar_select %p227, %s224, 1
      %s229 = smul.addr %s226, 2
      %s230 = sadd.s32 %s228, %s229
      %s231 = smul.addr %s230, 8
      %s232 = scalar_lea.vmem %s4, %s231
      %s233 = smul.u32 2, %s20
      %p234 = scmp.lt.s32.totalorder %s19, 1
      %s235 = scalar_select %p234, %s19, 1
      %p236 = scmp.lt.s32.totalorder %s233, 1
      %s237 = scalar_select %p236, %s233, 1
      %s238 = smul.addr %s235, 2
      %s239 = sadd.s32 %s237, %s238
      %s240 = smul.addr %s239, 8
      %s241 = scalar_lea.vmem %s0, %s240
      %s242 = smul.u32 2, %s20
      %s243 = smul.u32 2, %s20
      %p244 = scmp.lt.s32.totalorder %s243, 1
      %s245 = scalar_select %p244, %s243, 1
      %s246 = smul.addr %s245, 8
      %s247 = scalar_lea.vmem %s3, %s246
      %s248 = smul.u32 2, %s20
      %s249 = smul.u32 2, %s20
      %p250 = scmp.lt.s32.totalorder %s19, 1
      %s251 = scalar_select %p250, %s19, 1
      %p252 = scmp.lt.s32.totalorder %s249, 1
      %s253 = scalar_select %p252, %s249, 1
      %s254 = smul.addr %s251, 2
      %s255 = sadd.s32 %s253, %s254
      %s256 = smul.addr %s255, 8
      %s257 = scalar_lea.vmem %s4, %s256
      %s258 = smul.u32 2, %s20
      %v260 = vld [vmem:[%s241] sm:$0xff]
      %v261 = vld [vmem:[%s241 + $0x8] sm:$0xff]
      %v262 = vpack.c.bf16 %v261, %v260
      %v263 = vld [vmem:[%s1] sm:$0xf]
      %v264 = vld [vmem:[%s1 + $0x4] sm:$0xf]
      %v265 = vld [vmem:[%s1 + $0x8] sm:$0xf]
      %v266 = vld [vmem:[%s1 + $0xc] sm:$0xf]
      %v267 = vld [vmem:[%s1 + $0x10] sm:$0xf]
      %v268 = vld [vmem:[%s1 + $0x14] sm:$0xf]
      %v269 = vld [vmem:[%s2] sm:$0x1]
      %v271 = vlaneseq
      %v272 = vshrl.u32 %v271, 7
      %v273 = vsub.s32 0, %v272
      %v274 = vrot.slane %v269, %v273
      %v282 = vunpack.c.l.b16 %v263
      %v283 = vunpack.c.l.b16 %v264
      %v284 = vunpack.c.l.b16 %v265
      %v285 = vunpack.c.l.b16 %v266
      %v286 = vunpack.c.l.b16 %v267
      %v287 = vunpack.c.l.b16 %v268
      %v288 = vpack.c.b16 %v283, %v282
      %v289 = vpack.c.b16 %v285, %v284
      %v290 = vpack.c.b16 %v287, %v286
      %vm294 = vcmask 392192
      %v296 = vsel %vm294, %v262, 0
      %298 = vmatprep.subr.bf16.mxu0 0
      %299 = vmatpush1.bf16.msra.mxu0 %v288
      %300 = vmatprep.subr.bf16.mxu0 0
      %301 = vmatpush1.bf16.msra.mxu0 %v289
      %302 = vmatprep.subr.bf16.mxu0 0
      %303 = vmatpush1.bf16.msra.mxu0 %v290
      %304 = vmatprep.subr.bf16.mxu0 0
      %305 = vmatpush1.bf16.msra.mxu0 0
      %306 = vmatprep.subr.bf16.mxu0 0
      %307 = vmatpush1.bf16.msra.mxu0 0
      %308 = vmatprep.subr.bf16.mxu0 0
      %309 = vmatpush1.bf16.msra.mxu0 0
      %310 = vmatprep.subr.bf16.mxu0 0
      %311 = vmatpush1.bf16.msra.mxu0 0
      %312 = vmatprep.subr.bf16.mxu0 0
      %313 = vmatpush1.bf16.msra.mxu0 0
      %314 = vmatprep.subr.bf16.mxu0 0
      %315 = vmatpush1.bf16.msra.mxu0 0
      %316 = vmatprep.subr.bf16.mxu0 0
      %317 = vmatpush1.bf16.msra.mxu0 0
      %318 = vmatprep.subr.bf16.mxu0 0
      %319 = vmatpush1.bf16.msra.mxu0 0
      %320 = vmatprep.subr.bf16.mxu0 0
      %321 = vmatpush1.bf16.msra.mxu0 0
      %322 = vmatprep.subr.bf16.mxu0 0
      %323 = vmatpush1.bf16.msra.mxu0 0
      %324 = vmatprep.subr.bf16.mxu0 0
      %325 = vmatpush1.bf16.msra.mxu0 0
      %326 = vmatprep.subr.bf16.mxu0 0
      %327 = vmatpush1.bf16.msra.mxu0 0
      %328 = vmatprep.subr.bf16.mxu0 0
      %329 = vmatpush1.bf16.msra.mxu0 0
      %330 = vmatprep.mubr.bf16.mxu0 0
      %331 = vmatmul.mubr.bf16.gmra.mrb[0].mxu0 %v296
      %v332 = vpop.f32.mrb[0].mxu0
      %v333 = vadd.f32 %v274, %v332
      %v334 = vpop.f32.mrb[0].mxu0
      %v335 = vpop.f32.mrb[0].mxu0
      %v336 = vadd.f32 %v274, %v335
      %v337 = vpop.f32.mrb[0].mxu0
      %338 = vdwg.mxu0
      %v339 = vld [vmem:[%s247] sm:$0xff]
      %v340 = vld [vmem:[%s247 + $0x8] sm:$0xff]
      %v341 = vadd.f32 %v333, %v339
      %v342 = vadd.f32 %v336, %v340
      %vm343 = vcmask 261120
      %344 = vst.msk [vmem:[%s257] sm:$0xff] %vm343, %v341
      %345 = vst.msk [vmem:[%s257 + $0x8] sm:$0xff] %vm343, %v342
      %s346 = smul.u32 2, %s20
      %p347 = scmp.lt.s32.totalorder %s19, 1
      %s348 = scalar_select %p347, %s19, 1
      %p349 = scmp.lt.s32.totalorder %s346, 1
      %s350 = scalar_select %p349, %s346, 1
      %s351 = smul.addr %s348, 2
      %s352 = sadd.s32 %s350, %s351
      %s353 = smul.addr %s352, 8
      %s354 = scalar_lea.vmem %s4, %s353
      // Predicated region
      $region37: #{vit_forward.10} parent=35 // pred_check
        %p355 = pneg %p143
      $region38: #{vit_forward.10} parent=35 // pred_check_branch
        %357 = sbr.rel (%p355) target = $region40
      $region39: #{vit_forward.10} parent=35 // pred_region
        %s358 = smul.u32 2, %s20
      $region40: #{vit_forward.10} parent=35 // pred_fallthru
        _
    $region36: #{vit_forward.10} parent=5 // pred_fallthru
      _
    %p359 = scmp.le.s32.totalorder 2, %s10
    // Predicated region
    $region41: #{vit_forward.10} parent=5 // pred_check
      %p360 = pneg %p359
    $region42: #{vit_forward.10} parent=5 // pred_check_branch
      %362 = sbr.rel (%p360) target = $region44
    $region43: #{vit_forward.10} parent=5 // pred_region
      %s363 = ssub.s32 %s10, 2
      // Predicated region
      $region45: #{vit_forward.10} parent=43 // pred_check
        %p364 = pneg %p149
      $region46: #{vit_forward.10} parent=43 // pred_check_branch
        %366 = sbr.rel (%p364) target = $region48
      $region47: #{vit_forward.10} parent=43 // pred_region
        %s367 = smul.u32 2, %s22
        %p368 = scmp.lt.s32.totalorder %s21, 1
        %s369 = scalar_select %p368, %s21, 1
        %p370 = scmp.lt.s32.totalorder %s367, 1
        %s371 = scalar_select %p370, %s367, 1
        %s372 = smul.addr %s369, 2
        %s373 = sadd.s32 %s371, %s372
        %s374 = smul.addr %s373, 8
        %s375 = scalar_lea.vmem %s4, %s374
      $region48: #{vit_forward.10} parent=43 // pred_fallthru
        _
    $region44: #{vit_forward.10} parent=5 // pred_fallthru
      _
  $region6: #{vit_forward.10} parent=0 // loop_footer
    %s14 = sadd.s32 1, %s10
  $region7: #{vit_forward.10} parent=0 // loop_footer_branch
    %9 = sbr.rel target = $region3
  $region8: #{vit_forward.10} parent=0 // loop_exit
    _

// kernel: vit_forward.12
$region0: #{vit_forward.12}
  #allocation0 [shape = 'u32[]', space=smem, size = 0x4, offset = 0x4, fixed_abs, tag = 'smem constant byte address 0x4 - core index']
  #allocation1 [shape = 'u32[144,128]{1,0:T(1,128)}', space=vmem, size = 0x12000, scoped, tag = 'internal scratch']
  #allocation2 [shape = 'bf16[16,32]{1,0:T(16,128)(2,1)}', space=vmem, size = 0x1000, scoped, tag = 'scratch operand']
  %s0 = inlined_call_operand.vmem [shape: bf16[2,16,32], index: 0, kind: input, shape index: {}]
  %s1 = inlined_call_operand.vmem [shape: bf16[2,16,32], index: 1, kind: input, shape index: {}]
  %s2 = inlined_call_operand.vmem [shape: bf16[2,16,32], index: 2, kind: input, shape index: {}]
  %s3 = inlined_call_operand.vmem [shape: bf16[32,32], index: 3, kind: input, shape index: {}]
  %s4 = inlined_call_operand.vmem [shape: f32[1,32], index: 4, kind: input, shape index: {}]
  %s5 = inlined_call_operand.vmem [shape: f32[2,16,32], index: 5, kind: input, shape index: {}]
  %s6 = inlined_call_operand.vmem [shape: f32[2,16,32], index: 6, kind: output, shape index: {}]
  %s7 = sld [smem:[#allocation0]]
  $region57: #{vit_forward.12} parent=0
    _
  %s9 = ssub.s32 1, %s7
  %s10 = scalar_select 0, %s9, %s7
  loop: start=0, step=1, limit=4
  $region2: #{vit_forward.12} parent=0 // loop_pre_header
    _
  $region3: #{vit_forward.12} parent=0 // loop_header
    %s12 = sphi 0, %s16
    %p13 = scmp.ge.s32.totalorder %s12, 4
    %s19 = sphi 0, %s31
    %s20 = sphi 0, %s27
    %s21 = sphi 0, %s19
    %s22 = sphi 0, %s20
    %s23 = sphi 0, %s21
    %s24 = sphi 0, %s22
    %s36 = sphi 0, %s38
    %s39 = sphi 0, %s36
    %s40 = sphi 0, %s39
    %s56 = sphi 0, %s40
    %s62 = sphi 0, %s64
    %s65 = sphi 0, %s62
    %s66 = sphi 0, %s65
    %s82 = sphi 0, %s66
    %s88 = sphi 0, %s90
    %s91 = sphi 0, %s88
    %s92 = sphi 0, %s91
    %s108 = sphi 0, %s92
    %s112 = sphi 0, %s112
    %s114 = sphi 0, %s112
    %s115 = sphi 0, %s114
    %s129 = sphi 0, %s115
    %s133 = sphi 0, %s133
    %s135 = sphi 0, %s133
    %s136 = sphi 0, %s135
    %s150 = sphi 0, %s136
    %s158 = sphi 0, %s160
    %s161 = sphi 0, %s158
    %s162 = sphi 0, %s161
    %s178 = sphi 0, %s162
    %s186 = sphi 0, %s188
    %s189 = sphi 0, %s186
    %s190 = sphi 0, %s189
    %s206 = sphi 0, %s190
  $region4: #{vit_forward.12} parent=0 // loop_header_branch
    %15 = sbr.rel (%p13) target = $region8
  $region5: #{vit_forward.12} parent=0 // loop_body
    %s17 = ssub.s32 %s12, 1
    %s18 = ssub.s32 %s12, 2
    %s25 = sadd.s32 1, %s20
    %p26 = scmp.ge.s32.totalorder %s25, 1
    %s27 = scalar_select %p26, 0, %s25
    %s28 = sadd.s32 1, %s19
    %s29 = scalar_select %p26, %s28, %s19
    %p30 = scmp.ge.s32.totalorder %s29, 2
    %s31 = scalar_select %p30, 0, %s29
    %s32 = ssub.s32 %s19, %s31
    %s33 = ssub.s32 %s20, %s27
    %s34 = sor.u32 %s32, %s33
    %p35 = scmp.eq.s32.totalorder %s34, 0
    %s37 = sadd.s32 %s36, 1
    %s38 = scalar_select %p35, %s36, %s37
    %p41 = pneg %p35
    %p42 = scmp.eq.s32.totalorder %s12, 1
    %p43 = por %p41, %p42
    %p44 = scmp.ne.s32.totalorder %s36, %s39
    %p45 = scmp.eq.s32.totalorder %s12, 0
    %p46 = por %p44, %p45
    %p47 = scmp.ne.s32.totalorder %s36, %s39
    %p48 = scmp.eq.s32.totalorder %s17, 1
    %p49 = por %p47, %p48
    %p50 = scmp.ne.s32.totalorder %s39, %s40
    %p51 = scmp.eq.s32.totalorder %s17, 0
    %p52 = por %p50, %p51
    %p53 = scmp.ne.s32.totalorder %s39, %s40
    %p54 = scmp.eq.s32.totalorder %s18, 1
    %p55 = por %p53, %p54
    %p57 = scmp.ne.s32.totalorder %s40, %s56
    %p58 = scmp.eq.s32.totalorder %s18, 0
    %p59 = por %p57, %p58
    %s60 = ssub.s32 %s19, %s31
    %p61 = scmp.eq.s32.totalorder %s60, 0
    %s63 = sadd.s32 %s62, 1
    %s64 = scalar_select %p61, %s62, %s63
    %p67 = pneg %p61
    %p68 = scmp.eq.s32.totalorder %s12, 1
    %p69 = por %p67, %p68
    %p70 = scmp.ne.s32.totalorder %s62, %s65
    %p71 = scmp.eq.s32.totalorder %s12, 0
    %p72 = por %p70, %p71
    %p73 = scmp.ne.s32.totalorder %s62, %s65
    %p74 = scmp.eq.s32.totalorder %s17, 1
    %p75 = por %p73, %p74
    %p76 = scmp.ne.s32.totalorder %s65, %s66
    %p77 = scmp.eq.s32.totalorder %s17, 0
    %p78 = por %p76, %p77
    %p79 = scmp.ne.s32.totalorder %s65, %s66
    %p80 = scmp.eq.s32.totalorder %s18, 1
    %p81 = por %p79, %p80
    %p83 = scmp.ne.s32.totalorder %s66, %s82
    %p84 = scmp.eq.s32.totalorder %s18, 0
    %p85 = por %p83, %p84
    %s86 = ssub.s32 %s19, %s31
    %p87 = scmp.eq.s32.totalorder %s86, 0
    %s89 = sadd.s32 %s88, 1
    %s90 = scalar_select %p87, %s88, %s89
    %p93 = pneg %p87
    %p94 = scmp.eq.s32.totalorder %s12, 1
    %p95 = por %p93, %p94
    %p96 = scmp.ne.s32.totalorder %s88, %s91
    %p97 = scmp.eq.s32.totalorder %s12, 0
    %p98 = por %p96, %p97
    %p99 = scmp.ne.s32.totalorder %s88, %s91
    %p100 = scmp.eq.s32.totalorder %s17, 1
    %p101 = por %p99, %p100
    %p102 = scmp.ne.s32.totalorder %s91, %s92
    %p103 = scmp.eq.s32.totalorder %s17, 0
    %p104 = por %p102, %p103
    %p105 = scmp.ne.s32.totalorder %s91, %s92
    %p106 = scmp.eq.s32.totalorder %s18, 1
    %p107 = por %p105, %p106
    %p109 = scmp.ne.s32.totalorder %s92, %s108
    %p110 = scmp.eq.s32.totalorder %s18, 0
    %p111 = por %p109, %p110
    %s113 = sadd.s32 %s112, 1
    %p116 = scmp.eq.s32.totalorder %s12, 1
    %p117 = scmp.ne.s32.totalorder %s112, %s114
    %p118 = scmp.eq.s32.totalorder %s12, 0
    %p119 = por %p117, %p118
    %p120 = scmp.ne.s32.totalorder %s112, %s114
    %p121 = scmp.eq.s32.totalorder %s17, 1
    %p122 = por %p120, %p121
    %p123 = scmp.ne.s32.totalorder %s114, %s115
    %p124 = scmp.eq.s32.totalorder %s17, 0
    %p125 = por %p123, %p124
    %p126 = scmp.ne.s32.totalorder %s114, %s115
    %p127 = scmp.eq.s32.totalorder %s18, 1
    %p128 = por %p126, %p127
    %p130 = scmp.ne.s32.totalorder %s115, %s129
    %p131 = scmp.eq.s32.totalorder %s18, 0
    %p132 = por %p130, %p131
    %s134 = sadd.s32 %s133, 1
    %p137 = scmp.eq.s32.totalorder %s12, 1
    %p138 = scmp.ne.s32.totalorder %s133, %s135
    %p139 = scmp.eq.s32.totalorder %s12, 0
    %p140 = por %p138, %p139
    %p141 = scmp.ne.s32.totalorder %s133, %s135
    %p142 = scmp.eq.s32.totalorder %s17, 1
    %p143 = por %p141, %p142
    %p144 = scmp.ne.s32.totalorder %s135, %s136
    %p145 = scmp.eq.s32.totalorder %s17, 0
    %p146 = por %p144, %p145
    %p147 = scmp.ne.s32.totalorder %s135, %s136
    %p148 = scmp.eq.s32.totalorder %s18, 1
    %p149 = por %p147, %p148
    %p151 = scmp.ne.s32.totalorder %s136, %s150
    %p152 = scmp.eq.s32.totalorder %s18, 0
    %p153 = por %p151, %p152
    %s154 = ssub.s32 %s19, %s31
    %s155 = ssub.s32 %s20, %s27
    %s156 = sor.u32 %s154, %s155
    %p157 = scmp.eq.s32.totalorder %s156, 0
    %s159 = sadd.s32 %s158, 1
    %s160 = scalar_select %p157, %s158, %s159
    %p163 = pneg %p157
    %p164 = scmp.eq.s32.totalorder %s12, 1
    %p165 = por %p163, %p164
    %p166 = scmp.ne.s32.totalorder %s158, %s161
    %p167 = scmp.eq.s32.totalorder %s12, 0
    %p168 = por %p166, %p167
    %p169 = scmp.ne.s32.totalorder %s158, %s161
    %p170 = scmp.eq.s32.totalorder %s17, 1
    %p171 = por %p169, %p170
    %p172 = scmp.ne.s32.totalorder %s161, %s162
    %p173 = scmp.eq.s32.totalorder %s17, 0
    %p174 = por %p172, %p173
    %p175 = scmp.ne.s32.totalorder %s161, %s162
    %p176 = scmp.eq.s32.totalorder %s18, 1
    %p177 = por %p175, %p176
    %p179 = scmp.ne.s32.totalorder %s162, %s178
    %p180 = scmp.eq.s32.totalorder %s18, 0
    %p181 = por %p179, %p180
    %s182 = ssub.s32 %s19, %s31
    %s183 = ssub.s32 %s20, %s27
    %s184 = sor.u32 %s182, %s183
    %p185 = scmp.eq.s32.totalorder %s184, 0
    %s187 = sadd.s32 %s186, 1
    %s188 = scalar_select %p185, %s186, %s187
    %p191 = pneg %p185
    %p192 = scmp.eq.s32.totalorder %s12, 1
    %p193 = por %p191, %p192
    %p194 = scmp.ne.s32.totalorder %s186, %s189
    %p195 = scmp.eq.s32.totalorder %s12, 0
    %p196 = por %p194, %p195
    %p197 = scmp.ne.s32.totalorder %s186, %s189
    %p198 = scmp.eq.s32.totalorder %s17, 1
    %p199 = por %p197, %p198
    %p200 = scmp.ne.s32.totalorder %s189, %s190
    %p201 = scmp.eq.s32.totalorder %s17, 0
    %p202 = por %p200, %p201
    %p203 = scmp.ne.s32.totalorder %s189, %s190
    %p204 = scmp.eq.s32.totalorder %s18, 1
    %p205 = por %p203, %p204
    %p207 = scmp.ne.s32.totalorder %s190, %s206
    %p208 = scmp.eq.s32.totalorder %s18, 0
    %p209 = por %p207, %p208
    %p210 = scmp.le.s32.totalorder 1, %s12
    %p211 = scmp.lt.s32.totalorder %s12, 3
    %p212 = pnand %p210, %p211
    %p213 = pneg %p212
    // Predicated region
    $region9: #{vit_forward.12} parent=5 // pred_check
      _
    $region10: #{vit_forward.12} parent=5 // pred_check_branch
      %215 = sbr.rel (%p212) target = $region12
    $region11: #{vit_forward.12} parent=5 // pred_region
      %s216 = ssub.s32 %s12, 1
      // Predicated region
      $region13: #{vit_forward.12} parent=11 // pred_check
        %p217 = pneg %p125
      $region14: #{vit_forward.12} parent=11 // pred_check_branch
        %219 = sbr.rel (%p217) target = $region16
      $region15: #{vit_forward.12} parent=11 // pred_region
        _
      $region16: #{vit_forward.12} parent=11 // pred_fallthru
        _
      // Predicated region
      $region17: #{vit_forward.12} parent=11 // pred_check
        %p220 = pneg %p146
      $region18: #{vit_forward.12} parent=11 // pred_check_branch
        %222 = sbr.rel (%p220) target = $region20
      $region19: #{vit_forward.12} parent=11 // pred_region
        _
      $region20: #{vit_forward.12} parent=11 // pred_fallthru
        _
    $region12: #{vit_forward.12} parent=5 // pred_fallthru
      _
    %p223 = scmp.lt.s32.totalorder %s12, 2
    // Predicated region
    $region21: #{vit_forward.12} parent=5 // pred_check
      %p224 = pneg %p223
    $region22: #{vit_forward.12} parent=5 // pred_check_branch
      %226 = sbr.rel (%p224) target = $region24
    $region23: #{vit_forward.12} parent=5 // pred_region
      // Predicated region
      $region25: #{vit_forward.12} parent=23 // pred_check
        %p227 = pneg %p46
      $region26: #{vit_forward.12} parent=23 // pred_check_branch
        %229 = sbr.rel (%p227) target = $region28
      $region27: #{vit_forward.12} parent=23 // pred_region
        %s230 = smul.u32 2, %s20
        %p231 = scmp.lt.s32.totalorder %s19, 1
        %s232 = scalar_select %p231, %s19, 1
        %p233 = scmp.lt.s32.totalorder %s230, 1
        %s234 = scalar_select %p233, %s230, 1
        %s235 = smul.addr %s232, 2
        %s236 = sadd.s32 %s234, %s235
        %s237 = smul.addr %s236, 4
        %s238 = scalar_lea.vmem %s0, %s237
        %s239 = smul.u32 2, %s20
      $region28: #{vit_forward.12} parent=23 // pred_fallthru
        _
      // Predicated region
      $region29: #{vit_forward.12} parent=23 // pred_check
        %p240 = pneg %p72
      $region30: #{vit_forward.12} parent=23 // pred_check_branch
        %242 = sbr.rel (%p240) target = $region32
      $region31: #{vit_forward.12} parent=23 // pred_region
        %p243 = scmp.lt.s32.totalorder %s19, 1
        %s244 = scalar_select %p243, %s19, 1
        %s245 = smul.addr %s244, 2
        %s246 = smul.addr %s245, 4
        %s247 = scalar_lea.vmem %s1, %s246
      $region32: #{vit_forward.12} parent=23 // pred_fallthru
        _
      // Predicated region
      $region33: #{vit_forward.12} parent=23 // pred_check
        %p248 = pneg %p98
      $region34: #{vit_forward.12} parent=23 // pred_check_branch
        %250 = sbr.rel (%p248) target = $region36
      $region35: #{vit_forward.12} parent=23 // pred_region
        %p251 = scmp.lt.s32.totalorder %s19, 1
        %s252 = scalar_select %p251, %s19, 1
        %s253 = smul.addr %s252, 2
        %s254 = smul.addr %s253, 4
        %s255 = scalar_lea.vmem %s2, %s254
      $region36: #{vit_forward.12} parent=23 // pred_fallthru
        _
      // Predicated region
      $region37: #{vit_forward.12} parent=23 // pred_check
        %p256 = pneg %p168
      $region38: #{vit_forward.12} parent=23 // pred_check_branch
        %258 = sbr.rel (%p256) target = $region40
      $region39: #{vit_forward.12} parent=23 // pred_region
        %s259 = smul.u32 2, %s20
        %p260 = scmp.lt.s32.totalorder %s19, 1
        %s261 = scalar_select %p260, %s19, 1
        %p262 = scmp.lt.s32.totalorder %s259, 1
        %s263 = scalar_select %p262, %s259, 1
        %s264 = smul.addr %s261, 2
        %s265 = sadd.s32 %s263, %s264
        %s266 = smul.addr %s265, 8
        %s267 = scalar_lea.vmem %s5, %s266
        %s268 = smul.u32 2, %s20
      $region40: #{vit_forward.12} parent=23 // pred_fallthru
        _
    $region24: #{vit_forward.12} parent=5 // pred_fallthru
      _
    %p269 = scmp.le.s32.totalorder 1, %s12
    %p270 = scmp.lt.s32.totalorder %s12, 3
    %p271 = pnand %p269, %p270
    %p272 = pneg %p271
    // Predicated region
    $region41: #{vit_forward.12} parent=5 // pred_check
      _
    $region42: #{vit_forward.12} parent=5 // pred_check_branch
      %274 = sbr.rel (%p271) target = $region44
    $region43: #{vit_forward.12} parent=5 // pred_region
      %s275 = ssub.s32 %s12, 1
      %s276 = smul.u32 2, %s22
      %p277 = scmp.lt.s32.totalorder %s21, 1
      %s278 = scalar_select %p277, %s21, 1
      %p279 = scmp.lt.s32.totalorder %s276, 1
      %s280 = scalar_select %p279, %s276, 1
      %s281 = smul.addr %s278, 2
      %s282 = sadd.s32 %s280, %s281
      %s283 = smul.addr %s282, 4
      %s284 = scalar_lea.vmem %s0, %s283
      %p285 = pneg %p52
      %p286 = pneg %p49
      %p287 = scmp.lt.s32.totalorder %s21, 1
      %s288 = scalar_select %p287, %s21, 1
      %s289 = smul.addr %s288, 2
      %s290 = smul.addr %s289, 4
      %s291 = scalar_lea.vmem %s1, %s290
      %p292 = pneg %p78
      %p293 = pneg %p75
      %p294 = scmp.lt.s32.totalorder %s21, 1
      %s295 = scalar_select %p294, %s21, 1
      %s296 = smul.addr %s295, 2
      %s297 = smul.addr %s296, 4
      %s298 = scalar_lea.vmem %s2, %s297
      %p299 = pneg %p104
      %p300 = pneg %p101
      %p301 = pneg %p125
      %p302 = pneg %p122
      %p303 = pneg %p146
      %p304 = pneg %p143
      %s305 = smul.u32 2, %s22
      %p306 = scmp.lt.s32.totalorder %s21, 1
      %s307 = scalar_select %p306, %s21, 1
      %p308 = scmp.lt.s32.totalorder %s305, 1
      %s309 = scalar_select %p308, %s305, 1
      %s310 = smul.addr %s307, 2
      %s311 = sadd.s32 %s309, %s310
      %s312 = smul.addr %s311, 8
      %s313 = scalar_lea.vmem %s5, %s312
      %p314 = pneg %p174
      %p315 = pneg %p171
      %p316 = pneg %p202
      %p317 = pneg %p199
      %s318 = smul.u32 2, %s22
      %p319 = scmp.lt.s32.totalorder %s21, 1
      %s320 = scalar_select %p319, %s21, 1
      %p321 = scmp.lt.s32.totalorder %s318, 1
      %s322 = scalar_select %p321, %s318, 1
      %s323 = smul.addr %s320, 2
      %s324 = sadd.s32 %s322, %s323
      %s325 = smul.addr %s324, 8
      %s326 = scalar_lea.vmem %s6, %s325
      %s327 = smul.u32 2, %s22
      %p328 = scmp.lt.s32.totalorder %s21, 1
      %s329 = scalar_select %p328, %s21, 1
      %p330 = scmp.lt.s32.totalorder %s327, 1
      %s331 = scalar_select %p330, %s327, 1
      %s332 = smul.addr %s329, 2
      %s333 = sadd.s32 %s331, %s332
      %s334 = smul.addr %s333, 4
      %s335 = scalar_lea.vmem %s0, %s334
      %s336 = smul.u32 2, %s22
      %p337 = scmp.lt.s32.totalorder %s21, 1
      %s338 = scalar_select %p337, %s21, 1
      %s339 = smul.addr %s338, 2
      %s340 = smul.addr %s339, 4
      %s341 = scalar_lea.vmem %s1, %s340
      %p342 = scmp.lt.s32.totalorder %s21, 1
      %s343 = scalar_select %p342, %s21, 1
      %s344 = smul.addr %s343, 2
      %s345 = smul.addr %s344, 4
      %s346 = scalar_lea.vmem %s2, %s345
      %s347 = smul.u32 2, %s22
      %p348 = scmp.lt.s32.totalorder %s21, 1
      %s349 = scalar_select %p348, %s21, 1
      %p350 = scmp.lt.s32.totalorder %s347, 1
      %s351 = scalar_select %p350, %s347, 1
      %s352 = smul.addr %s349, 2
      %s353 = sadd.s32 %s351, %s352
      %s354 = smul.addr %s353, 8
      %s355 = scalar_lea.vmem %s5, %s354
      %s356 = smul.u32 2, %s22
      %s357 = smul.u32 2, %s22
      %p358 = scmp.lt.s32.totalorder %s21, 1
      %s359 = scalar_select %p358, %s21, 1
      %p360 = scmp.lt.s32.totalorder %s357, 1
      %s361 = scalar_select %p360, %s357, 1
      %s362 = smul.addr %s359, 2
      %s363 = sadd.s32 %s361, %s362
      %s364 = smul.addr %s363, 8
      %s365 = scalar_lea.vmem %s6, %s364
      %s366 = smul.u32 2, %s22
      %v368 = vld [vmem:[%s335] sm:$0xf]
      %v369 = vld [vmem:[%s335 + $0x4] sm:$0xf]
      %v370 = vld [vmem:[%s341] sm:$0xf]
      %v371 = vld [vmem:[%s341 + $0x4] sm:$0xf]
      %v372 = vld [vmem:[%s346] sm:$0xf]
      %v373 = vld [vmem:[%s346 + $0x4] sm:$0xf]
      %v376 = vunpack.c.l.b16 %v368
      %v377 = vunpack.c.l.b16 %v369
      %v378 = vpack.c.b16 %v377, %v376
      %v381 = vunpack.c.l.b16 %v370
      %v382 = vunpack.c.l.b16 %v371
      %v383 = vpack.c.b16 %v382, %v381
      %vm384 = vcmask 64512
      %v386 = vsel %vm384, %v378, 0
      %v389 = vsel %vm384, %v383, 0
      %391 = vmatprep.subr.bf16.mxu0 0
      %392 = vmatpush1.bf16.xpose.msra.mxu0 %v389
      %393 = vmatprep.subr.bf16.mxu0 0
      %394 = vmatpush1.bf16.xpose.msra.mxu0 0
      %395 = vmatprep.subr.bf16.mxu0 0
      %396 = vmatpush1.bf16.xpose.msra.mxu0 0
      %397 = vmatprep.subr.bf16.mxu0 0
      %398 = vmatpush1.bf16.xpose.msra.mxu0 0
      %399 = vmatprep.subr.bf16.mxu0 0
      %400 = vmatpush1.bf16.xpose.msra.mxu0 0
      %401 = vmatprep.subr.bf16.mxu0 0
      %402 = vmatpush1.bf16.xpose.msra.mxu0 0
      %403 = vmatprep.subr.bf16.mxu0 0
      %404 = vmatpush1.bf16.xpose.msra.mxu0 0
      %405 = vmatprep.subr.bf16.mxu0 0
      %406 = vmatpush1.bf16.xpose.msra.mxu0 0
      %407 = vmatprep.subr.bf16.mxu0 0
      %408 = vmatpush1.bf16.xpose.msra.mxu0 0
      %409 = vmatprep.subr.bf16.mxu0 0
      %410 = vmatpush1.bf16.xpose.msra.mxu0 0
      %411 = vmatprep.subr.bf16.mxu0 0
      %412 = vmatpush1.bf16.xpose.msra.mxu0 0
      %413 = vmatprep.subr.bf16.mxu0 0
      %414 = vmatpush1.bf16.xpose.msra.mxu0 0
      %415 = vmatprep.subr.bf16.mxu0 0
      %416 = vmatpush1.bf16.xpose.msra.mxu0 0
      %417 = vmatprep.subr.bf16.mxu0 0
      %418 = vmatpush1.bf16.xpose.msra.mxu0 0
      %419 = vmatprep.subr.bf16.mxu0 0
      %420 = vmatpush1.bf16.xpose.msra.mxu0 0
      %421 = vmatprep.subr.bf16.mxu0 0
      %422 = vmatpush1.bf16.xpose.msra.mxu0 0
      %423 = vmatprep.mubr.bf16.mxu0 0
      %424 = vmatmul.mubr.bf16.gmra.mrb[0].mxu0 %v386
      %v425 = vpop.f32.mrb[0].mxu0
      %v426 = vadd.f32 0.0, %v425
      %v427 = vpop.f32.mrb[0].mxu0
      %v428 = vpop.f32.mrb[0].mxu0
      %v429 = vadd.f32 0.0, %v428
      %v430 = vpop.f32.mrb[0].mxu0
      %431 = vdwg.mxu0
      %vm432 = vcmask 130048
      %v433 = vsel %vm432, %v426, -inf
      %434 = vmax.xlane.f32.xlu0 %v433
      %v435 = vpop.xlane.xlu0 %434
      %v436 = vsel %vm432, %v429, -inf
      %437 = vmax.xlane.f32.xlu0 %v436
      %v438 = vpop.xlane.xlu0 %437
      %v439 = vsub.f32 %v426, %v435
      %v440 = vsub.f32 %v429, %v438
      %v441 = vmul.f32 %v439, 1.442695
      %v442 = vpow.pop %v441
      %v443 = vmul.f32 %v440, 1.442695
      %v444 = vpow.pop %v443
      %v445 = vsel %vm432, %v442, 0.0
      %446 = vadd.xlane.f32.xlu0 %v445
      %v447 = vpop.xlane.xlu0 %446
      %v448 = vsel %vm432, %v444, 0.0
      %449 = vadd.xlane.f32.xlu0 %v448
      %v450 = vpop.xlane.xlu0 %449
      %v451 = vrcp.pop %v447
      %v452 = vrcp.pop %v450
      %v453 = vmul.f32 %v442, %v451
      %v454 = vmul.f32 %v444, %v452
      %v455 = vpack.c.bf16 %v454, %v453
      %v458 = vunpack.c.l.b16 %v372
      %v459 = vunpack.c.l.b16 %v373
      %v460 = vpack.c.b16 %v459, %v458
      %v463 = vsel %vm432, %v455, 0
      %465 = vmatprep.subr.bf16.mxu0 0
      %466 = vmatpush1.bf16.msra.mxu0 %v460
      %467 = vmatprep.subr.bf16.mxu0 0
      %468 = vmatpush1.bf16.msra.mxu0 0
      %469 = vmatprep.subr.bf16.mxu0 0
      %470 = vmatpush1.bf16.msra.mxu0 0
      %471 = vmatprep.subr.bf16.mxu0 0
      %472 = vmatpush1.bf16.msra.mxu0 0
      %473 = vmatprep.subr.bf16.mxu0 0
      %474 = vmatpush1.bf16.msra.mxu0 0
      %475 = vmatprep.subr.bf16.mxu0 0
      %476 = vmatpush1.bf16.msra.mxu0 0
      %477 = vmatprep.subr.bf16.mxu0 0
      %478 = vmatpush1.bf16.msra.mxu0 0
      %479 = vmatprep.subr.bf16.mxu0 0
      %480 = vmatpush1.bf16.msra.mxu0 0
      %481 = vmatprep.subr.bf16.mxu0 0
      %482 = vmatpush1.bf16.msra.mxu0 0
      %483 = vmatprep.subr.bf16.mxu0 0
      %484 = vmatpush1.bf16.msra.mxu0 0
      %485 = vmatprep.subr.bf16.mxu0 0
      %486 = vmatpush1.bf16.msra.mxu0 0
      %487 = vmatprep.subr.bf16.mxu0 0
      %488 = vmatpush1.bf16.msra.mxu0 0
      %489 = vmatprep.subr.bf16.mxu0 0
      %490 = vmatpush1.bf16.msra.mxu0 0
      %491 = vmatprep.subr.bf16.mxu0 0
      %492 = vmatpush1.bf16.msra.mxu0 0
      %493 = vmatprep.subr.bf16.mxu0 0
      %494 = vmatpush1.bf16.msra.mxu0 0
      %495 = vmatprep.subr.bf16.mxu0 0
      %496 = vmatpush1.bf16.msra.mxu0 0
      %497 = vmatprep.mubr.bf16.mxu0 0
      %498 = vmatmul.mubr.bf16.gmra.mrb[0].mxu0 %v463
      %v499 = vpop.f32.mrb[0].mxu0
      %v500 = vadd.f32 0.0, %v499
      %v501 = vpop.f32.mrb[0].mxu0
      %v502 = vpop.f32.mrb[0].mxu0
      %v503 = vadd.f32 0.0, %v502
      %v504 = vpop.f32.mrb[0].mxu0
      %505 = vdwg.mxu0
      %v506 = vpack.c.bf16 %v503, %v500
      %507 = vst.msk [vmem:[#allocation2] sm:$0xff] %vm384, %v506
      %v508 = vld [vmem:[%s335] sm:$0xf]
      %v509 = vld [vmem:[%s335 + $0x4] sm:$0xf]
      %v510 = vld [vmem:[%s341] sm:$0xf]
      %v511 = vld [vmem:[%s341 + $0x4] sm:$0xf]
      %v512 = vld [vmem:[%s346] sm:$0xf]
      %v513 = vld [vmem:[%s346 + $0x4] sm:$0xf]
      %v516 = vunpack.c.l.b16 %v508
      %v517 = vunpack.c.l.b16 %v509
      %v518 = vpack.c.b16 %v517, %v516
      %519 = vrot.lane.b32.xlu0 %v518, 120
      %v520 = vpop.permute.xlu0 %519
      %v523 = vunpack.c.l.b16 %v510
      %v524 = vunpack.c.l.b16 %v511
      %v525 = vpack.c.b16 %v524, %v523
      %526 = vrot.lane.b32.xlu0 %v525, 120
      %v527 = vpop.permute.xlu0 %526
      %v529 = vsel %vm384, %v520, 0
      %v532 = vsel %vm384, %v527, 0
      %534 = vmatprep.subr.bf16.mxu0 0
      %535 = vmatpush1.bf16.xpose.msra.mxu0 %v532
      %536 = vmatprep.subr.bf16.mxu0 0
      %537 = vmatpush1.bf16.xpose.msra.mxu0 0
      %538 = vmatprep.subr.bf16.mxu0 0
      %539 = vmatpush1.bf16.xpose.msra.mxu0 0
      %540 = vmatprep.subr.bf16.mxu0 0
      %541 = vmatpush1.bf16.xpose.msra.mxu0 0
      %542 = vmatprep.subr.bf16.mxu0 0
      %543 = vmatpush1.bf16.xpose.msra.mxu0 0
      %544 = vmatprep.subr.bf16.mxu0 0
      %545 = vmatpush1.bf16.xpose.msra.mxu0 0
      %546 = vmatprep.subr.bf16.mxu0 0
      %547 = vmatpush1.bf16.xpose.msra.mxu0 0
      %548 = vmatprep.subr.bf16.mxu0 0
      %549 = vmatpush1.bf16.xpose.msra.mxu0 0
      %550 = vmatprep.subr.bf16.mxu0 0
      %551 = vmatpush1.bf16.xpose.msra.mxu0 0
      %552 = vmatprep.subr.bf16.mxu0 0
      %553 = vmatpush1.bf16.xpose.msra.mxu0 0
      %554 = vmatprep.subr.bf16.mxu0 0
      %555 = vmatpush1.bf16.xpose.msra.mxu0 0
      %556 = vmatprep.subr.bf16.mxu0 0
      %557 = vmatpush1.bf16.xpose.msra.mxu0 0
      %558 = vmatprep.subr.bf16.mxu0 0
      %559 = vmatpush1.bf16.xpose.msra.mxu0 0
      %560 = vmatprep.subr.bf16.mxu0 0
      %561 = vmatpush1.bf16.xpose.msra.mxu0 0
      %562 = vmatprep.subr.bf16.mxu0 0
      %563 = vmatpush1.bf16.xpose.msra.mxu0 0
      %564 = vmatprep.subr.bf16.mxu0 0
      %565 = vmatpush1.bf16.xpose.msra.mxu0 0
      %566 = vmatprep.mubr.bf16.mxu0 0
      %567 = vmatmul.mubr.bf16.gmra.mrb[0].mxu0 %v529
      %v568 = vpop.f32.mrb[0].mxu0
      %v569 = vadd.f32 0.0, %v568
      %v570 = vpop.f32.mrb[0].mxu0
      %v571 = vpop.f32.mrb[0].mxu0
      %v572 = vadd.f32 0.0, %v571
      %v573 = vpop.f32.mrb[0].mxu0
      %574 = vdwg.mxu0
      %v575 = vsel %vm432, %v569, -inf
      %576 = vmax.xlane.f32.xlu0 %v575
      %v577 = vpop.xlane.xlu0 %576
      %v578 = vsel %vm432, %v572, -inf
      %579 = vmax.xlane.f32.xlu0 %v578
      %v580 = vpop.xlane.xlu0 %579
      %v581 = vsub.f32 %v569, %v577
      %v582 = vsub.f32 %v572, %v580
      %v583 = vmul.f32 %v581, 1.442695
      %v584 = vpow.pop %v583
      %v585 = vmul.f32 %v582, 1.442695
      %v586 = vpow.pop %v585
      %v587 = vsel %vm432, %v584, 0.0
      %588 = vadd.xlane.f32.xlu0 %v587
      %v589 = vpop.xlane.xlu0 %588
      %v590 = vsel %vm432, %v586, 0.0
      %591 = vadd.xlane.f32.xlu0 %v590
      %v592 = vpop.xlane.xlu0 %591
      %v593 = vrcp.pop %v589
      %v594 = vrcp.pop %v592
      %v595 = vmul.f32 %v584, %v593
      %v596 = vmul.f32 %v586, %v594
      %v597 = vpack.c.bf16 %v596, %v595
      %v600 = vunpack.c.l.b16 %v512
      %v601 = vunpack.c.l.b16 %v513
      %v602 = vpack.c.b16 %v601, %v600
      %603 = vrot.lane.b32.xlu0 %v602, 120
      %v604 = vpop.permute.xlu0 %603
      %v607 = vsel %vm432, %v597, 0
      %609 = vmatprep.subr.bf16.mxu0 0
      %610 = vmatpush1.bf16.msra.mxu0 %v604
      %611 = vmatprep.subr.bf16.mxu0 0
      %612 = vmatpush1.bf16.msra.mxu0 0
      %613 = vmatprep.subr.bf16.mxu0 0
      %614 = vmatpush1.bf16.msra.mxu0 0
      %615 = vmatprep.subr.bf16.mxu0 0
      %616 = vmatpush1.bf16.msra.mxu0 0
      %617 = vmatprep.subr.bf16.mxu0 0
      %618 = vmatpush1.bf16.msra.mxu0 0
      %619 = vmatprep.subr.bf16.mxu0 0
      %620 = vmatpush1.bf16.msra.mxu0 0
      %621 = vmatprep.subr.bf16.mxu0 0
      %622 = vmatpush1.bf16.msra.mxu0 0
      %623 = vmatprep.subr.bf16.mxu0 0
      %624 = vmatpush1.bf16.msra.mxu0 0
      %625 = vmatprep.subr.bf16.mxu0 0
      %626 = vmatpush1.bf16.msra.mxu0 0
      %627 = vmatprep.subr.bf16.mxu0 0
      %628 = vmatpush1.bf16.msra.mxu0 0
      %629 = vmatprep.subr.bf16.mxu0 0
      %630 = vmatpush1.bf16.msra.mxu0 0
      %631 = vmatprep.subr.bf16.mxu0 0
      %632 = vmatpush1.bf16.msra.mxu0 0
      %633 = vmatprep.subr.bf16.mxu0 0
      %634 = vmatpush1.bf16.msra.mxu0 0
      %635 = vmatprep.subr.bf16.mxu0 0
      %636 = vmatpush1.bf16.msra.mxu0 0
      %637 = vmatprep.subr.bf16.mxu0 0
      %638 = vmatpush1.bf16.msra.mxu0 0
      %639 = vmatprep.subr.bf16.mxu0 0
      %640 = vmatpush1.bf16.msra.mxu0 0
      %641 = vmatprep.mubr.bf16.mxu0 0
      %642 = vmatmul.mubr.bf16.gmra.mrb[0].mxu0 %v607
      %v643 = vpop.f32.mrb[0].mxu0
      %v644 = vadd.f32 0.0, %v643
      %v645 = vpop.f32.mrb[0].mxu0
      %v646 = vpop.f32.mrb[0].mxu0
      %v647 = vadd.f32 0.0, %v646
      %v648 = vpop.f32.mrb[0].mxu0
      %649 = vdwg.mxu0
      %v650 = vpack.c.bf16 %v647, %v644
      %652 = vrot.lane.b32.xlu0 %v650, 8
      %v653 = vpop.permute.xlu0 %652
      %vm655 = vcmask 130112
      %656 = vst.msk [vmem:[#allocation2] sm:$0xff] %vm655, %v653
      %v657 = vld [vmem:[%s335] sm:$0xf]
      %v658 = vld [vmem:[%s335 + $0x4] sm:$0xf]
      %v659 = vld [vmem:[%s341] sm:$0xf]
      %v660 = vld [vmem:[%s341 + $0x4] sm:$0xf]
      %v661 = vld [vmem:[%s346] sm:$0xf]
      %v662 = vld [vmem:[%s346 + $0x4] sm:$0xf]
      %v665 = vunpack.c.l.b16 %v657
      %v666 = vunpack.c.l.b16 %v658
      %v667 = vpack.c.b16 %v666, %v665
      %668 = vrot.lane.b32.xlu0 %v667, 112
      %v669 = vpop.permute.xlu0 %668
      %v672 = vunpack.c.l.b16 %v659
      %v673 = vunpack.c.l.b16 %v660
      %v674 = vpack.c.b16 %v673, %v672
      %675 = vrot.lane.b32.xlu0 %v674, 112
      %v676 = vpop.permute.xlu0 %675
      %v678 = vsel %vm384, %v669, 0
      %v681 = vsel %vm384, %v676, 0
      %683 = vmatprep.subr.bf16.mxu0 0
      %684 = vmatpush1.bf16.xpose.msra.mxu0 %v681
      %685 = vmatprep.subr.bf16.mxu0 0
      %686 = vmatpush1.bf16.xpose.msra.mxu0 0
      %687 = vmatprep.subr.bf16.mxu0 0
      %688 = vmatpush1.bf16.xpose.msra.mxu0 0
      %689 = vmatprep.subr.bf16.mxu0 0
      %690 = vmatpush1.bf16.xpose.msra.mxu0 0
      %691 = vmatprep.subr.bf16.mxu0 0
      %692 = vmatpush1.bf16.xpose.msra.mxu0 0
      %693 = vmatprep.subr.bf16.mxu0 0
      %694 = vmatpush1.bf16.xpose.msra.mxu0 0
      %695 = vmatprep.subr.bf16.mxu0 0
      %696 = vmatpush1.bf16.xpose.msra.mxu0 0
      %697 = vmatprep.subr.bf16.mxu0 0
      %698 = vmatpush1.bf16.xpose.msra.mxu0 0
      %699 = vmatprep.subr.bf16.mxu0 0
      %700 = vmatpush1.bf16.xpose.msra.mxu0 0
      %701 = vmatprep.subr.bf16.mxu0 0
      %702 = vmatpush1.bf16.xpose.msra.mxu0 0
      %703 = vmatprep.subr.bf16.mxu0 0
      %704 = vmatpush1.bf16.xpose.msra.mxu0 0
      %705 = vmatprep.subr.bf16.mxu0 0
      %706 = vmatpush1.bf16.xpose.msra.mxu0 0
      %707 = vmatprep.subr.bf16.mxu0 0
      %708 = vmatpush1.bf16.xpose.msra.mxu0 0
      %709 = vmatprep.subr.bf16.mxu0 0
      %710 = vmatpush1.bf16.xpose.msra.mxu0 0
      %711 = vmatprep.subr.bf16.mxu0 0
      %712 = vmatpush1.bf16.xpose.msra.mxu0 0
      %713 = vmatprep.subr.bf16.mxu0 0
      %714 = vmatpush1.bf16.xpose.msra.mxu0 0
      %715 = vmatprep.mubr.bf16.mxu0 0
      %716 = vmatmul.mubr.bf16.gmra.mrb[0].mxu0 %v678
      %v717 = vpop.f32.mrb[0].mxu0
      %v718 = vadd.f32 0.0, %v717
      %v719 = vpop.f32.mrb[0].mxu0
      %v720 = vpop.f32.mrb[0].mxu0
      %v721 = vadd.f32 0.0, %v720
      %v722 = vpop.f32.mrb[0].mxu0
      %723 = vdwg.mxu0
      %v724 = vsel %vm432, %v718, -inf
      %725 = vmax.xlane.f32.xlu0 %v724
      %v726 = vpop.xlane.xlu0 %725
      %v727 = vsel %vm432, %v721, -inf
      %728 = vmax.xlane.f32.xlu0 %v727
      %v729 = vpop.xlane.xlu0 %728
      %v730 = vsub.f32 %v718, %v726
      %v731 = vsub.f32 %v721, %v729
      %v732 = vmul.f32 %v730, 1.442695
      %v733 = vpow.pop %v732
      %v734 = vmul.f32 %v731, 1.442695
      %v735 = vpow.pop %v734
      %v736 = vsel %vm432, %v733, 0.0
      %737 = vadd.xlane.f32.xlu0 %v736
      %v738 = vpop.xlane.xlu0 %737
      %v739 = vsel %vm432, %v735, 0.0
      %740 = vadd.xlane.f32.xlu0 %v739
      %v741 = vpop.xlane.xlu0 %740
      %v742 = vrcp.pop %v738
      %v743 = vrcp.pop %v741
      %v744 = vmul.f32 %v733, %v742
      %v745 = vmul.f32 %v735, %v743
      %v746 = vpack.c.bf16 %v745, %v744
      %v749 = vunpack.c.l.b16 %v661
      %v750 = vunpack.c.l.b16 %v662
      %v751 = vpack.c.b16 %v750, %v749
      %752 = vrot.lane.b32.xlu0 %v751, 112
      %v753 = vpop.permute.xlu0 %752
      %v756 = vsel %vm432, %v746, 0
      %758 = vmatprep.subr.bf16.mxu0 0
      %759 = vmatpush1.bf16.msra.mxu0 %v753
      %760 = vmatprep.subr.bf16.mxu0 0
      %761 = vmatpush1.bf16.msra.mxu0 0
      %762 = vmatprep.subr.bf16.mxu0 0
      %763 = vmatpush1.bf16.msra.mxu0 0
      %764 = vmatprep.subr.bf16.mxu0 0
      %765 = vmatpush1.bf16.msra.mxu0 0
      %766 = vmatprep.subr.bf16.mxu0 0
      %767 = vmatpush1.bf16.msra.mxu0 0
      %768 = vmatprep.subr.bf16.mxu0 0
      %769 = vmatpush1.bf16.msra.mxu0 0
      %770 = vmatprep.subr.bf16.mxu0 0
      %771 = vmatpush1.bf16.msra.mxu0 0
      %772 = vmatprep.subr.bf16.mxu0 0
      %773 = vmatpush1.bf16.msra.mxu0 0
      %774 = vmatprep.subr.bf16.mxu0 0
      %775 = vmatpush1.bf16.msra.mxu0 0
      %776 = vmatprep.subr.bf16.mxu0 0
      %777 = vmatpush1.bf16.msra.mxu0 0
      %778 = vmatprep.subr.bf16.mxu0 0
      %779 = vmatpush1.bf16.msra.mxu0 0
      %780 = vmatprep.subr.bf16.mxu0 0
      %781 = vmatpush1.bf16.msra.mxu0 0
      %782 = vmatprep.subr.bf16.mxu0 0
      %783 = vmatpush1.bf16.msra.mxu0 0
      %784 = vmatprep.subr.bf16.mxu0 0
      %785 = vmatpush1.bf16.msra.mxu0 0
      %786 = vmatprep.subr.bf16.mxu0 0
      %787 = vmatpush1.bf16.msra.mxu0 0
      %788 = vmatprep.subr.bf16.mxu0 0
      %789 = vmatpush1.bf16.msra.mxu0 0
      %790 = vmatprep.mubr.bf16.mxu0 0
      %791 = vmatmul.mubr.bf16.gmra.mrb[0].mxu0 %v756
      %v792 = vpop.f32.mrb[0].mxu0
      %v793 = vadd.f32 0.0, %v792
      %v794 = vpop.f32.mrb[0].mxu0
      %v795 = vpop.f32.mrb[0].mxu0
      %v796 = vadd.f32 0.0, %v795
      %v797 = vpop.f32.mrb[0].mxu0
      %798 = vdwg.mxu0
      %v799 = vpack.c.bf16 %v796, %v793
      %801 = vrot.lane.b32.xlu0 %v799, 16
      %v802 = vpop.permute.xlu0 %801
      %vm804 = vcmask 195712
      %805 = vst.msk [vmem:[#allocation2] sm:$0xff] %vm804, %v802
      %v806 = vld [vmem:[%s335] sm:$0xf]
      %v807 = vld [vmem:[%s335 + $0x4] sm:$0xf]
      %v808 = vld [vmem:[%s341] sm:$0xf]
      %v809 = vld [vmem:[%s341 + $0x4] sm:$0xf]
      %v810 = vld [vmem:[%s346] sm:$0xf]
      %v811 = vld [vmem:[%s346 + $0x4] sm:$0xf]
      %v814 = vunpack.c.l.b16 %v806
      %v815 = vunpack.c.l.b16 %v807
      %v816 = vpack.c.b16 %v815, %v814
      %817 = vrot.lane.b32.xlu0 %v816, 104
      %v818 = vpop.permute.xlu0 %817
      %v821 = vunpack.c.l.b16 %v808
      %v822 = vunpack.c.l.b16 %v809
      %v823 = vpack.c.b16 %v822, %v821
      %824 = vrot.lane.b32.xlu0 %v823, 104
      %v825 = vpop.permute.xlu0 %824
      %v827 = vsel %vm384, %v818, 0
      %v830 = vsel %vm384, %v825, 0
      %832 = vmatprep.subr.bf16.mxu0 0
      %833 = vmatpush1.bf16.xpose.msra.mxu0 %v830
      %834 = vmatprep.subr.bf16.mxu0 0
      %835 = vmatpush1.bf16.xpose.msra.mxu0 0
      %836 = vmatprep.subr.bf16.mxu0 0
      %837 = vmatpush1.bf16.xpose.msra.mxu0 0
      %838 = vmatprep.subr.bf16.mxu0 0
      %839 = vmatpush1.bf16.xpose.msra.mxu0 0
      %840 = vmatprep.subr.bf16.mxu0 0
      %841 = vmatpush1.bf16.xpose.msra.mxu0 0
      %842 = vmatprep.subr.bf16.mxu0 0
      %843 = vmatpush1.bf16.xpose.msra.mxu0 0
      %844 = vmatprep.subr.bf16.mxu0 0
      %845 = vmatpush1.bf16.xpose.msra.mxu0 0
      %846 = vmatprep.subr.bf16.mxu0 0
      %847 = vmatpush1.bf16.xpose.msra.mxu0 0
      %848 = vmatprep.subr.bf16.mxu0 0
      %849 = vmatpush1.bf16.xpose.msra.mxu0 0
      %850 = vmatprep.subr.bf16.mxu0 0
      %851 = vmatpush1.bf16.xpose.msra.mxu0 0
      %852 = vmatprep.subr.bf16.mxu0 0
      %853 = vmatpush1.bf16.xpose.msra.mxu0 0
      %854 = vmatprep.subr.bf16.mxu0 0
      %855 = vmatpush1.bf16.xpose.msra.mxu0 0
      %856 = vmatprep.subr.bf16.mxu0 0
      %857 = vmatpush1.bf16.xpose.msra.mxu0 0
      %858 = vmatprep.subr.bf16.mxu0 0
      %859 = vmatpush1.bf16.xpose.msra.mxu0 0
      %860 = vmatprep.subr.bf16.mxu0 0
      %861 = vmatpush1.bf16.xpose.msra.mxu0 0
      %862 = vmatprep.subr.bf16.mxu0 0
      %863 = vmatpush1.bf16.xpose.msra.mxu0 0
      %864 = vmatprep.mubr.bf16.mxu0 0
      %865 = vmatmul.mubr.bf16.gmra.mrb[0].mxu0 %v827
      %v866 = vpop.f32.mrb[0].mxu0
      %v867 = vadd.f32 0.0, %v866
      %v868 = vpop.f32.mrb[0].mxu0
      %v869 = vpop.f32.mrb[0].mxu0
      %v870 = vadd.f32 0.0, %v869
      %v871 = vpop.f32.mrb[0].mxu0
      %872 = vdwg.mxu0
      %v873 = vsel %vm432, %v867, -inf
      %874 = vmax.xlane.f32.xlu0 %v873
      %v875 = vpop.xlane.xlu0 %874
      %v876 = vsel %vm432, %v870, -inf
      %877 = vmax.xlane.f32.xlu0 %v876
      %v878 = vpop.xlane.xlu0 %877
      %v879 = vsub.f32 %v867, %v875
      %v880 = vsub.f32 %v870, %v878
      %v881 = vmul.f32 %v879, 1.442695
      %v882 = vpow.pop %v881
      %v883 = vmul.f32 %v880, 1.442695
      %v884 = vpow.pop %v883
      %v885 = vsel %vm432, %v882, 0.0
      %886 = vadd.xlane.f32.xlu0 %v885
      %v887 = vpop.xlane.xlu0 %886
      %v888 = vsel %vm432, %v884, 0.0
      %889 = vadd.xlane.f32.xlu0 %v888
      %v890 = vpop.xlane.xlu0 %889
      %v891 = vrcp.pop %v887
      %v892 = vrcp.pop %v890
      %v893 = vmul.f32 %v882, %v891
      %v894 = vmul.f32 %v884, %v892
      %v895 = vpack.c.bf16 %v894, %v893
      %v898 = vunpack.c.l.b16 %v810
      %v899 = vunpack.c.l.b16 %v811
      %v900 = vpack.c.b16 %v899, %v898
      %901 = vrot.lane.b32.xlu0 %v900, 104
      %v902 = vpop.permute.xlu0 %901
      %v905 = vsel %vm432, %v895, 0
      %907 = vmatprep.subr.bf16.mxu0 0
      %908 = vmatpush1.bf16.msra.mxu0 %v902
      %909 = vmatprep.subr.bf16.mxu0 0
      %910 = vmatpush1.bf16.msra.mxu0 0
      %911 = vmatprep.subr.bf16.mxu0 0
      %912 = vmatpush1.bf16.msra.mxu0 0
      %913 = vmatprep.subr.bf16.mxu0 0
      %914 = vmatpush1.bf16.msra.mxu0 0
      %915 = vmatprep.subr.bf16.mxu0 0
      %916 = vmatpush1.bf16.msra.mxu0 0
      %917 = vmatprep.subr.bf16.mxu0 0
      %918 = vmatpush1.bf16.msra.mxu0 0
      %919 = vmatprep.subr.bf16.mxu0 0
      %920 = vmatpush1.bf16.msra.mxu0 0
      %921 = vmatprep.subr.bf16.mxu0 0
      %922 = vmatpush1.bf16.msra.mxu0 0
      %923 = vmatprep.subr.bf16.mxu0 0
      %924 = vmatpush1.bf16.msra.mxu0 0
      %925 = vmatprep.subr.bf16.mxu0 0
      %926 = vmatpush1.bf16.msra.mxu0 0
      %927 = vmatprep.subr.bf16.mxu0 0
      %928 = vmatpush1.bf16.msra.mxu0 0
      %929 = vmatprep.subr.bf16.mxu0 0
      %930 = vmatpush1.bf16.msra.mxu0 0
      %931 = vmatprep.subr.bf16.mxu0 0
      %932 = vmatpush1.bf16.msra.mxu0 0
      %933 = vmatprep.subr.bf16.mxu0 0
      %934 = vmatpush1.bf16.msra.mxu0 0
      %935 = vmatprep.subr.bf16.mxu0 0
      %936 = vmatpush1.bf16.msra.mxu0 0
      %937 = vmatprep.subr.bf16.mxu0 0
      %938 = vmatpush1.bf16.msra.mxu0 0
      %939 = vmatprep.mubr.bf16.mxu0 0
      %940 = vmatmul.mubr.bf16.gmra.mrb[0].mxu0 %v905
      %v941 = vpop.f32.mrb[0].mxu0
      %v942 = vadd.f32 0.0, %v941
      %v943 = vpop.f32.mrb[0].mxu0
      %v944 = vpop.f32.mrb[0].mxu0
      %v945 = vadd.f32 0.0, %v944
      %v946 = vpop.f32.mrb[0].mxu0
      %947 = vdwg.mxu0
      %v948 = vpack.c.bf16 %v945, %v942
      %950 = vrot.lane.b32.xlu0 %v948, 24
      %v951 = vpop.permute.xlu0 %950
      %vm953 = vcmask 261312
      %954 = vst.msk [vmem:[#allocation2] sm:$0xff] %vm953, %v951
      %v955 = vld [vmem:[#allocation2] sm:$0xff]
      %v956 = vld [vmem:[%s3] sm:$0xf]
      %v957 = vld [vmem:[%s3 + $0x4] sm:$0xf]
      %v958 = vld [vmem:[%s3 + $0x8] sm:$0xf]
      %v959 = vld [vmem:[%s3 + $0xc] sm:$0xf]
      %v960 = vld [vmem:[%s4] sm:$0x1]
      %v962 = vlaneseq
      %v963 = vshrl.u32 %v962, 7
      %v964 = vsub.s32 0, %v963
      %v965 = vrot.slane %v960, %v964
      %v971 = vunpack.c.l.b16 %v956
      %v972 = vunpack.c.l.b16 %v957
      %v973 = vunpack.c.l.b16 %v958
      %v974 = vunpack.c.l.b16 %v959
      %v975 = vpack.c.b16 %v972, %v971
      %v976 = vpack.c.b16 %v974, %v973
      %vm979 = vcmask 261120
      %v981 = vsel %vm979, %v955, 0
      %983 = vmatprep.subr.bf16.mxu0 0
      %984 = vmatpush1.bf16.msra.mxu0 %v975
      %985 = vmatprep.subr.bf16.mxu0 0
      %986 = vmatpush1.bf16.msra.mxu0 %v976
      %987 = vmatprep.subr.bf16.mxu0 0
      %988 = vmatpush1.bf16.msra.mxu0 0
      %989 = vmatprep.subr.bf16.mxu0 0
      %990 = vmatpush1.bf16.msra.mxu0 0
      %991 = vmatprep.subr.bf16.mxu0 0
      %992 = vmatpush1.bf16.msra.mxu0 0
      %993 = vmatprep.subr.bf16.mxu0 0
      %994 = vmatpush1.bf16.msra.mxu0 0
      %995 = vmatprep.subr.bf16.mxu0 0
      %996 = vmatpush1.bf16.msra.mxu0 0
      %997 = vmatprep.subr.bf16.mxu0 0
      %998 = vmatpush1.bf16.msra.mxu0 0
      %999 = vmatprep.subr.bf16.mxu0 0
      %1000 = vmatpush1.bf16.msra.mxu0 0
      %1001 = vmatprep.subr.bf16.mxu0 0
      %1002 = vmatpush1.bf16.msra.mxu0 0
      %1003 = vmatprep.subr.bf16.mxu0 0
      %1004 = vmatpush1.bf16.msra.mxu0 0
      %1005 = vmatprep.subr.bf16.mxu0 0
      %1006 = vmatpush1.bf16.msra.mxu0 0
      %1007 = vmatprep.subr.bf16.mxu0 0
      %1008 = vmatpush1.bf16.msra.mxu0 0
      %1009 = vmatprep.subr.bf16.mxu0 0
      %1010 = vmatpush1.bf16.msra.mxu0 0
      %1011 = vmatprep.subr.bf16.mxu0 0
      %1012 = vmatpush1.bf16.msra.mxu0 0
      %1013 = vmatprep.subr.bf16.mxu0 0
      %1014 = vmatpush1.bf16.msra.mxu0 0
      %1015 = vmatprep.mubr.bf16.mxu0 0
      %1016 = vmatmul.mubr.bf16.gmra.mrb[0].mxu0 %v981
      %v1017 = vpop.f32.mrb[0].mxu0
      %v1018 = vadd.f32 %v965, %v1017
      %v1019 = vpop.f32.mrb[0].mxu0
      %v1020 = vpop.f32.mrb[0].mxu0
      %v1021 = vadd.f32 %v965, %v1020
      %v1022 = vpop.f32.mrb[0].mxu0
      %1023 = vdwg.mxu0
      %v1024 = vld [vmem:[%s355] sm:$0xff]
      %v1025 = vld [vmem:[%s355 + $0x8] sm:$0xff]
      %v1026 = vadd.f32 %v1024, %v1018
      %v1027 = vadd.f32 %v1025, %v1021
      %1028 = vst.msk [vmem:[%s365] sm:$0xff] %vm979, %v1026
      %1029 = vst.msk [vmem:[%s365 + $0x8] sm:$0xff] %vm979, %v1027
      %s1030 = smul.u32 2, %s22
      %p1031 = scmp.lt.s32.totalorder %s21, 1
      %s1032 = scalar_select %p1031, %s21, 1
      %p1033 = scmp.lt.s32.totalorder %s1030, 1
      %s1034 = scalar_select %p1033, %s1030, 1
      %s1035 = smul.addr %s1032, 2
      %s1036 = sadd.s32 %s1034, %s1035
      %s1037 = smul.addr %s1036, 8
      %s1038 = scalar_lea.vmem %s6, %s1037
      // Predicated region
      $region45: #{vit_forward.12} parent=43 // pred_check
        %p1039 = pneg %p199
      $region46: #{vit_forward.12} parent=43 // pred_check_branch
        %1041 = sbr.rel (%p1039) target = $region48
      $region47: #{vit_forward.12} parent=43 // pred_region
        %s1042 = smul.u32 2, %s22
      $region48: #{vit_forward.12} parent=43 // pred_fallthru
        _
    $region44: #{vit_forward.12} parent=5 // pred_fallthru
      _
    %p1043 = scmp.le.s32.totalorder 2, %s12
    // Predicated region
    $region49: #{vit_forward.12} parent=5 // pred_check
      %p1044 = pneg %p1043
    $region50: #{vit_forward.12} parent=5 // pred_check_branch
      %1046 = sbr.rel (%p1044) target = $region52
    $region51: #{vit_forward.12} parent=5 // pred_region
      %s1047 = ssub.s32 %s12, 2
      // Predicated region
      $region53: #{vit_forward.12} parent=51 // pred_check
        %p1048 = pneg %p205
      $region54: #{vit_forward.12} parent=51 // pred_check_branch
        %1050 = sbr.rel (%p1048) target = $region56
      $region55: #{vit_forward.12} parent=51 // pred_region
        %s1051 = smul.u32 2, %s24
        %p1052 = scmp.lt.s32.totalorder %s23, 1
        %s1053 = scalar_select %p1052, %s23, 1
        %p1054 = scmp.lt.s32.totalorder %s1051, 1
        %s1055 = scalar_select %p1054, %s1051, 1
        %s1056 = smul.addr %s1053, 2
        %s1057 = sadd.s32 %s1055, %s1056
        %s1058 = smul.addr %s1057, 8
        %s1059 = scalar_lea.vmem %s6, %s1058
      $region56: #{vit_forward.12} parent=51 // pred_fallthru
        _
    $region52: #{vit_forward.12} parent=5 // pred_fallthru
      _
  $region6: #{vit_forward.12} parent=0 // loop_footer
    %s16 = sadd.s32 1, %s12
  $region7: #{vit_forward.12} parent=0 // loop_footer_branch
    %11 = sbr.rel target = $region3
  $region8: #{vit_forward.12} parent=0 // loop_exit
    _

// kernel: vit_forward.14
$region0: #{vit_forward.14}
  #allocation0 [shape = 'u32[]', space=smem, size = 0x4, offset = 0x4, fixed_abs, tag = 'smem constant byte address 0x4 - core index']
  #allocation1 [shape = 'u32[144,128]{1,0:T(1,128)}', space=vmem, size = 0x12000, scoped, tag = 'internal scratch']
  %s0 = inlined_call_operand.vmem [shape: bf16[32,128], index: 0, kind: input, shape index: {}]
  %s1 = inlined_call_operand.vmem [shape: bf16[128,32], index: 1, kind: input, shape index: {}]
  %s2 = inlined_call_operand.vmem [shape: f32[1,32], index: 2, kind: input, shape index: {}]
  %s3 = inlined_call_operand.vmem [shape: f32[32,32], index: 3, kind: input, shape index: {}]
  %s4 = inlined_call_operand.vmem [shape: f32[32,32], index: 4, kind: output, shape index: {}]
  %s5 = sld [smem:[#allocation0]]
  $region26: #{vit_forward.14} parent=0
    _
  %s7 = ssub.s32 1, %s5
  %s8 = scalar_select 0, %s7, %s5
  // Predicated region
  $region2: #{vit_forward.14} parent=0 // pred_check
    _
  $region3: #{vit_forward.14} parent=0 // pred_check_branch
    %10 = sbr.rel (0) target = $region5
  $region4: #{vit_forward.14} parent=0 // pred_region
    _
  $region5: #{vit_forward.14} parent=0 // pred_fallthru
    _
  // Predicated region
  $region6: #{vit_forward.14} parent=0 // pred_check
    _
  $region7: #{vit_forward.14} parent=0 // pred_check_branch
    %12 = sbr.rel (0) target = $region9
  $region8: #{vit_forward.14} parent=0 // pred_region
    _
  $region9: #{vit_forward.14} parent=0 // pred_fallthru
    _
  // Predicated region
  $region10: #{vit_forward.14} parent=0 // pred_check
    _
  $region11: #{vit_forward.14} parent=0 // pred_check_branch
    %14 = sbr.rel (0) target = $region13
  $region12: #{vit_forward.14} parent=0 // pred_region
    _
  $region13: #{vit_forward.14} parent=0 // pred_fallthru
    _
  // Predicated region
  $region14: #{vit_forward.14} parent=0 // pred_check
    _
  $region15: #{vit_forward.14} parent=0 // pred_check_branch
    %16 = sbr.rel (0) target = $region17
  $region16: #{vit_forward.14} parent=0 // pred_region
    _
  $region17: #{vit_forward.14} parent=0 // pred_fallthru
    _
  %v18 = vld [vmem:[%s0] sm:$0xf]
  %v19 = vld [vmem:[%s0 + $0x4] sm:$0xf]
  %v20 = vld [vmem:[%s0 + $0x8] sm:$0xf]
  %v21 = vld [vmem:[%s0 + $0xc] sm:$0xf]
  %v22 = vld [vmem:[%s1] sm:$0xf]
  %v23 = vld [vmem:[%s1 + $0x4] sm:$0xf]
  %v24 = vld [vmem:[%s1 + $0x8] sm:$0xf]
  %v25 = vld [vmem:[%s1 + $0xc] sm:$0xf]
  %v26 = vld [vmem:[%s1 + $0x10] sm:$0xf]
  %v27 = vld [vmem:[%s1 + $0x14] sm:$0xf]
  %v28 = vld [vmem:[%s1 + $0x18] sm:$0xf]
  %v29 = vld [vmem:[%s1 + $0x1c] sm:$0xf]
  %v30 = vld [vmem:[%s1 + $0x20] sm:$0xf]
  %v31 = vld [vmem:[%s1 + $0x24] sm:$0xf]
  %v32 = vld [vmem:[%s1 + $0x28] sm:$0xf]
  %v33 = vld [vmem:[%s1 + $0x2c] sm:$0xf]
  %v34 = vld [vmem:[%s1 + $0x30] sm:$0xf]
  %v35 = vld [vmem:[%s1 + $0x34] sm:$0xf]
  %v36 = vld [vmem:[%s1 + $0x38] sm:$0xf]
  %v37 = vld [vmem:[%s1 + $0x3c] sm:$0xf]
  %v38 = vld [vmem:[%s2] sm:$0x1]
  %v40 = vlaneseq
  %v41 = vshrl.u32 %v40, 7
  %v42 = vsub.s32 0, %v41
  %v43 = vrot.slane %v38, %v42
  %v49 = vunpack.c.l.b16 %v18
  %v50 = vunpack.c.l.b16 %v19
  %v51 = vunpack.c.l.b16 %v20
  %v52 = vunpack.c.l.b16 %v21
  %v53 = vpack.c.b16 %v50, %v49
  %v54 = vpack.c.b16 %v52, %v51
  %v73 = vunpack.c.l.b16 %v22
  %v74 = vunpack.c.l.b16 %v23
  %v75 = vunpack.c.l.b16 %v24
  %v76 = vunpack.c.l.b16 %v25
  %v77 = vunpack.c.l.b16 %v26
  %v78 = vunpack.c.l.b16 %v27
  %v79 = vunpack.c.l.b16 %v28
  %v80 = vunpack.c.l.b16 %v29
  %v81 = vunpack.c.l.b16 %v30
  %v82 = vunpack.c.l.b16 %v31
  %v83 = vunpack.c.l.b16 %v32
  %v84 = vunpack.c.l.b16 %v33
  %v85 = vunpack.c.l.b16 %v34
  %v86 = vunpack.c.l.b16 %v35
  %v87 = vunpack.c.l.b16 %v36
  %v88 = vunpack.c.l.b16 %v37
  %v89 = vpack.c.b16 %v74, %v73
  %v90 = vpack.c.b16 %v76, %v75
  %v91 = vpack.c.b16 %v78, %v77
  %v92 = vpack.c.b16 %v80, %v79
  %v93 = vpack.c.b16 %v82, %v81
  %v94 = vpack.c.b16 %v84, %v83
  %v95 = vpack.c.b16 %v86, %v85
  %v96 = vpack.c.b16 %v88, %v87
  %105 = vmatprep.subr.bf16.mxu0 0
  %106 = vmatpush1.bf16.msra.mxu0 %v89
  %107 = vmatprep.subr.bf16.mxu0 0
  %108 = vmatpush1.bf16.msra.mxu0 %v90
  %109 = vmatprep.subr.bf16.mxu0 0
  %110 = vmatpush1.bf16.msra.mxu0 %v91
  %111 = vmatprep.subr.bf16.mxu0 0
  %112 = vmatpush1.bf16.msra.mxu0 %v92
  %113 = vmatprep.subr.bf16.mxu0 0
  %114 = vmatpush1.bf16.msra.mxu0 %v93
  %115 = vmatprep.subr.bf16.mxu0 0
  %116 = vmatpush1.bf16.msra.mxu0 %v94
  %117 = vmatprep.subr.bf16.mxu0 0
  %118 = vmatpush1.bf16.msra.mxu0 %v95
  %119 = vmatprep.subr.bf16.mxu0 0
  %120 = vmatpush1.bf16.msra.mxu0 %v96
  %121 = vmatprep.subr.bf16.mxu0 0
  %122 = vmatpush1.bf16.msra.mxu0 0
  %123 = vmatprep.subr.bf16.mxu0 0
  %124 = vmatpush1.bf16.msra.mxu0 0
  %125 = vmatprep.subr.bf16.mxu0 0
  %126 = vmatpush1.bf16.msra.mxu0 0
  %127 = vmatprep.subr.bf16.mxu0 0
  %128 = vmatpush1.bf16.msra.mxu0 0
  %129 = vmatprep.subr.bf16.mxu0 0
  %130 = vmatpush1.bf16.msra.mxu0 0
  %131 = vmatprep.subr.bf16.mxu0 0
  %132 = vmatpush1.bf16.msra.mxu0 0
  %133 = vmatprep.subr.bf16.mxu0 0
  %134 = vmatpush1.bf16.msra.mxu0 0
  %135 = vmatprep.subr.bf16.mxu0 0
  %136 = vmatpush1.bf16.msra.mxu0 0
  %137 = vmatprep.mubr.bf16.mxu0 0
  %138 = vmatmul.mubr.bf16.gmra.mrb[0].mxu0 %v53
  %v139 = vpop.f32.mrb[0].mxu0
  %v140 = vadd.f32 %v43, %v139
  %v141 = vpop.f32.mrb[0].mxu0
  %v142 = vpop.f32.mrb[0].mxu0
  %v143 = vadd.f32 %v43, %v142
  %v144 = vpop.f32.mrb[0].mxu0
  %145 = vmatprep.mubr.bf16.mxu0 0
  %146 = vmatmul.mubr.bf16.gmra.mrb[0].mxu0 %v54
  %v147 = vpop.f32.mrb[0].mxu0
  %v148 = vadd.f32 %v43, %v147
  %v149 = vpop.f32.mrb[0].mxu0
  %v150 = vpop.f32.mrb[0].mxu0
  %v151 = vadd.f32 %v43, %v150
  %v152 = vpop.f32.mrb[0].mxu0
  %153 = vdwg.mxu0
  %v154 = vld [vmem:[%s3] sm:$0xff]
  %v155 = vld [vmem:[%s3 + $0x8] sm:$0xff]
  %v156 = vld [vmem:[%s3 + $0x10] sm:$0xff]
  %v157 = vld [vmem:[%s3 + $0x18] sm:$0xff]
  %v158 = vadd.f32 %v154, %v140
  %v159 = vadd.f32 %v155, %v143
  %v160 = vadd.f32 %v156, %v148
  %v161 = vadd.f32 %v157, %v151
  %vm162 = vcmask 261120
  %163 = vst.msk [vmem:[%s4] sm:$0xff] %vm162, %v158
  %164 = vst.msk [vmem:[%s4 + $0x8] sm:$0xff] %vm162, %v159
  %165 = vst.msk [vmem:[%s4 + $0x10] sm:$0xff] %vm162, %v160
  %166 = vst.msk [vmem:[%s4 + $0x18] sm:$0xff] %vm162, %v161
  // Predicated region
  $region18: #{vit_forward.14} parent=0 // pred_check
    _
  $region19: #{vit_forward.14} parent=0 // pred_check_branch
    %168 = sbr.rel (0) target = $region21
  $region20: #{vit_forward.14} parent=0 // pred_region
    _
  $region21: #{vit_forward.14} parent=0 // pred_fallthru
    _
  // Predicated region
  $region22: #{vit_forward.14} parent=0 // pred_check
    _
  $region23: #{vit_forward.14} parent=0 // pred_check_branch
    %170 = sbr.rel (0) target = $region25
  $region24: #{vit_forward.14} parent=0 // pred_region
    _
  $region25: #{vit_forward.14} parent=0 // pred_fallthru
    _

// kernel: vit_forward.19
$region0: #{vit_forward.19}
  #allocation0 [shape = 'u32[]', space=smem, size = 0x4, offset = 0x4, fixed_abs, tag = 'smem constant byte address 0x4 - core index']
  #allocation1 [shape = 'u32[144,128]{1,0:T(1,128)}', space=vmem, size = 0x12000, scoped, tag = 'internal scratch']
  %s0 = inlined_call_operand.vmem [shape: f32[2,16,32], index: 0, kind: input, shape index: {}]
  %s1 = inlined_call_operand.vmem [shape: f32[1,32], index: 1, kind: input, shape index: {}]
  %s2 = inlined_call_operand.vmem [shape: f32[1,32], index: 2, kind: input, shape index: {}]
  %s3 = inlined_call_operand.vmem [shape: bf16[32,128], index: 3, kind: input, shape index: {}]
  %s4 = inlined_call_operand.vmem [shape: f32[1,128], index: 4, kind: input, shape index: {}]
  %s5 = inlined_call_operand.hbm [shape: f32[2,1,128], index: 5, kind: output, shape index: {}]
  %s6 = sld [smem:[#allocation0]]
  $region53: #{vit_forward.19} parent=0
    _
  %s8 = ssub.s32 1, %s6
  %s9 = scalar_select 0, %s8, %s6
  $region1: #{vit_forward.19} parent=0
    #allocation2 [shape = 'u8[1024]{0}', space=vmem, size = 0x400, scoped, tag = 'output window, operand 0']
    #allocation3 [shape = 's32[2]{0}', space=sflag, size = 0x8, scoped, tag = 'scoped memory for vit_forward.19']
    %10 = vsyncpa [#allocation3], 0
    %s11 = scalar_lea.sflag [#allocation3], 1
    %12 = vsyncpa %s11, 0
    loop: start=0, step=1, limit=4
    $region2: #{vit_forward.19} parent=1 // loop_pre_header
      _
    $region3: #{vit_forward.19} parent=1 // loop_header
      %s14 = sphi 0, %s18
      %p15 = scmp.ge.s32.totalorder %s14, 4
      %s24 = sphi 0, %s26
      %s27 = sphi 0, %s24
      %s28 = sphi 0, %s27
      %s44 = sphi 0, %s28
      %s48 = sphi 0, %s48
      %s50 = sphi 0, %s48
      %s51 = sphi 0, %s50
      %s65 = sphi 0, %s51
      %s69 = sphi 0, %s69
      %s71 = sphi 0, %s69
      %s72 = sphi 0, %s71
      %s86 = sphi 0, %s72
      %s90 = sphi 0, %s90
      %s92 = sphi 0, %s90
      %s93 = sphi 0, %s92
      %s107 = sphi 0, %s93
      %s111 = sphi 0, %s111
      %s113 = sphi 0, %s111
      %s114 = sphi 0, %s113
      %s128 = sphi 0, %s114
      %s134 = sphi 0, %s136
      %s137 = sphi 0, %s134
      %s138 = sphi 0, %s137
      %s154 = sphi 0, %s138
    $region4: #{vit_forward.19} parent=1 // loop_header_branch
      %17 = sbr.rel (%p15) target = $region8
    $region5: #{vit_forward.19} parent=1 // loop_body
      %s19 = ssub.s32 %s14, 1
      %s20 = ssub.s32 %s14, 2
      %s21 = sadd.s32 %s14, 1
      %s22 = ssub.s32 %s14, %s21
      %p23 = scmp.eq.s32.totalorder %s22, 0
      %s25 = sadd.s32 %s24, 1
      %s26 = scalar_select %p23, %s24, %s25
      %p29 = pneg %p23
      %p30 = scmp.eq.s32.totalorder %s14, 1
      %p31 = por %p29, %p30
      %p32 = scmp.ne.s32.totalorder %s24, %s27
      %p33 = scmp.eq.s32.totalorder %s14, 0
      %p34 = por %p32, %p33
      %p35 = scmp.ne.s32.totalorder %s24, %s27
      %p36 = scmp.eq.s32.totalorder %s19, 1
      %p37 = por %p35, %p36
      %p38 = scmp.ne.s32.totalorder %s27, %s28
      %p39 = scmp.eq.s32.totalorder %s19, 0
      %p40 = por %p38, %p39
      %p41 = scmp.ne.s32.totalorder %s27, %s28
      %p42 = scmp.eq.s32.totalorder %s20, 1
      %p43 = por %p41, %p42
      %p45 = scmp.ne.s32.totalorder %s28, %s44
      %p46 = scmp.eq.s32.totalorder %s20, 0
      %p47 = por %p45, %p46
      %s49 = sadd.s32 %s48, 1
      %p52 = scmp.eq.s32.totalorder %s14, 1
      %p53 = scmp.ne.s32.totalorder %s48, %s50
      %p54 = scmp.eq.s32.totalorder %s14, 0
      %p55 = por %p53, %p54
      %p56 = scmp.ne.s32.totalorder %s48, %s50
      %p57 = scmp.eq.s32.totalorder %s19, 1
      %p58 = por %p56, %p57
      %p59 = scmp.ne.s32.totalorder %s50, %s51
      %p60 = scmp.eq.s32.totalorder %s19, 0
      %p61 = por %p59, %p60
      %p62 = scmp.ne.s32.totalorder %s50, %s51
      %p63 = scmp.eq.s32.totalorder %s20, 1
      %p64 = por %p62, %p63
      %p66 = scmp.ne.s32.totalorder %s51, %s65
      %p67 = scmp.eq.s32.totalorder %s20, 0
      %p68 = por %p66, %p67
      %s70 = sadd.s32 %s69, 1
      %p73 = scmp.eq.s32.totalorder %s14, 1
      %p74 = scmp.ne.s32.totalorder %s69, %s71
      %p75 = scmp.eq.s32.totalorder %s14, 0
      %p76 = por %p74, %p75
      %p77 = scmp.ne.s32.totalorder %s69, %s71
      %p78 = scmp.eq.s32.totalorder %s19, 1
      %p79 = por %p77, %p78
      %p80 = scmp.ne.s32.totalorder %s71, %s72
      %p81 = scmp.eq.s32.totalorder %s19, 0
      %p82 = por %p80, %p81
      %p83 = scmp.ne.s32.totalorder %s71, %s72
      %p84 = scmp.eq.s32.totalorder %s20, 1
      %p85 = por %p83, %p84
      %p87 = scmp.ne.s32.totalorder %s72, %s86
      %p88 = scmp.eq.s32.totalorder %s20, 0
      %p89 = por %p87, %p88
      %s91 = sadd.s32 %s90, 1
      %p94 = scmp.eq.s32.totalorder %s14, 1
      %p95 = scmp.ne.s32.totalorder %s90, %s92
      %p96 = scmp.eq.s32.totalorder %s14, 0
      %p97 = por %p95, %p96
      %p98 = scmp.ne.s32.totalorder %s90, %s92
      %p99 = scmp.eq.s32.totalorder %s19, 1
      %p100 = por %p98, %p99
      %p101 = scmp.ne.s32.totalorder %s92, %s93
      %p102 = scmp.eq.s32.totalorder %s19, 0
      %p103 = por %p101, %p102
      %p104 = scmp.ne.s32.totalorder %s92, %s93
      %p105 = scmp.eq.s32.totalorder %s20, 1
      %p106 = por %p104, %p105
      %p108 = scmp.ne.s32.totalorder %s93, %s107
      %p109 = scmp.eq.s32.totalorder %s20, 0
      %p110 = por %p108, %p109
      %s112 = sadd.s32 %s111, 1
      %p115 = scmp.eq.s32.totalorder %s14, 1
      %p116 = scmp.ne.s32.totalorder %s111, %s113
      %p117 = scmp.eq.s32.totalorder %s14, 0
      %p118 = por %p116, %p117
      %p119 = scmp.ne.s32.totalorder %s111, %s113
      %p120 = scmp.eq.s32.totalorder %s19, 1
      %p121 = por %p119, %p120
      %p122 = scmp.ne.s32.totalorder %s113, %s114
      %p123 = scmp.eq.s32.totalorder %s19, 0
      %p124 = por %p122, %p123
      %p125 = scmp.ne.s32.totalorder %s113, %s114
      %p126 = scmp.eq.s32.totalorder %s20, 1
      %p127 = por %p125, %p126
      %p129 = scmp.ne.s32.totalorder %s114, %s128
      %p130 = scmp.eq.s32.totalorder %s20, 0
      %p131 = por %p129, %p130
      %s132 = ssub.s32 %s14, %s21
      %p133 = scmp.eq.s32.totalorder %s132, 0
      %s135 = sadd.s32 %s134, 1
      %s136 = scalar_select %p133, %s134, %s135
      %p139 = pneg %p133
      %p140 = scmp.eq.s32.totalorder %s14, 1
      %p141 = por %p139, %p140
      %p142 = scmp.ne.s32.totalorder %s134, %s137
      %p143 = scmp.eq.s32.totalorder %s14, 0
      %p144 = por %p142, %p143
      %p145 = scmp.ne.s32.totalorder %s134, %s137
      %p146 = scmp.eq.s32.totalorder %s19, 1
      %p147 = por %p145, %p146
      %p148 = scmp.ne.s32.totalorder %s137, %s138
      %p149 = scmp.eq.s32.totalorder %s19, 0
      %p150 = por %p148, %p149
      %p151 = scmp.ne.s32.totalorder %s137, %s138
      %p152 = scmp.eq.s32.totalorder %s20, 1
      %p153 = por %p151, %p152
      %p155 = scmp.ne.s32.totalorder %s138, %s154
      %p156 = scmp.eq.s32.totalorder %s20, 0
      %p157 = por %p155, %p156
      %p158 = scmp.le.s32.totalorder 1, %s14
      %p159 = scmp.lt.s32.totalorder %s14, 3
      %p160 = pnand %p158, %p159
      %p161 = pneg %p160
      // Predicated region
      $region9: #{vit_forward.19} parent=5 // pred_check
        _
      $region10: #{vit_forward.19} parent=5 // pred_check_branch
        %163 = sbr.rel (%p160) target = $region12
      $region11: #{vit_forward.19} parent=5 // pred_region
        %s164 = ssub.s32 %s14, 1
        // Predicated region
        $region13: #{vit_forward.19} parent=11 // pred_check
          %p165 = pneg %p61
        $region14: #{vit_forward.19} parent=11 // pred_check_branch
          %167 = sbr.rel (%p165) target = $region16
        $region15: #{vit_forward.19} parent=11 // pred_region
          _
        $region16: #{vit_forward.19} parent=11 // pred_fallthru
          _
        // Predicated region
        $region17: #{vit_forward.19} parent=11 // pred_check
          %p168 = pneg %p82
        $region18: #{vit_forward.19} parent=11 // pred_check_branch
          %170 = sbr.rel (%p168) target = $region20
        $region19: #{vit_forward.19} parent=11 // pred_region
          _
        $region20: #{vit_forward.19} parent=11 // pred_fallthru
          _
        // Predicated region
        $region21: #{vit_forward.19} parent=11 // pred_check
          %p171 = pneg %p103
        $region22: #{vit_forward.19} parent=11 // pred_check_branch
          %173 = sbr.rel (%p171) target = $region24
        $region23: #{vit_forward.19} parent=11 // pred_region
          _
        $region24: #{vit_forward.19} parent=11 // pred_fallthru
          _
        // Predicated region
        $region25: #{vit_forward.19} parent=11 // pred_check
          %p174 = pneg %p124
        $region26: #{vit_forward.19} parent=11 // pred_check_branch
          %176 = sbr.rel (%p174) target = $region28
        $region27: #{vit_forward.19} parent=11 // pred_region
          _
        $region28: #{vit_forward.19} parent=11 // pred_fallthru
          _
      $region12: #{vit_forward.19} parent=5 // pred_fallthru
        _
      %p177 = scmp.lt.s32.totalorder %s14, 2
      // Predicated region
      $region29: #{vit_forward.19} parent=5 // pred_check
        %p178 = pneg %p177
      $region30: #{vit_forward.19} parent=5 // pred_check_branch
        %180 = sbr.rel (%p178) target = $region32
      $region31: #{vit_forward.19} parent=5 // pred_region
        // Predicated region
        $region33: #{vit_forward.19} parent=31 // pred_check
          %p181 = pneg %p34
        $region34: #{vit_forward.19} parent=31 // pred_check_branch
          %183 = sbr.rel (%p181) target = $region36
        $region35: #{vit_forward.19} parent=31 // pred_region
          %p184 = scmp.lt.s32.totalorder %s14, 1
          %s185 = scalar_select %p184, %s14, 1
          %s186 = smul.addr %s185, 2
          %s187 = smul.addr %s186, 8
          %s188 = scalar_lea.vmem %s0, %s187
        $region36: #{vit_forward.19} parent=31 // pred_fallthru
          _
      $region32: #{vit_forward.19} parent=5 // pred_fallthru
        _
      %p189 = scmp.le.s32.totalorder 1, %s14
      %p190 = scmp.lt.s32.totalorder %s14, 3
      %p191 = pnand %p189, %p190
      %p192 = pneg %p191
      // Predicated region
      $region37: #{vit_forward.19} parent=5 // pred_check
        _
      $region38: #{vit_forward.19} parent=5 // pred_check_branch
        %194 = sbr.rel (%p191) target = $region40
      $region39: #{vit_forward.19} parent=5 // pred_region
        %s195 = ssub.s32 %s14, 1
        %p196 = scmp.lt.s32.totalorder %s19, 1
        %s197 = scalar_select %p196, %s19, 1
        %s198 = smul.addr %s197, 2
        %s199 = smul.addr %s198, 8
        %s200 = scalar_lea.vmem %s0, %s199
        %p201 = pneg %p40
        %p202 = pneg %p37
        %p203 = pneg %p61
        %p204 = pneg %p58
        %p205 = pneg %p82
        %p206 = pneg %p79
        %p207 = pneg %p103
        %p208 = pneg %p100
        %p209 = pneg %p124
        %p210 = pneg %p121
        %p211 = pneg %p150
        %p212 = pneg %p147
        %s213 = sand.u32 %s137, 1
        %s214 = scalar_lea.sflag [#allocation3], %s213
        %s215 = sand.u32 %s137, 1
        %s216 = scalar_lea.vmem [#allocation2], %s215
        %p217 = scmp.lt.s32.totalorder %s19, 1
        %s218 = scalar_select %p217, %s19, 1
        %s219 = smul.addr %s218, 2
        %s220 = smul.addr %s219, 8
        %s221 = scalar_lea.vmem %s0, %s220
        %v223 = vld [vmem:[%s221] sm:$0xff]
        %v224 = vld [vmem:[%s221 + $0x8] sm:$0xff]
        %v225 = vld [vmem:[%s1] sm:$0x1]
        %v226 = vld [vmem:[%s2] sm:$0x1]
        %vm227 = vcmask 261120
        %v228 = vsel %vm227, %v223, 0.0
        %229 = vadd.xlane.f32.xlu0 %v228
        %v230 = vpop.xlane.xlu0 %229
        %v231 = vsel %vm227, %v224, 0.0
        %232 = vadd.xlane.f32.xlu0 %v231
        %v233 = vpop.xlane.xlu0 %232
        %v234 = vrcp.pop 32.0
        %v235 = vmul.f32 %v230, %v234
        %v236 = vmul.f32 %v233, %v234
        %v237 = vsub.f32 %v223, %v235
        %v238 = vsub.f32 %v224, %v236
        %v239 = vmul.f32 %v237, %v237
        %v240 = vmul.f32 %v238, %v238
        %v241 = vsel %vm227, %v239, 0.0
        %242 = vadd.xlane.f32.xlu0 %v241
        %v243 = vpop.xlane.xlu0 %242
        %v244 = vsel %vm227, %v240, 0.0
        %245 = vadd.xlane.f32.xlu0 %v244
        %v246 = vpop.xlane.xlu0 %245
        %v247 = vmul.f32 %v243, %v234
        %v248 = vmul.f32 %v246, %v234
        %v249 = vadd.f32 %v247, 1e-06
        %v250 = vadd.f32 %v248, 1e-06
        %v251 = vrsqrt.pop %v249
        %v252 = vrsqrt.pop %v250
        %v253 = vmul.f32 %v237, %v251
        %v254 = vmul.f32 %v238, %v252
        %v256 = vlaneseq
        %v257 = vshrl.u32 %v256, 7
        %v258 = vsub.s32 0, %v257
        %v259 = vrot.slane %v225, %v258
        %v261 = vmul.f32 %v253, %v259
        %v262 = vmul.f32 %v254, %v259
        %v264 = vlaneseq
        %v265 = vshrl.u32 %v264, 7
        %v266 = vsub.s32 0, %v265
        %v267 = vrot.slane %v226, %v266
        %v269 = vadd.f32 %v261, %v267
        %v270 = vadd.f32 %v262, %v267
        %v271 = vsel %vm227, %v269, 0.0
        %v272 = vsel %vm227, %v270, 0.0
        %v273 = vadd.f32 %v271, %v272
        %v274 = vrot.slane %v273, 4
        %v275 = vadd.f32 %v273, %v274
        %v276 = vrot.slane %v275, 2
        %v277 = vadd.f32 %v275, %v276
        %v278 = vrot.slane %v277, 1
        %v279 = vadd.f32 %v277, %v278
        %v280 = vrcp.pop 16.0
        %v281 = vmul.f32 %v279, %v280
        %v282 = vpack.c.bf16 %v281, %v281
        %v283 = vld [vmem:[%s3] sm:$0xf]
        %v284 = vld [vmem:[%s3 + $0x4] sm:$0xf]
        %v285 = vld [vmem:[%s3 + $0x8] sm:$0xf]
        %v286 = vld [vmem:[%s3 + $0xc] sm:$0xf]
        %v287 = vld [vmem:[%s4] sm:$0x1]
        %v292 = vunpack.c.l.b16 %v283
        %v293 = vunpack.c.l.b16 %v284
        %v294 = vunpack.c.l.b16 %v285
        %v295 = vunpack.c.l.b16 %v286
        %v296 = vpack.c.b16 %v293, %v292
        %v297 = vpack.c.b16 %v295, %v294
        %v301 = vsel %vm227, %v282, 0
        %303 = vmatprep.subr.bf16.mxu0 0
        %304 = vmatpush1.bf16.msra.mxu0 %v296
        %305 = vmatprep.subr.bf16.mxu0 0
        %306 = vmatpush1.bf16.msra.mxu0 %v297
        %307 = vmatprep.subr.bf16.mxu0 0
        %308 = vmatpush1.bf16.msra.mxu0 0
        %309 = vmatprep.subr.bf16.mxu0 0
        %310 = vmatpush1.bf16.msra.mxu0 0
        %311 = vmatprep.subr.bf16.mxu0 0
        %312 = vmatpush1.bf16.msra.mxu0 0
        %313 = vmatprep.subr.bf16.mxu0 0
        %314 = vmatpush1.bf16.msra.mxu0 0
        %315 = vmatprep.subr.bf16.mxu0 0
        %316 = vmatpush1.bf16.msra.mxu0 0
        %317 = vmatprep.subr.bf16.mxu0 0
        %318 = vmatpush1.bf16.msra.mxu0 0
        %319 = vmatprep.subr.bf16.mxu0 0
        %320 = vmatpush1.bf16.msra.mxu0 0
        %321 = vmatprep.subr.bf16.mxu0 0
        %322 = vmatpush1.bf16.msra.mxu0 0
        %323 = vmatprep.subr.bf16.mxu0 0
        %324 = vmatpush1.bf16.msra.mxu0 0
        %325 = vmatprep.subr.bf16.mxu0 0
        %326 = vmatpush1.bf16.msra.mxu0 0
        %327 = vmatprep.subr.bf16.mxu0 0
        %328 = vmatpush1.bf16.msra.mxu0 0
        %329 = vmatprep.subr.bf16.mxu0 0
        %330 = vmatpush1.bf16.msra.mxu0 0
        %331 = vmatprep.subr.bf16.mxu0 0
        %332 = vmatpush1.bf16.msra.mxu0 0
        %333 = vmatprep.subr.bf16.mxu0 0
        %334 = vmatpush1.bf16.msra.mxu0 0
        %335 = vmatprep.mubr.bf16.mxu0 0
        %336 = vmatmul.mubr.bf16.gmra.mrb[0].mxu0 %v301
        %v337 = vpop.f32.mrb[0].mxu0
        %v338 = vadd.f32 %v287, %v337
        %v339 = vpop.f32.mrb[0].mxu0
        %v340 = vpop.f32.mrb[0].mxu0
        %v341 = vpop.f32.mrb[0].mxu0
        %342 = vdwg.mxu0
        %343 = vst [vmem:[%s216] sm:$0x1] %v338
        %s344 = sand.u32 %s137, 1
        %s345 = scalar_lea.sflag [#allocation3], %s344
        %s346 = sand.u32 %s137, 1
        %s347 = scalar_lea.vmem [#allocation2], %s346
        // Predicated region
        $region41: #{vit_forward.19} parent=39 // pred_check
          %p348 = pneg %p147
        $region42: #{vit_forward.19} parent=39 // pred_check_branch
          %350 = sbr.rel (%p348) target = $region44
        $region43: #{vit_forward.19} parent=39 // pred_region
          %s352 = ssub.s32 16, 16
          %353 = vsyncadd %s345, %s352
          %s354 = smul.addr %s19, 16
          %s355 = scalar_lea.hbm %s5, %s354
          %s357 = sshll.u32 %s347, 4
          %s358 = int_to_ptr.vmem [resolvable:$true] %s357
          %360 = dma.vmem_to_hbm [thread:$0]  %s358, 16, %s355, %s345
        $region44: #{vit_forward.19} parent=39 // pred_fallthru
          _
      $region40: #{vit_forward.19} parent=5 // pred_fallthru
        _
      %p361 = scmp.le.s32.totalorder 2, %s14
      // Predicated region
      $region45: #{vit_forward.19} parent=5 // pred_check
        %p362 = pneg %p361
      $region46: #{vit_forward.19} parent=5 // pred_check_branch
        %364 = sbr.rel (%p362) target = $region48
      $region47: #{vit_forward.19} parent=5 // pred_region
        %s365 = ssub.s32 %s14, 2
        // Predicated region
        $region49: #{vit_forward.19} parent=47 // pred_check
          %p366 = pneg %p153
        $region50: #{vit_forward.19} parent=47 // pred_check_branch
          %368 = sbr.rel (%p366) target = $region52
        $region51: #{vit_forward.19} parent=47 // pred_region
          %s369 = sand.u32 %s138, 1
          %s370 = scalar_lea.sflag [#allocation3], %s369
          %s371 = sand.u32 %s138, 1
          %s372 = scalar_lea.vmem [#allocation2], %s371
          %373 = dma.done %s370, 16
        $region52: #{vit_forward.19} parent=47 // pred_fallthru
          _
      $region48: #{vit_forward.19} parent=5 // pred_fallthru
        _
    $region6: #{vit_forward.19} parent=1 // loop_footer
      %s18 = sadd.s32 1, %s14
    $region7: #{vit_forward.19} parent=1 // loop_footer_branch
      %13 = sbr.rel target = $region3
    $region8: #{vit_forward.19} parent=1 // loop_exit
      _
    %374 = vsyncpa [#allocation3], 1
    %s375 = scalar_lea.sflag [#allocation3], 1
    %376 = vsyncpa %s375, 1

</llo_original>
